<compile_context>
chip_gen: v6e
topology: v6e:2x2x1
jax: 0.10.0
libtpu: 0.0.40
codegen_flags: <defaults>
</compile_context>

<pallas_src>
import functools

import jax
import jax.numpy as jnp
from jax.experimental import pallas as pl
from jax.experimental.pallas import tpu as pltpu

SELU_ALPHA = 1.6732632423543772
SELU_LAMBDA = 1.0507009873554805
LN_EPS = 1e-5


def _layernorm(x, gamma, beta):
    mu = jnp.mean(x, axis=-1, keepdims=True)
    var = jnp.mean((x - mu) ** 2, axis=-1, keepdims=True)
    return (x - mu) * jax.lax.rsqrt(var + LN_EPS) * gamma + beta


def tst_encoder_kernel(src_ref, wq_ref, bq_ref, wk_ref, bk_ref, wv_ref, bv_ref,
                       wo_ref, bo_ref, g1_ref, b1_ref, g2_ref, b2_ref, out_ref,
                       *, n_heads, seq_len, batch_block, scale, compute_dtype):
    """One grid step = one (batch_block, layer) pair.

    Grid = (num_batch_blocks, n_layers); the layer axis is "arbitrary" and the
    output block index only depends on the batch axis, so out_ref stays resident
    in VMEM across the whole layer loop (it carries the activation).
    """
    layer = pl.program_id(1)

    # First layer of this batch block: seed the resident activation from src.
    @pl.when(layer == 0)
    def _():
        out_ref[...] = src_ref[...]

    x = out_ref[...]                       # (Bt*L, D) float32, VMEM-resident
    H, L = n_heads, seq_len
    D = x.shape[-1]

    # Per-layer, head-major weights (pre-packed wrapper-side; no in-kernel
    # lane slicing of d_k-wide columns).
    wq = wq_ref[0].astype(compute_dtype)   # (H, D, d_k)
    wk = wk_ref[0].astype(compute_dtype)   # (H, D, d_k)
    wv = wv_ref[0].astype(compute_dtype)   # (H, D, d_v)
    wo = wo_ref[0].astype(compute_dtype)   # (H, d_v, D)
    bq, bk, bv = bq_ref[0], bk_ref[0], bv_ref[0]   # (H, 1, d_k) float32

    projs = []
    for bb in range(batch_block):          # static, unrolled over batch elements
        xb = x[bb * L:(bb + 1) * L, :]                                   # (L, D)
        xh = jnp.broadcast_to(xb[None].astype(compute_dtype), (H, L, D))  # (H, L, D)

        # Head-batched projections (batch dim = heads, f32 accumulation).
        q = jnp.einsum('hld,hdk->hlk', xh, wq,
                       preferred_element_type=jnp.float32) + bq           # (H, L, d_k)
        k = jnp.einsum('hld,hdk->hlk', xh, wk,
                       preferred_element_type=jnp.float32) + bk           # (H, L, d_k)
        v = jnp.einsum('hld,hdk->hlk', xh, wv,
                       preferred_element_type=jnp.float32) + bv           # (H, L, d_v)

        # Scaled dot-product attention, numerically stable softmax.
        s = jnp.einsum('hld,hmd->hlm', q.astype(compute_dtype), k.astype(compute_dtype),
                       preferred_element_type=jnp.float32) * scale        # (H, L, L)
        s = s - jnp.max(s, axis=-1, keepdims=True)
        p = jnp.exp(s)
        # EUP approximate reciprocal instead of a VPU divide.
        p = p * pl.reciprocal(jnp.sum(p, axis=-1, keepdims=True), approx=True)

        o = jnp.einsum('hlm,hmd->hld', p.astype(compute_dtype), v.astype(compute_dtype),
                       preferred_element_type=jnp.float32)                # (H, L, d_v)

        # Output projection: one head-batched matmul + reduce over heads
        # (== concat_heads(o) @ W_out, no in-kernel concatenate/transpose).
        ph = jnp.einsum('hld,hdm->hlm', o.astype(compute_dtype), wo,
                        preferred_element_type=jnp.float32)               # (H, L, D)
        projs.append(jnp.sum(ph, axis=0))                                 # (L, D)

    proj = projs[0] if batch_block == 1 else jnp.concatenate(projs, axis=0)
    proj = proj + bo_ref[0]                # single bias add, before SELU

    # SELU, residual (dropout p=0 -> identity), LayerNorm x2.
    act = SELU_LAMBDA * jnp.where(proj > 0, proj,
                                  SELU_ALPHA * (jnp.exp(proj) - 1.0))
    y = x + act
    y = _layernorm(y, g1_ref[0], b1_ref[0])   # norm_attn
    y = _layernorm(y, g2_ref[0], b2_ref[0])   # norm_ffn
    out_ref[...] = y.astype(out_ref.dtype)


def tst_encoder_forward(src, packed, n_heads, *, batch_block=None,
                        compute_dtype=jnp.float32):
    """Run the full TSTEncoder (all layers) in a single pallas_call."""
    B, L, D = src.shape
    n_layers = packed["wq"].shape[0]
    d_k = D // n_heads
    if batch_block is None:
        batch_block = B            # biggest block that exists at this toy size
    assert B % batch_block == 0
    nb = B // batch_block          # "parallel" axis (megacore shards batch blocks)
    rows = batch_block * L

    kernel = functools.partial(
        tst_encoder_kernel, n_heads=n_heads, seq_len=L, batch_block=batch_block,
        scale=float(d_k) ** -0.5, compute_dtype=compute_dtype)

    # Activation handled as flat rows (B*L, D); reshape outside is free.
    act_spec = pl.BlockSpec((rows, D), lambda i, l: (i, 0))

    def lspec(*tail):              # per-layer slice of a stacked parameter
        zeros = (0,) * len(tail)
        return pl.BlockSpec((1,) + tail, lambda i, l: (l,) + zeros)

    out_flat = pl.pallas_call(
        kernel,
        out_shape=jax.ShapeDtypeStruct((B * L, D), src.dtype),
        grid=(nb, n_layers),
        in_specs=[act_spec,
                  lspec(n_heads, D, d_k), lspec(n_heads, 1, d_k),   # W_Q, b_Q
                  lspec(n_heads, D, d_k), lspec(n_heads, 1, d_k),   # W_K, b_K
                  lspec(n_heads, D, d_k), lspec(n_heads, 1, d_k),   # W_V, b_V
                  lspec(n_heads, d_k, D), lspec(1, D),              # W_out, b_out
                  lspec(1, D), lspec(1, D),                         # norm_attn g, b
                  lspec(1, D), lspec(1, D)],                        # norm_ffn  g, b
        out_specs=act_spec,
        compiler_params=pltpu.CompilerParams(
            dimension_semantics=("parallel", "arbitrary"),
            vmem_limit_bytes=32 * 1024 * 1024),   # explicit budget (tiny footprint; v7x-safe)
    )(src.reshape(B * L, D),
      packed["wq"], packed["bq"], packed["wk"], packed["bk"],
      packed["wv"], packed["bv"], packed["wo"], packed["bo"],
      packed["ln1_g"], packed["ln1_b"], packed["ln2_g"], packed["ln2_b"])
    return out_flat.reshape(B, L, D)


# -------------------- wrapper-side parameter packing --------------------------
def pack_encoder_params(layer_params, n_heads):
    """Stack per-layer params and pre-reshape QKV/out weights to head-major."""
    D = layer_params[0]["wq"].shape[0]
    d_k = D // n_heads

    def head_w(w):    # (D_in, H*d_k) -> (H, D_in, d_k)
        return w.reshape(D, n_heads, d_k).transpose(1, 0, 2)

    def head_b(b):    # (1, H*d_k) -> (H, 1, d_k)
        return b.reshape(n_heads, d_k)[:, None, :]

    def head_wo(w):   # (H*d_v, D) -> (H, d_v, D)
        return w.reshape(n_heads, d_k, D)

    def ident(x):
        return x

    def stack(fn, name):
        return jnp.stack([fn(p[name]) for p in layer_params])

    return dict(
        wq=stack(head_w, "wq"), bq=stack(head_b, "bq"),
        wk=stack(head_w, "wk"), bk=stack(head_b, "bk"),
        wv=stack(head_w, "wv"), bv=stack(head_b, "bv"),
        wo=stack(head_wo, "wo"), bo=stack(ident, "bo"),
        ln1_g=stack(ident, "ln1_g"), ln1_b=stack(ident, "ln1_b"),
        ln2_g=stack(ident, "ln2_g"), ln2_b=stack(ident, "ln2_b"),
    )


# ---------------- pure-JAX reference (for correctness check) -----------------
def ref_layer(x, p, n_heads):
    B, L, D = x.shape
    d_k = D // n_heads
    q = (x @ p["wq"] + p["bq"][0]).reshape(B, L, n_heads, d_k).transpose(0, 2, 1, 3)
    k = (x @ p["wk"] + p["bk"][0]).reshape(B, L, n_heads, d_k).transpose(0, 2, 3, 1)
    v = (x @ p["wv"] + p["bv"][0]).reshape(B, L, n_heads, d_k).transpose(0, 2, 1, 3)
    s = jnp.einsum("bhqd,bhdk->bhqk", q, k) * (d_k ** -0.5)
    a = jax.nn.softmax(s, axis=-1)
    o = jnp.einsum("bhqk,bhkd->bhqd", a, v).transpose(0, 2, 1, 3).reshape(B, L, D)
    o = o @ p["wo"] + p["bo"][0]
    o = SELU_LAMBDA * jnp.where(o > 0, o, SELU_ALPHA * (jnp.exp(o) - 1.0))
    y = x + o

    def ln(z, g, b):
        mu = z.mean(-1, keepdims=True)
        var = ((z - mu) ** 2).mean(-1, keepdims=True)
        return (z - mu) / jnp.sqrt(var + LN_EPS) * g + b

    y = ln(y, p["ln1_g"][0], p["ln1_b"][0])
    y = ln(y, p["ln2_g"][0], p["ln2_b"][0])
    return y


# ---------------------------- parameter init ---------------------------------
def init_layer_params(key, d_model):
    ks = jax.random.split(key, 8)
    s = 0.02

    def w(k):
        return jax.random.normal(k, (d_model, d_model), jnp.float32) * s

    def b(k):
        return jax.random.normal(k, (1, d_model), jnp.float32) * s

    return dict(
        wq=w(ks[0]), bq=b(ks[1]), wk=w(ks[2]), bk=b(ks[3]),
        wv=w(ks[4]), bv=b(ks[5]), wo=w(ks[6]), bo=b(ks[7]),
        ln1_g=jnp.ones((1, d_model), jnp.float32),
        ln1_b=jnp.zeros((1, d_model), jnp.float32),
        ln2_g=jnp.ones((1, d_model), jnp.float32),
        ln2_b=jnp.zeros((1, d_model), jnp.float32),
    )


if __name__ == "__main__":
    B, L, D, H, n_layers = 2, 8, 32, 4, 2      # batch, q_len, d_model, n_heads
    key = jax.random.PRNGKey(0)
    keys = jax.random.split(key, 1 + n_layers)
    src = jax.random.normal(keys[0], (B, L, D), jnp.float32)
    layer_params = [init_layer_params(keys[1 + i], D) for i in range(n_layers)]
    packed = pack_encoder_params(layer_params, H)

    # Fused kernel, f32 matmul path.
    out = jax.block_until_ready(tst_encoder_forward(src, packed, H))

    ref = src
    for p in layer_params:
        ref = ref_layer(ref, p, H)

    assert out.shape == (B, L, D)
    # Tolerance leaves margin for the EUP approximate reciprocal in softmax.
    assert jnp.allclose(out, ref, atol=5e-3, rtol=5e-3), \
        "Pallas f32 result mismatch vs JAX reference"

    # bf16 MXU inputs (v6e/v7x path), f32 accumulation; looser tolerance.
    out_bf16 = jax.block_until_ready(
        tst_encoder_forward(src, packed, H, compute_dtype=jnp.bfloat16))
    assert out_bf16.shape == (B, L, D)
    assert jnp.allclose(out_bf16, ref, atol=5e-2, rtol=5e-2), \
        "Pallas bf16 result mismatch vs JAX reference"

    print("KERNEL_OK")
</pallas_src>

<mosaic_0001>
module attributes {stable_mosaic.version = 11 : i64} {
  func.func @tst_encoder_kernel(%arg0: i32, %arg1: i32, %arg2: memref<16x32xf32, #tpu.memory_space<vmem>>, %arg3: memref<1x4x32x8xf32, #tpu.memory_space<vmem>>, %arg4: memref<1x4x1x8xf32, #tpu.memory_space<vmem>>, %arg5: memref<1x4x32x8xf32, #tpu.memory_space<vmem>>, %arg6: memref<1x4x1x8xf32, #tpu.memory_space<vmem>>, %arg7: memref<1x4x32x8xf32, #tpu.memory_space<vmem>>, %arg8: memref<1x4x1x8xf32, #tpu.memory_space<vmem>>, %arg9: memref<1x4x8x32xf32, #tpu.memory_space<vmem>>, %arg10: memref<1x1x32xf32, #tpu.memory_space<vmem>>, %arg11: memref<1x1x32xf32, #tpu.memory_space<vmem>>, %arg12: memref<1x1x32xf32, #tpu.memory_space<vmem>>, %arg13: memref<1x1x32xf32, #tpu.memory_space<vmem>>, %arg14: memref<1x1x32xf32, #tpu.memory_space<vmem>>, %arg15: memref<16x32xf32, #tpu.memory_space<vmem>>) attributes {dimension_semantics = [#tpu.dimension_semantics<parallel>, #tpu.dimension_semantics<arbitrary>], iteration_bounds = array<i64: 1, 2>, scalar_prefetch = 0 : i64, scratch_operands = 0 : i64, tpu.core_type = #tpu.core_type<tc>, window_params = [{transform_indices = @transform_0, window_bounds = array<i64: 16, 32>}, {transform_indices = @transform_1, window_bounds = array<i64: 1, 4, 32, 8>}, {transform_indices = @transform_2, window_bounds = array<i64: 1, 4, 1, 8>}, {transform_indices = @transform_3, window_bounds = array<i64: 1, 4, 32, 8>}, {transform_indices = @transform_4, window_bounds = array<i64: 1, 4, 1, 8>}, {transform_indices = @transform_5, window_bounds = array<i64: 1, 4, 32, 8>}, {transform_indices = @transform_6, window_bounds = array<i64: 1, 4, 1, 8>}, {transform_indices = @transform_7, window_bounds = array<i64: 1, 4, 8, 32>}, {transform_indices = @transform_8, window_bounds = array<i64: 1, 1, 32>}, {transform_indices = @transform_9, window_bounds = array<i64: 1, 1, 32>}, {transform_indices = @transform_10, window_bounds = array<i64: 1, 1, 32>}, {transform_indices = @transform_11, window_bounds = array<i64: 1, 1, 32>}, {transform_indices = @transform_12, window_bounds = array<i64: 1, 1, 32>}, {transform_indices = @transform_13, window_bounds = array<i64: 16, 32>}]} {
    %c0_i32 = arith.constant 0 : i32
    %0 = arith.cmpi eq, %arg1, %c0_i32 : i32
    %1 = arith.extui %0 : i1 to i32
    %c0_i32_0 = arith.constant 0 : i32
    %2 = arith.cmpi ne, %1, %c0_i32_0 : i32
    scf.if %2 {
      %c0_80 = arith.constant 0 : index
      %c0_81 = arith.constant 0 : index
      %145 = vector.load %arg2[%c0_80, %c0_81] : memref<16x32xf32, #tpu.memory_space<vmem>>, vector<16x32xf32>
      %c0_82 = arith.constant 0 : index
      %c0_83 = arith.constant 0 : index
      %146 = vector.load %arg15[%c0_82, %c0_83] : memref<16x32xf32, #tpu.memory_space<vmem>>, vector<16x32xf32>
      tpu.vector_store %arg15[%c0_82, %c0_83], %145 {strides = array<i32>} : memref<16x32xf32, #tpu.memory_space<vmem>>, vector<16x32xf32>,
    } else {
    }
    %c0 = arith.constant 0 : index
    %c0_1 = arith.constant 0 : index
    %3 = vector.load %arg15[%c0, %c0_1] : memref<16x32xf32, #tpu.memory_space<vmem>>, vector<16x32xf32>
    %c0_2 = arith.constant 0 : index
    %c0_3 = arith.constant 0 : index
    %c0_4 = arith.constant 0 : index
    %c0_5 = arith.constant 0 : index
    %4 = vector.load %arg3[%c0_2, %c0_3, %c0_4, %c0_5] : memref<1x4x32x8xf32, #tpu.memory_space<vmem>>, vector<1x4x32x8xf32>
    %5 = vector.shape_cast %4 : vector<1x4x32x8xf32> to vector<4x32x8xf32>
    %c0_6 = arith.constant 0 : index
    %c0_7 = arith.constant 0 : index
    %c0_8 = arith.constant 0 : index
    %c0_9 = arith.constant 0 : index
    %6 = vector.load %arg5[%c0_6, %c0_7, %c0_8, %c0_9] : memref<1x4x32x8xf32, #tpu.memory_space<vmem>>, vector<1x4x32x8xf32>
    %7 = vector.shape_cast %6 : vector<1x4x32x8xf32> to vector<4x32x8xf32>
    %c0_10 = arith.constant 0 : index
    %c0_11 = arith.constant 0 : index
    %c0_12 = arith.constant 0 : index
    %c0_13 = arith.constant 0 : index
    %8 = vector.load %arg7[%c0_10, %c0_11, %c0_12, %c0_13] : memref<1x4x32x8xf32, #tpu.memory_space<vmem>>, vector<1x4x32x8xf32>
    %9 = vector.shape_cast %8 : vector<1x4x32x8xf32> to vector<4x32x8xf32>
    %c0_14 = arith.constant 0 : index
    %c0_15 = arith.constant 0 : index
    %c0_16 = arith.constant 0 : index
    %c0_17 = arith.constant 0 : index
    %10 = vector.load %arg9[%c0_14, %c0_15, %c0_16, %c0_17] : memref<1x4x8x32xf32, #tpu.memory_space<vmem>>, vector<1x4x8x32xf32>
    %11 = vector.shape_cast %10 : vector<1x4x8x32xf32> to vector<4x8x32xf32>
    %c0_18 = arith.constant 0 : index
    %c0_19 = arith.constant 0 : index
    %c0_20 = arith.constant 0 : index
    %c0_21 = arith.constant 0 : index
    %12 = vector.load %arg4[%c0_18, %c0_19, %c0_20, %c0_21] : memref<1x4x1x8xf32, #tpu.memory_space<vmem>>, vector<1x4x1x8xf32>
    %13 = vector.shape_cast %12 : vector<1x4x1x8xf32> to vector<4x1x8xf32>
    %c0_22 = arith.constant 0 : index
    %c0_23 = arith.constant 0 : index
    %c0_24 = arith.constant 0 : index
    %c0_25 = arith.constant 0 : index
    %14 = vector.load %arg6[%c0_22, %c0_23, %c0_24, %c0_25] : memref<1x4x1x8xf32, #tpu.memory_space<vmem>>, vector<1x4x1x8xf32>
    %15 = vector.shape_cast %14 : vector<1x4x1x8xf32> to vector<4x1x8xf32>
    %c0_26 = arith.constant 0 : index
    %c0_27 = arith.constant 0 : index
    %c0_28 = arith.constant 0 : index
    %c0_29 = arith.constant 0 : index
    %16 = vector.load %arg8[%c0_26, %c0_27, %c0_28, %c0_29] : memref<1x4x1x8xf32, #tpu.memory_space<vmem>>, vector<1x4x1x8xf32>
    %17 = vector.shape_cast %16 : vector<1x4x1x8xf32> to vector<4x1x8xf32>
    %18 = vector.extract_strided_slice %3 {offsets = [0, 0], sizes = [8, 32], strides = [1, 1]} : vector<16x32xf32> to vector<8x32xf32>
    %19 = vector.shape_cast %18 : vector<8x32xf32> to vector<1x8x32xf32>
    %20 = vector.shape_cast %19 : vector<1x8x32xf32> to vector<1x8x32xf32>
    %21 = vector.broadcast %20 : vector<1x8x32xf32> to vector<4x8x32xf32>
    "tpu.trace_start"() <{level = 10 : i32, message = "hld,hdk->hlk"}> : () -> ()
    %cst = arith.constant dense<0.000000e+00> : vector<4x8x8xf32>
    %22 = tpu.matmul %21, %5, %cst {dimension_numbers = #tpu.dot_dimension_numbers<[2], [1], [1], [2], [0, 0, 0, 1, 1, 2], [0], [0]>} : vector<4x8x32xf32>, vector<4x32x8xf32>, vector<4x8x8xf32> -> vector<4x8x8xf32>
    "tpu.trace_stop"() : () -> ()
    %23 = vector.broadcast %13 : vector<4x1x8xf32> to vector<4x8x8xf32>
    %24 = arith.addf %22, %23 : vector<4x8x8xf32>
    "tpu.trace_start"() <{level = 10 : i32, message = "hld,hdk->hlk"}> : () -> ()
    %cst_30 = arith.constant dense<0.000000e+00> : vector<4x8x8xf32>
    %25 = tpu.matmul %21, %7, %cst_30 {dimension_numbers = #tpu.dot_dimension_numbers<[2], [1], [1], [2], [0, 0, 0, 1, 1, 2], [0], [0]>} : vector<4x8x32xf32>, vector<4x32x8xf32>, vector<4x8x8xf32> -> vector<4x8x8xf32>
    "tpu.trace_stop"() : () -> ()
    %26 = vector.broadcast %15 : vector<4x1x8xf32> to vector<4x8x8xf32>
    %27 = arith.addf %25, %26 : vector<4x8x8xf32>
    "tpu.trace_start"() <{level = 10 : i32, message = "hld,hdk->hlk"}> : () -> ()
    %cst_31 = arith.constant dense<0.000000e+00> : vector<4x8x8xf32>
    %28 = tpu.matmul %21, %9, %cst_31 {dimension_numbers = #tpu.dot_dimension_numbers<[2], [1], [1], [2], [0, 0, 0, 1, 1, 2], [0], [0]>} : vector<4x8x32xf32>, vector<4x32x8xf32>, vector<4x8x8xf32> -> vector<4x8x8xf32>
    "tpu.trace_stop"() : () -> ()
    %29 = vector.broadcast %17 : vector<4x1x8xf32> to vector<4x8x8xf32>
    %30 = arith.addf %28, %29 : vector<4x8x8xf32>
    "tpu.trace_start"() <{level = 10 : i32, message = "hld,hmd->hlm"}> : () -> ()
    %cst_32 = arith.constant dense<0.000000e+00> : vector<4x8x8xf32>
    %31 = tpu.matmul %24, %27, %cst_32 {dimension_numbers = #tpu.dot_dimension_numbers<[2], [2], [1], [1], [0, 0, 0, 1, 1, 1], [0], [0]>} : vector<4x8x8xf32>, vector<4x8x8xf32>, vector<4x8x8xf32> -> vector<4x8x8xf32>
    "tpu.trace_stop"() : () -> ()
    %cst_33 = arith.constant 0.353553385 : f32
    %32 = vector.broadcast %cst_33 : f32 to vector<4x8x8xf32>
    %33 = arith.mulf %31, %32 : vector<4x8x8xf32>
    %cst_34 = arith.constant dense<0xFF800000> : vector<4x8xf32>
    %34 = vector.multi_reduction <maximumf>, %33, %cst_34 [2] : vector<4x8x8xf32> to vector<4x8xf32>
    %35 = vector.shape_cast %34 : vector<4x8xf32> to vector<4x8x1xf32>
    %36 = vector.broadcast %35 : vector<4x8x1xf32> to vector<4x8x8xf32>
    %37 = arith.subf %33, %36 : vector<4x8x8xf32>
    %38 = math.exp %37 : vector<4x8x8xf32>
    %cst_35 = arith.constant dense<0.000000e+00> : vector<4x8xf32>
    %39 = vector.multi_reduction <add>, %38, %cst_35 [2] : vector<4x8x8xf32> to vector<4x8xf32>
    %40 = vector.shape_cast %39 : vector<4x8xf32> to vector<4x8x1xf32>
    %41 = tpu.reciprocal %40 {approx = true} : vector<4x8x1xf32> -> vector<4x8x1xf32>
    %42 = vector.broadcast %41 : vector<4x8x1xf32> to vector<4x8x8xf32>
    %43 = arith.mulf %38, %42 : vector<4x8x8xf32>
    "tpu.trace_start"() <{level = 10 : i32, message = "hlm,hmd->hld"}> : () -> ()
    %cst_36 = arith.constant dense<0.000000e+00> : vector<4x8x8xf32>
    %44 = tpu.matmul %43, %30, %cst_36 {dimension_numbers = #tpu.dot_dimension_numbers<[2], [1], [1], [2], [0, 0, 0, 1, 1, 2], [0], [0]>} : vector<4x8x8xf32>, vector<4x8x8xf32>, vector<4x8x8xf32> -> vector<4x8x8xf32>
    "tpu.trace_stop"() : () -> ()
    "tpu.trace_start"() <{level = 10 : i32, message = "hld,hdm->hlm"}> : () -> ()
    %cst_37 = arith.constant dense<0.000000e+00> : vector<4x8x32xf32>
    %45 = tpu.matmul %44, %11, %cst_37 {dimension_numbers = #tpu.dot_dimension_numbers<[2], [1], [1], [2], [0, 0, 0, 1, 1, 2], [0], [0]>} : vector<4x8x8xf32>, vector<4x8x32xf32>, vector<4x8x32xf32> -> vector<4x8x32xf32>
    "tpu.trace_stop"() : () -> ()
    %cst_38 = arith.constant dense<0.000000e+00> : vector<8x32xf32>
    %46 = vector.multi_reduction <add>, %45, %cst_38 [0] : vector<4x8x32xf32> to vector<8x32xf32>
    %47 = vector.extract_strided_slice %3 {offsets = [8, 0], sizes = [8, 32], strides = [1, 1]} : vector<16x32xf32> to vector<8x32xf32>
    %48 = vector.shape_cast %47 : vector<8x32xf32> to vector<1x8x32xf32>
    %49 = vector.shape_cast %48 : vector<1x8x32xf32> to vector<1x8x32xf32>
    %50 = vector.broadcast %49 : vector<1x8x32xf32> to vector<4x8x32xf32>
    "tpu.trace_start"() <{level = 10 : i32, message = "hld,hdk->hlk"}> : () -> ()
    %cst_39 = arith.constant dense<0.000000e+00> : vector<4x8x8xf32>
    %51 = tpu.matmul %50, %5, %cst_39 {dimension_numbers = #tpu.dot_dimension_numbers<[2], [1], [1], [2], [0, 0, 0, 1, 1, 2], [0], [0]>} : vector<4x8x32xf32>, vector<4x32x8xf32>, vector<4x8x8xf32> -> vector<4x8x8xf32>
    "tpu.trace_stop"() : () -> ()
    %52 = vector.broadcast %13 : vector<4x1x8xf32> to vector<4x8x8xf32>
    %53 = arith.addf %51, %52 : vector<4x8x8xf32>
    "tpu.trace_start"() <{level = 10 : i32, message = "hld,hdk->hlk"}> : () -> ()
    %cst_40 = arith.constant dense<0.000000e+00> : vector<4x8x8xf32>
    %54 = tpu.matmul %50, %7, %cst_40 {dimension_numbers = #tpu.dot_dimension_numbers<[2], [1], [1], [2], [0, 0, 0, 1, 1, 2], [0], [0]>} : vector<4x8x32xf32>, vector<4x32x8xf32>, vector<4x8x8xf32> -> vector<4x8x8xf32>
    "tpu.trace_stop"() : () -> ()
    %55 = vector.broadcast %15 : vector<4x1x8xf32> to vector<4x8x8xf32>
    %56 = arith.addf %54, %55 : vector<4x8x8xf32>
    "tpu.trace_start"() <{level = 10 : i32, message = "hld,hdk->hlk"}> : () -> ()
    %cst_41 = arith.constant dense<0.000000e+00> : vector<4x8x8xf32>
    %57 = tpu.matmul %50, %9, %cst_41 {dimension_numbers = #tpu.dot_dimension_numbers<[2], [1], [1], [2], [0, 0, 0, 1, 1, 2], [0], [0]>} : vector<4x8x32xf32>, vector<4x32x8xf32>, vector<4x8x8xf32> -> vector<4x8x8xf32>
    "tpu.trace_stop"() : () -> ()
    %58 = vector.broadcast %17 : vector<4x1x8xf32> to vector<4x8x8xf32>
    %59 = arith.addf %57, %58 : vector<4x8x8xf32>
    "tpu.trace_start"() <{level = 10 : i32, message = "hld,hmd->hlm"}> : () -> ()
    %cst_42 = arith.constant dense<0.000000e+00> : vector<4x8x8xf32>
    %60 = tpu.matmul %53, %56, %cst_42 {dimension_numbers = #tpu.dot_dimension_numbers<[2], [2], [1], [1], [0, 0, 0, 1, 1, 1], [0], [0]>} : vector<4x8x8xf32>, vector<4x8x8xf32>, vector<4x8x8xf32> -> vector<4x8x8xf32>
    "tpu.trace_stop"() : () -> ()
    %cst_43 = arith.constant 0.353553385 : f32
    %61 = vector.broadcast %cst_43 : f32 to vector<4x8x8xf32>
    %62 = arith.mulf %60, %61 : vector<4x8x8xf32>
    %cst_44 = arith.constant dense<0xFF800000> : vector<4x8xf32>
    %63 = vector.multi_reduction <maximumf>, %62, %cst_44 [2] : vector<4x8x8xf32> to vector<4x8xf32>
    %64 = vector.shape_cast %63 : vector<4x8xf32> to vector<4x8x1xf32>
    %65 = vector.broadcast %64 : vector<4x8x1xf32> to vector<4x8x8xf32>
    %66 = arith.subf %62, %65 : vector<4x8x8xf32>
    %67 = math.exp %66 : vector<4x8x8xf32>
    %cst_45 = arith.constant dense<0.000000e+00> : vector<4x8xf32>
    %68 = vector.multi_reduction <add>, %67, %cst_45 [2] : vector<4x8x8xf32> to vector<4x8xf32>
    %69 = vector.shape_cast %68 : vector<4x8xf32> to vector<4x8x1xf32>
    %70 = tpu.reciprocal %69 {approx = true} : vector<4x8x1xf32> -> vector<4x8x1xf32>
    %71 = vector.broadcast %70 : vector<4x8x1xf32> to vector<4x8x8xf32>
    %72 = arith.mulf %67, %71 : vector<4x8x8xf32>
    "tpu.trace_start"() <{level = 10 : i32, message = "hlm,hmd->hld"}> : () -> ()
    %cst_46 = arith.constant dense<0.000000e+00> : vector<4x8x8xf32>
    %73 = tpu.matmul %72, %59, %cst_46 {dimension_numbers = #tpu.dot_dimension_numbers<[2], [1], [1], [2], [0, 0, 0, 1, 1, 2], [0], [0]>} : vector<4x8x8xf32>, vector<4x8x8xf32>, vector<4x8x8xf32> -> vector<4x8x8xf32>
    "tpu.trace_stop"() : () -> ()
    "tpu.trace_start"() <{level = 10 : i32, message = "hld,hdm->hlm"}> : () -> ()
    %cst_47 = arith.constant dense<0.000000e+00> : vector<4x8x32xf32>
    %74 = tpu.matmul %73, %11, %cst_47 {dimension_numbers = #tpu.dot_dimension_numbers<[2], [1], [1], [2], [0, 0, 0, 1, 1, 2], [0], [0]>} : vector<4x8x8xf32>, vector<4x8x32xf32>, vector<4x8x32xf32> -> vector<4x8x32xf32>
    "tpu.trace_stop"() : () -> ()
    %cst_48 = arith.constant dense<0.000000e+00> : vector<8x32xf32>
    %75 = vector.multi_reduction <add>, %74, %cst_48 [0] : vector<4x8x32xf32> to vector<8x32xf32>
    %76 = tpu.concatenate %46, %75 in 0 : vector<8x32xf32>, vector<8x32xf32> -> vector<16x32xf32>
    %c0_49 = arith.constant 0 : index
    %c0_50 = arith.constant 0 : index
    %c0_51 = arith.constant 0 : index
    %77 = vector.load %arg10[%c0_49, %c0_50, %c0_51] : memref<1x1x32xf32, #tpu.memory_space<vmem>>, vector<1x1x32xf32>
    %78 = vector.shape_cast %77 : vector<1x1x32xf32> to vector<1x32xf32>
    %79 = vector.broadcast %78 : vector<1x32xf32> to vector<16x32xf32>
    %80 = arith.addf %76, %79 : vector<16x32xf32>
    %cst_52 = arith.constant 0.000000e+00 : f32
    %81 = vector.broadcast %cst_52 : f32 to vector<16x32xf32>
    %82 = arith.cmpf ogt, %80, %81 : vector<16x32xf32>
    %83 = math.exp %80 : vector<16x32xf32>
    %cst_53 = arith.constant 1.000000e+00 : f32
    %84 = vector.broadcast %cst_53 : f32 to vector<16x32xf32>
    %85 = arith.subf %83, %84 : vector<16x32xf32>
    %cst_54 = arith.constant 1.67326319 : f32
    %86 = vector.broadcast %cst_54 : f32 to vector<16x32xf32>
    %87 = arith.mulf %86, %85 : vector<16x32xf32>
    %88 = arith.select %82, %80, %87 : vector<16x32xi1>, vector<16x32xf32>
    %cst_55 = arith.constant 1.05070102 : f32
    %89 = vector.broadcast %cst_55 : f32 to vector<16x32xf32>
    %90 = arith.mulf %89, %88 : vector<16x32xf32>
    %91 = arith.addf %3, %90 : vector<16x32xf32>
    %c0_56 = arith.constant 0 : index
    %c0_57 = arith.constant 0 : index
    %c0_58 = arith.constant 0 : index
    %92 = vector.load %arg11[%c0_56, %c0_57, %c0_58] : memref<1x1x32xf32, #tpu.memory_space<vmem>>, vector<1x1x32xf32>
    %93 = vector.shape_cast %92 : vector<1x1x32xf32> to vector<1x32xf32>
    %c0_59 = arith.constant 0 : index
    %c0_60 = arith.constant 0 : index
    %c0_61 = arith.constant 0 : index
    %94 = vector.load %arg12[%c0_59, %c0_60, %c0_61] : memref<1x1x32xf32, #tpu.memory_space<vmem>>, vector<1x1x32xf32>
    %95 = vector.shape_cast %94 : vector<1x1x32xf32> to vector<1x32xf32>
    %cst_62 = arith.constant dense<0.000000e+00> : vector<16xf32>
    %96 = vector.multi_reduction <add>, %91, %cst_62 [1] : vector<16x32xf32> to vector<16xf32>
    %97 = vector.shape_cast %96 : vector<16xf32> to vector<16x1xf32>
    %cst_63 = arith.constant 3.200000e+01 : f32
    %98 = vector.broadcast %cst_63 : f32 to vector<16x1xf32>
    %99 = arith.divf %97, %98 : vector<16x1xf32>
    %100 = vector.broadcast %99 : vector<16x1xf32> to vector<16x32xf32>
    %101 = arith.subf %91, %100 : vector<16x32xf32>
    %102 = arith.mulf %101, %101 : vector<16x32xf32>
    %cst_64 = arith.constant dense<0.000000e+00> : vector<16xf32>
    %103 = vector.multi_reduction <add>, %102, %cst_64 [1] : vector<16x32xf32> to vector<16xf32>
    %104 = vector.shape_cast %103 : vector<16xf32> to vector<16x1xf32>
    %cst_65 = arith.constant 3.200000e+01 : f32
    %105 = vector.broadcast %cst_65 : f32 to vector<16x1xf32>
    %106 = arith.divf %104, %105 : vector<16x1xf32>
    %107 = vector.broadcast %99 : vector<16x1xf32> to vector<16x32xf32>
    %108 = arith.subf %91, %107 : vector<16x32xf32>
    %cst_66 = arith.constant 9.99999974E-6 : f32
    %109 = vector.broadcast %cst_66 : f32 to vector<16x1xf32>
    %110 = arith.addf %106, %109 : vector<16x1xf32>
    %111 = math.rsqrt %110 : vector<16x1xf32>
    %112 = vector.broadcast %111 : vector<16x1xf32> to vector<16x32xf32>
    %113 = arith.mulf %108, %112 : vector<16x32xf32>
    %114 = vector.broadcast %93 : vector<1x32xf32> to vector<16x32xf32>
    %115 = arith.mulf %113, %114 : vector<16x32xf32>
    %116 = vector.broadcast %95 : vector<1x32xf32> to vector<16x32xf32>
    %117 = arith.addf %115, %116 : vector<16x32xf32>
    %c0_67 = arith.constant 0 : index
    %c0_68 = arith.constant 0 : index
    %c0_69 = arith.constant 0 : index
    %118 = vector.load %arg13[%c0_67, %c0_68, %c0_69] : memref<1x1x32xf32, #tpu.memory_space<vmem>>, vector<1x1x32xf32>
    %119 = vector.shape_cast %118 : vector<1x1x32xf32> to vector<1x32xf32>
    %c0_70 = arith.constant 0 : index
    %c0_71 = arith.constant 0 : index
    %c0_72 = arith.constant 0 : index
    %120 = vector.load %arg14[%c0_70, %c0_71, %c0_72] : memref<1x1x32xf32, #tpu.memory_space<vmem>>, vector<1x1x32xf32>
    %121 = vector.shape_cast %120 : vector<1x1x32xf32> to vector<1x32xf32>
    %cst_73 = arith.constant dense<0.000000e+00> : vector<16xf32>
    %122 = vector.multi_reduction <add>, %117, %cst_73 [1] : vector<16x32xf32> to vector<16xf32>
    %123 = vector.shape_cast %122 : vector<16xf32> to vector<16x1xf32>
    %cst_74 = arith.constant 3.200000e+01 : f32
    %124 = vector.broadcast %cst_74 : f32 to vector<16x1xf32>
    %125 = arith.divf %123, %124 : vector<16x1xf32>
    %126 = vector.broadcast %125 : vector<16x1xf32> to vector<16x32xf32>
    %127 = arith.subf %117, %126 : vector<16x32xf32>
    %128 = arith.mulf %127, %127 : vector<16x32xf32>
    %cst_75 = arith.constant dense<0.000000e+00> : vector<16xf32>
    %129 = vector.multi_reduction <add>, %128, %cst_75 [1] : vector<16x32xf32> to vector<16xf32>
    %130 = vector.shape_cast %129 : vector<16xf32> to vector<16x1xf32>
    %cst_76 = arith.constant 3.200000e+01 : f32
    %131 = vector.broadcast %cst_76 : f32 to vector<16x1xf32>
    %132 = arith.divf %130, %131 : vector<16x1xf32>
    %133 = vector.broadcast %125 : vector<16x1xf32> to vector<16x32xf32>
    %134 = arith.subf %117, %133 : vector<16x32xf32>
    %cst_77 = arith.constant 9.99999974E-6 : f32
    %135 = vector.broadcast %cst_77 : f32 to vector<16x1xf32>
    %136 = arith.addf %132, %135 : vector<16x1xf32>
    %137 = math.rsqrt %136 : vector<16x1xf32>
    %138 = vector.broadcast %137 : vector<16x1xf32> to vector<16x32xf32>
    %139 = arith.mulf %134, %138 : vector<16x32xf32>
    %140 = vector.broadcast %119 : vector<1x32xf32> to vector<16x32xf32>
    %141 = arith.mulf %139, %140 : vector<16x32xf32>
    %142 = vector.broadcast %121 : vector<1x32xf32> to vector<16x32xf32>
    %143 = arith.addf %141, %142 : vector<16x32xf32>
    %c0_78 = arith.constant 0 : index
    %c0_79 = arith.constant 0 : index
    %144 = vector.load %arg15[%c0_78, %c0_79] : memref<16x32xf32, #tpu.memory_space<vmem>>, vector<16x32xf32>
    tpu.vector_store %arg15[%c0_78, %c0_79], %143 {strides = array<i32>} : memref<16x32xf32, #tpu.memory_space<vmem>>, vector<16x32xf32>,
    return
  }
  func.func @transform_0(%arg0: i32, %arg1: i32) -> (i32, i32) {
    %c0_i32 = arith.constant 0 : i32
    %c0_i32_0 = arith.constant 0 : i32
    return %arg0, %c0_i32 : i32, i32
  }
  func.func @transform_1(%arg0: i32, %arg1: i32) -> (i32, i32, i32, i32) {
    %c0_i32 = arith.constant 0 : i32
    %c0_i32_0 = arith.constant 0 : i32
    %c0_i32_1 = arith.constant 0 : i32
    %c0_i32_2 = arith.constant 0 : i32
    return %arg1, %c0_i32, %c0_i32_0, %c0_i32_1 : i32, i32, i32, i32
  }
  func.func @transform_2(%arg0: i32, %arg1: i32) -> (i32, i32, i32, i32) {
    %c0_i32 = arith.constant 0 : i32
    %c0_i32_0 = arith.constant 0 : i32
    %c0_i32_1 = arith.constant 0 : i32
    %c0_i32_2 = arith.constant 0 : i32
    return %arg1, %c0_i32, %c0_i32_0, %c0_i32_1 : i32, i32, i32, i32
  }
  func.func @transform_3(%arg0: i32, %arg1: i32) -> (i32, i32, i32, i32) {
    %c0_i32 = arith.constant 0 : i32
    %c0_i32_0 = arith.constant 0 : i32
    %c0_i32_1 = arith.constant 0 : i32
    %c0_i32_2 = arith.constant 0 : i32
    return %arg1, %c0_i32, %c0_i32_0, %c0_i32_1 : i32, i32, i32, i32
  }
  func.func @transform_4(%arg0: i32, %arg1: i32) -> (i32, i32, i32, i32) {
    %c0_i32 = arith.constant 0 : i32
    %c0_i32_0 = arith.constant 0 : i32
    %c0_i32_1 = arith.constant 0 : i32
    %c0_i32_2 = arith.constant 0 : i32
    return %arg1, %c0_i32, %c0_i32_0, %c0_i32_1 : i32, i32, i32, i32
  }
  func.func @transform_5(%arg0: i32, %arg1: i32) -> (i32, i32, i32, i32) {
    %c0_i32 = arith.constant 0 : i32
    %c0_i32_0 = arith.constant 0 : i32
    %c0_i32_1 = arith.constant 0 : i32
    %c0_i32_2 = arith.constant 0 : i32
    return %arg1, %c0_i32, %c0_i32_0, %c0_i32_1 : i32, i32, i32, i32
  }
  func.func @transform_6(%arg0: i32, %arg1: i32) -> (i32, i32, i32, i32) {
    %c0_i32 = arith.constant 0 : i32
    %c0_i32_0 = arith.constant 0 : i32
    %c0_i32_1 = arith.constant 0 : i32
    %c0_i32_2 = arith.constant 0 : i32
    return %arg1, %c0_i32, %c0_i32_0, %c0_i32_1 : i32, i32, i32, i32
  }
  func.func @transform_7(%arg0: i32, %arg1: i32) -> (i32, i32, i32, i32) {
    %c0_i32 = arith.constant 0 : i32
    %c0_i32_0 = arith.constant 0 : i32
    %c0_i32_1 = arith.constant 0 : i32
    %c0_i32_2 = arith.constant 0 : i32
    return %arg1, %c0_i32, %c0_i32_0, %c0_i32_1 : i32, i32, i32, i32
  }
  func.func @transform_8(%arg0: i32, %arg1: i32) -> (i32, i32, i32) {
    %c0_i32 = arith.constant 0 : i32
    %c0_i32_0 = arith.constant 0 : i32
    %c0_i32_1 = arith.constant 0 : i32
    return %arg1, %c0_i32, %c0_i32_0 : i32, i32, i32
  }
  func.func @transform_9(%arg0: i32, %arg1: i32) -> (i32, i32, i32) {
    %c0_i32 = arith.constant 0 : i32
    %c0_i32_0 = arith.constant 0 : i32
    %c0_i32_1 = arith.constant 0 : i32
    return %arg1, %c0_i32, %c0_i32_0 : i32, i32, i32
  }
  func.func @transform_10(%arg0: i32, %arg1: i32) -> (i32, i32, i32) {
    %c0_i32 = arith.constant 0 : i32
    %c0_i32_0 = arith.constant 0 : i32
    %c0_i32_1 = arith.constant 0 : i32
    return %arg1, %c0_i32, %c0_i32_0 : i32, i32, i32
  }
  func.func @transform_11(%arg0: i32, %arg1: i32) -> (i32, i32, i32) {
    %c0_i32 = arith.constant 0 : i32
    %c0_i32_0 = arith.constant 0 : i32
    %c0_i32_1 = arith.constant 0 : i32
    return %arg1, %c0_i32, %c0_i32_0 : i32, i32, i32
  }
  func.func @transform_12(%arg0: i32, %arg1: i32) -> (i32, i32, i32) {
    %c0_i32 = arith.constant 0 : i32
    %c0_i32_0 = arith.constant 0 : i32
    %c0_i32_1 = arith.constant 0 : i32
    return %arg1, %c0_i32, %c0_i32_0 : i32, i32, i32
  }
  func.func @transform_13(%arg0: i32, %arg1: i32) -> (i32, i32) {
    %c0_i32 = arith.constant 0 : i32
    %c0_i32_0 = arith.constant 0 : i32
    return %arg0, %c0_i32 : i32, i32
  }
}

</mosaic_0001>

<llo_original>
// kernel: tpu_custom_call.1
$region0: #{tpu_custom_call.1}
  #allocation0 [shape = 'u32[]', space=smem, size = 0x4, offset = 0x4, fixed_abs, tag = 'smem constant byte address 0x4 - core index']
  #allocation1 [shape = 'u32[144,128]{1,0:T(1,128)}', space=vmem, size = 0x12000, scoped, tag = 'internal scratch']
  %s0 = inlined_call_operand.vmem [shape: f32[16,32], index: 0, kind: input, shape index: {}]
  %s1 = inlined_call_operand.vmem [shape: f32[2,4,32,8], index: 1, kind: input, shape index: {}]
  %s2 = inlined_call_operand.vmem [shape: f32[2,4,1,8], index: 2, kind: input, shape index: {}]
  %s3 = inlined_call_operand.vmem [shape: f32[2,4,32,8], index: 3, kind: input, shape index: {}]
  %s4 = inlined_call_operand.vmem [shape: f32[2,4,1,8], index: 4, kind: input, shape index: {}]
  %s5 = inlined_call_operand.vmem [shape: f32[2,4,32,8], index: 5, kind: input, shape index: {}]
  %s6 = inlined_call_operand.vmem [shape: f32[2,4,1,8], index: 6, kind: input, shape index: {}]
  %s7 = inlined_call_operand.vmem [shape: f32[2,4,8,32], index: 7, kind: input, shape index: {}]
  %s8 = inlined_call_operand.vmem [shape: f32[2,1,32], index: 8, kind: input, shape index: {}]
  %s9 = inlined_call_operand.vmem [shape: f32[2,1,32], index: 9, kind: input, shape index: {}]
  %s10 = inlined_call_operand.vmem [shape: f32[2,1,32], index: 10, kind: input, shape index: {}]
  %s11 = inlined_call_operand.vmem [shape: f32[2,1,32], index: 11, kind: input, shape index: {}]
  %s12 = inlined_call_operand.vmem [shape: f32[2,1,32], index: 12, kind: input, shape index: {}]
  %s13 = inlined_call_operand.hbm [shape: f32[16,32], index: 13, kind: output, shape index: {}]
  %s14 = sld [smem:[#allocation0]]
  $region89: #{tpu_custom_call.1} parent=0
    _
  %s16 = ssub.s32 1, %s14
  %s17 = scalar_select 0, %s16, %s14
  $region1: #{tpu_custom_call.1} parent=0
    #allocation2 [shape = 'u8[8192]{0}', space=vmem, size = 0x2000, scoped, tag = 'output window, operand 0, single buffered']
    #allocation3 [shape = 's32[2]{0}', space=sflag, size = 0x8, scoped, tag = 'scoped memory for tpu_custom_call.1']
    %18 = vsyncpa [#allocation3], 0
    loop: start=0, step=1, limit=4
    $region2: #{tpu_custom_call.1} parent=1 // loop_pre_header
      _
    $region3: #{tpu_custom_call.1} parent=1 // loop_header
      %s20 = sphi 0, %s24
      %p21 = scmp.ge.s32.totalorder %s20, 4
      %s27 = sphi 0, %s39
      %s28 = sphi 0, %s35
      %s29 = sphi 0, %s27
      %s30 = sphi 0, %s28
      %s31 = sphi 0, %s29
      %s32 = sphi 0, %s30
      %s42 = sphi 0, %s44
      %s45 = sphi 0, %s42
      %s46 = sphi 0, %s45
      %s62 = sphi 0, %s46
      %s68 = sphi 0, %s70
      %s71 = sphi 0, %s68
      %s72 = sphi 0, %s71
      %s88 = sphi 0, %s72
      %s94 = sphi 0, %s96
      %s97 = sphi 0, %s94
      %s98 = sphi 0, %s97
      %s114 = sphi 0, %s98
      %s120 = sphi 0, %s122
      %s123 = sphi 0, %s120
      %s124 = sphi 0, %s123
      %s140 = sphi 0, %s124
      %s146 = sphi 0, %s148
      %s149 = sphi 0, %s146
      %s150 = sphi 0, %s149
      %s166 = sphi 0, %s150
      %s172 = sphi 0, %s174
      %s175 = sphi 0, %s172
      %s176 = sphi 0, %s175
      %s192 = sphi 0, %s176
      %s198 = sphi 0, %s200
      %s201 = sphi 0, %s198
      %s202 = sphi 0, %s201
      %s218 = sphi 0, %s202
      %s224 = sphi 0, %s226
      %s227 = sphi 0, %s224
      %s228 = sphi 0, %s227
      %s244 = sphi 0, %s228
      %s250 = sphi 0, %s252
      %s253 = sphi 0, %s250
      %s254 = sphi 0, %s253
      %s270 = sphi 0, %s254
      %s276 = sphi 0, %s278
      %s279 = sphi 0, %s276
      %s280 = sphi 0, %s279
      %s296 = sphi 0, %s280
      %s302 = sphi 0, %s304
      %s305 = sphi 0, %s302
      %s306 = sphi 0, %s305
      %s322 = sphi 0, %s306
      %s328 = sphi 0, %s330
      %s331 = sphi 0, %s328
      %s332 = sphi 0, %s331
      %s348 = sphi 0, %s332
      %s354 = sphi 0, %s356
      %s357 = sphi 0, %s354
      %s358 = sphi 0, %s357
      %s374 = sphi 0, %s358
      %s380 = sphi 0, %s382
      %s383 = sphi 0, %s380
      %s384 = sphi 0, %s383
      %s400 = sphi 0, %s384
    $region4: #{tpu_custom_call.1} parent=1 // loop_header_branch
      %23 = sbr.rel (%p21) target = $region8
    $region5: #{tpu_custom_call.1} parent=1 // loop_body
      %s25 = ssub.s32 %s20, 1
      %s26 = ssub.s32 %s20, 2
      %s33 = sadd.s32 1, %s28
      %p34 = scmp.ge.s32.totalorder %s33, 2
      %s35 = scalar_select %p34, 0, %s33
      %s36 = sadd.s32 1, %s27
      %s37 = scalar_select %p34, %s36, %s27
      %p38 = scmp.ge.s32.totalorder %s37, 1
      %s39 = scalar_select %p38, 0, %s37
      %s40 = ssub.s32 %s27, %s39
      %p41 = scmp.eq.s32.totalorder %s40, 0
      %s43 = sadd.s32 %s42, 1
      %s44 = scalar_select %p41, %s42, %s43
      %p47 = pneg %p41
      %p48 = scmp.eq.s32.totalorder %s20, 1
      %p49 = por %p47, %p48
      %p50 = scmp.ne.s32.totalorder %s42, %s45
      %p51 = scmp.eq.s32.totalorder %s20, 0
      %p52 = por %p50, %p51
      %p53 = scmp.ne.s32.totalorder %s42, %s45
      %p54 = scmp.eq.s32.totalorder %s25, 1
      %p55 = por %p53, %p54
      %p56 = scmp.ne.s32.totalorder %s45, %s46
      %p57 = scmp.eq.s32.totalorder %s25, 0
      %p58 = por %p56, %p57
      %p59 = scmp.ne.s32.totalorder %s45, %s46
      %p60 = scmp.eq.s32.totalorder %s26, 1
      %p61 = por %p59, %p60
      %p63 = scmp.ne.s32.totalorder %s46, %s62
      %p64 = scmp.eq.s32.totalorder %s26, 0
      %p65 = por %p63, %p64
      %s66 = ssub.s32 %s28, %s35
      %p67 = scmp.eq.s32.totalorder %s66, 0
      %s69 = sadd.s32 %s68, 1
      %s70 = scalar_select %p67, %s68, %s69
      %p73 = pneg %p67
      %p74 = scmp.eq.s32.totalorder %s20, 1
      %p75 = por %p73, %p74
      %p76 = scmp.ne.s32.totalorder %s68, %s71
      %p77 = scmp.eq.s32.totalorder %s20, 0
      %p78 = por %p76, %p77
      %p79 = scmp.ne.s32.totalorder %s68, %s71
      %p80 = scmp.eq.s32.totalorder %s25, 1
      %p81 = por %p79, %p80
      %p82 = scmp.ne.s32.totalorder %s71, %s72
      %p83 = scmp.eq.s32.totalorder %s25, 0
      %p84 = por %p82, %p83
      %p85 = scmp.ne.s32.totalorder %s71, %s72
      %p86 = scmp.eq.s32.totalorder %s26, 1
      %p87 = por %p85, %p86
      %p89 = scmp.ne.s32.totalorder %s72, %s88
      %p90 = scmp.eq.s32.totalorder %s26, 0
      %p91 = por %p89, %p90
      %s92 = ssub.s32 %s28, %s35
      %p93 = scmp.eq.s32.totalorder %s92, 0
      %s95 = sadd.s32 %s94, 1
      %s96 = scalar_select %p93, %s94, %s95
      %p99 = pneg %p93
      %p100 = scmp.eq.s32.totalorder %s20, 1
      %p101 = por %p99, %p100
      %p102 = scmp.ne.s32.totalorder %s94, %s97
      %p103 = scmp.eq.s32.totalorder %s20, 0
      %p104 = por %p102, %p103
      %p105 = scmp.ne.s32.totalorder %s94, %s97
      %p106 = scmp.eq.s32.totalorder %s25, 1
      %p107 = por %p105, %p106
      %p108 = scmp.ne.s32.totalorder %s97, %s98
      %p109 = scmp.eq.s32.totalorder %s25, 0
      %p110 = por %p108, %p109
      %p111 = scmp.ne.s32.totalorder %s97, %s98
      %p112 = scmp.eq.s32.totalorder %s26, 1
      %p113 = por %p111, %p112
      %p115 = scmp.ne.s32.totalorder %s98, %s114
      %p116 = scmp.eq.s32.totalorder %s26, 0
      %p117 = por %p115, %p116
      %s118 = ssub.s32 %s28, %s35
      %p119 = scmp.eq.s32.totalorder %s118, 0
      %s121 = sadd.s32 %s120, 1
      %s122 = scalar_select %p119, %s120, %s121
      %p125 = pneg %p119
      %p126 = scmp.eq.s32.totalorder %s20, 1
      %p127 = por %p125, %p126
      %p128 = scmp.ne.s32.totalorder %s120, %s123
      %p129 = scmp.eq.s32.totalorder %s20, 0
      %p130 = por %p128, %p129
      %p131 = scmp.ne.s32.totalorder %s120, %s123
      %p132 = scmp.eq.s32.totalorder %s25, 1
      %p133 = por %p131, %p132
      %p134 = scmp.ne.s32.totalorder %s123, %s124
      %p135 = scmp.eq.s32.totalorder %s25, 0
      %p136 = por %p134, %p135
      %p137 = scmp.ne.s32.totalorder %s123, %s124
      %p138 = scmp.eq.s32.totalorder %s26, 1
      %p139 = por %p137, %p138
      %p141 = scmp.ne.s32.totalorder %s124, %s140
      %p142 = scmp.eq.s32.totalorder %s26, 0
      %p143 = por %p141, %p142
      %s144 = ssub.s32 %s28, %s35
      %p145 = scmp.eq.s32.totalorder %s144, 0
      %s147 = sadd.s32 %s146, 1
      %s148 = scalar_select %p145, %s146, %s147
      %p151 = pneg %p145
      %p152 = scmp.eq.s32.totalorder %s20, 1
      %p153 = por %p151, %p152
      %p154 = scmp.ne.s32.totalorder %s146, %s149
      %p155 = scmp.eq.s32.totalorder %s20, 0
      %p156 = por %p154, %p155
      %p157 = scmp.ne.s32.totalorder %s146, %s149
      %p158 = scmp.eq.s32.totalorder %s25, 1
      %p159 = por %p157, %p158
      %p160 = scmp.ne.s32.totalorder %s149, %s150
      %p161 = scmp.eq.s32.totalorder %s25, 0
      %p162 = por %p160, %p161
      %p163 = scmp.ne.s32.totalorder %s149, %s150
      %p164 = scmp.eq.s32.totalorder %s26, 1
      %p165 = por %p163, %p164
      %p167 = scmp.ne.s32.totalorder %s150, %s166
      %p168 = scmp.eq.s32.totalorder %s26, 0
      %p169 = por %p167, %p168
      %s170 = ssub.s32 %s28, %s35
      %p171 = scmp.eq.s32.totalorder %s170, 0
      %s173 = sadd.s32 %s172, 1
      %s174 = scalar_select %p171, %s172, %s173
      %p177 = pneg %p171
      %p178 = scmp.eq.s32.totalorder %s20, 1
      %p179 = por %p177, %p178
      %p180 = scmp.ne.s32.totalorder %s172, %s175
      %p181 = scmp.eq.s32.totalorder %s20, 0
      %p182 = por %p180, %p181
      %p183 = scmp.ne.s32.totalorder %s172, %s175
      %p184 = scmp.eq.s32.totalorder %s25, 1
      %p185 = por %p183, %p184
      %p186 = scmp.ne.s32.totalorder %s175, %s176
      %p187 = scmp.eq.s32.totalorder %s25, 0
      %p188 = por %p186, %p187
      %p189 = scmp.ne.s32.totalorder %s175, %s176
      %p190 = scmp.eq.s32.totalorder %s26, 1
      %p191 = por %p189, %p190
      %p193 = scmp.ne.s32.totalorder %s176, %s192
      %p194 = scmp.eq.s32.totalorder %s26, 0
      %p195 = por %p193, %p194
      %s196 = ssub.s32 %s28, %s35
      %p197 = scmp.eq.s32.totalorder %s196, 0
      %s199 = sadd.s32 %s198, 1
      %s200 = scalar_select %p197, %s198, %s199
      %p203 = pneg %p197
      %p204 = scmp.eq.s32.totalorder %s20, 1
      %p205 = por %p203, %p204
      %p206 = scmp.ne.s32.totalorder %s198, %s201
      %p207 = scmp.eq.s32.totalorder %s20, 0
      %p208 = por %p206, %p207
      %p209 = scmp.ne.s32.totalorder %s198, %s201
      %p210 = scmp.eq.s32.totalorder %s25, 1
      %p211 = por %p209, %p210
      %p212 = scmp.ne.s32.totalorder %s201, %s202
      %p213 = scmp.eq.s32.totalorder %s25, 0
      %p214 = por %p212, %p213
      %p215 = scmp.ne.s32.totalorder %s201, %s202
      %p216 = scmp.eq.s32.totalorder %s26, 1
      %p217 = por %p215, %p216
      %p219 = scmp.ne.s32.totalorder %s202, %s218
      %p220 = scmp.eq.s32.totalorder %s26, 0
      %p221 = por %p219, %p220
      %s222 = ssub.s32 %s28, %s35
      %p223 = scmp.eq.s32.totalorder %s222, 0
      %s225 = sadd.s32 %s224, 1
      %s226 = scalar_select %p223, %s224, %s225
      %p229 = pneg %p223
      %p230 = scmp.eq.s32.totalorder %s20, 1
      %p231 = por %p229, %p230
      %p232 = scmp.ne.s32.totalorder %s224, %s227
      %p233 = scmp.eq.s32.totalorder %s20, 0
      %p234 = por %p232, %p233
      %p235 = scmp.ne.s32.totalorder %s224, %s227
      %p236 = scmp.eq.s32.totalorder %s25, 1
      %p237 = por %p235, %p236
      %p238 = scmp.ne.s32.totalorder %s227, %s228
      %p239 = scmp.eq.s32.totalorder %s25, 0
      %p240 = por %p238, %p239
      %p241 = scmp.ne.s32.totalorder %s227, %s228
      %p242 = scmp.eq.s32.totalorder %s26, 1
      %p243 = por %p241, %p242
      %p245 = scmp.ne.s32.totalorder %s228, %s244
      %p246 = scmp.eq.s32.totalorder %s26, 0
      %p247 = por %p245, %p246
      %s248 = ssub.s32 %s28, %s35
      %p249 = scmp.eq.s32.totalorder %s248, 0
      %s251 = sadd.s32 %s250, 1
      %s252 = scalar_select %p249, %s250, %s251
      %p255 = pneg %p249
      %p256 = scmp.eq.s32.totalorder %s20, 1
      %p257 = por %p255, %p256
      %p258 = scmp.ne.s32.totalorder %s250, %s253
      %p259 = scmp.eq.s32.totalorder %s20, 0
      %p260 = por %p258, %p259
      %p261 = scmp.ne.s32.totalorder %s250, %s253
      %p262 = scmp.eq.s32.totalorder %s25, 1
      %p263 = por %p261, %p262
      %p264 = scmp.ne.s32.totalorder %s253, %s254
      %p265 = scmp.eq.s32.totalorder %s25, 0
      %p266 = por %p264, %p265
      %p267 = scmp.ne.s32.totalorder %s253, %s254
      %p268 = scmp.eq.s32.totalorder %s26, 1
      %p269 = por %p267, %p268
      %p271 = scmp.ne.s32.totalorder %s254, %s270
      %p272 = scmp.eq.s32.totalorder %s26, 0
      %p273 = por %p271, %p272
      %s274 = ssub.s32 %s28, %s35
      %p275 = scmp.eq.s32.totalorder %s274, 0
      %s277 = sadd.s32 %s276, 1
      %s278 = scalar_select %p275, %s276, %s277
      %p281 = pneg %p275
      %p282 = scmp.eq.s32.totalorder %s20, 1
      %p283 = por %p281, %p282
      %p284 = scmp.ne.s32.totalorder %s276, %s279
      %p285 = scmp.eq.s32.totalorder %s20, 0
      %p286 = por %p284, %p285
      %p287 = scmp.ne.s32.totalorder %s276, %s279
      %p288 = scmp.eq.s32.totalorder %s25, 1
      %p289 = por %p287, %p288
      %p290 = scmp.ne.s32.totalorder %s279, %s280
      %p291 = scmp.eq.s32.totalorder %s25, 0
      %p292 = por %p290, %p291
      %p293 = scmp.ne.s32.totalorder %s279, %s280
      %p294 = scmp.eq.s32.totalorder %s26, 1
      %p295 = por %p293, %p294
      %p297 = scmp.ne.s32.totalorder %s280, %s296
      %p298 = scmp.eq.s32.totalorder %s26, 0
      %p299 = por %p297, %p298
      %s300 = ssub.s32 %s28, %s35
      %p301 = scmp.eq.s32.totalorder %s300, 0
      %s303 = sadd.s32 %s302, 1
      %s304 = scalar_select %p301, %s302, %s303
      %p307 = pneg %p301
      %p308 = scmp.eq.s32.totalorder %s20, 1
      %p309 = por %p307, %p308
      %p310 = scmp.ne.s32.totalorder %s302, %s305
      %p311 = scmp.eq.s32.totalorder %s20, 0
      %p312 = por %p310, %p311
      %p313 = scmp.ne.s32.totalorder %s302, %s305
      %p314 = scmp.eq.s32.totalorder %s25, 1
      %p315 = por %p313, %p314
      %p316 = scmp.ne.s32.totalorder %s305, %s306
      %p317 = scmp.eq.s32.totalorder %s25, 0
      %p318 = por %p316, %p317
      %p319 = scmp.ne.s32.totalorder %s305, %s306
      %p320 = scmp.eq.s32.totalorder %s26, 1
      %p321 = por %p319, %p320
      %p323 = scmp.ne.s32.totalorder %s306, %s322
      %p324 = scmp.eq.s32.totalorder %s26, 0
      %p325 = por %p323, %p324
      %s326 = ssub.s32 %s28, %s35
      %p327 = scmp.eq.s32.totalorder %s326, 0
      %s329 = sadd.s32 %s328, 1
      %s330 = scalar_select %p327, %s328, %s329
      %p333 = pneg %p327
      %p334 = scmp.eq.s32.totalorder %s20, 1
      %p335 = por %p333, %p334
      %p336 = scmp.ne.s32.totalorder %s328, %s331
      %p337 = scmp.eq.s32.totalorder %s20, 0
      %p338 = por %p336, %p337
      %p339 = scmp.ne.s32.totalorder %s328, %s331
      %p340 = scmp.eq.s32.totalorder %s25, 1
      %p341 = por %p339, %p340
      %p342 = scmp.ne.s32.totalorder %s331, %s332
      %p343 = scmp.eq.s32.totalorder %s25, 0
      %p344 = por %p342, %p343
      %p345 = scmp.ne.s32.totalorder %s331, %s332
      %p346 = scmp.eq.s32.totalorder %s26, 1
      %p347 = por %p345, %p346
      %p349 = scmp.ne.s32.totalorder %s332, %s348
      %p350 = scmp.eq.s32.totalorder %s26, 0
      %p351 = por %p349, %p350
      %s352 = ssub.s32 %s28, %s35
      %p353 = scmp.eq.s32.totalorder %s352, 0
      %s355 = sadd.s32 %s354, 1
      %s356 = scalar_select %p353, %s354, %s355
      %p359 = pneg %p353
      %p360 = scmp.eq.s32.totalorder %s20, 1
      %p361 = por %p359, %p360
      %p362 = scmp.ne.s32.totalorder %s354, %s357
      %p363 = scmp.eq.s32.totalorder %s20, 0
      %p364 = por %p362, %p363
      %p365 = scmp.ne.s32.totalorder %s354, %s357
      %p366 = scmp.eq.s32.totalorder %s25, 1
      %p367 = por %p365, %p366
      %p368 = scmp.ne.s32.totalorder %s357, %s358
      %p369 = scmp.eq.s32.totalorder %s25, 0
      %p370 = por %p368, %p369
      %p371 = scmp.ne.s32.totalorder %s357, %s358
      %p372 = scmp.eq.s32.totalorder %s26, 1
      %p373 = por %p371, %p372
      %p375 = scmp.ne.s32.totalorder %s358, %s374
      %p376 = scmp.eq.s32.totalorder %s26, 0
      %p377 = por %p375, %p376
      %s378 = ssub.s32 %s27, %s39
      %p379 = scmp.eq.s32.totalorder %s378, 0
      %s381 = sadd.s32 %s380, 1
      %s382 = scalar_select %p379, %s380, %s381
      %p385 = pneg %p379
      %p386 = scmp.eq.s32.totalorder %s20, 1
      %p387 = por %p385, %p386
      %p388 = scmp.ne.s32.totalorder %s380, %s383
      %p389 = scmp.eq.s32.totalorder %s20, 0
      %p390 = por %p388, %p389
      %p391 = scmp.ne.s32.totalorder %s380, %s383
      %p392 = scmp.eq.s32.totalorder %s25, 1
      %p393 = por %p391, %p392
      %p394 = scmp.ne.s32.totalorder %s383, %s384
      %p395 = scmp.eq.s32.totalorder %s25, 0
      %p396 = por %p394, %p395
      %p397 = scmp.ne.s32.totalorder %s383, %s384
      %p398 = scmp.eq.s32.totalorder %s26, 1
      %p399 = por %p397, %p398
      %p401 = scmp.ne.s32.totalorder %s384, %s400
      %p402 = scmp.eq.s32.totalorder %s26, 0
      %p403 = por %p401, %p402
      %p404 = scmp.le.s32.totalorder 1, %s20
      %p405 = scmp.lt.s32.totalorder %s20, 3
      %p406 = pnand %p404, %p405
      %p407 = pneg %p406
      // Predicated region
      $region9: #{tpu_custom_call.1} parent=5 // pred_check
        _
      $region10: #{tpu_custom_call.1} parent=5 // pred_check_branch
        %409 = sbr.rel (%p406) target = $region12
      $region11: #{tpu_custom_call.1} parent=5 // pred_region
        %s410 = ssub.s32 %s20, 1
        // Predicated region
        $region13: #{tpu_custom_call.1} parent=11 // pred_check
          %p411 = pneg %p58
        $region14: #{tpu_custom_call.1} parent=11 // pred_check_branch
          %413 = sbr.rel (%p411) target = $region16
        $region15: #{tpu_custom_call.1} parent=11 // pred_region
          %s414 = smul.u32 2, %s29
          %p415 = scmp.lt.s32.totalorder %s414, 1
          %s416 = scalar_select %p415, %s414, 1
          %s417 = smul.addr %s416, 8
          %s418 = scalar_lea.vmem %s0, %s417
          %s419 = smul.u32 2, %s29
        $region16: #{tpu_custom_call.1} parent=11 // pred_fallthru
          _
      $region12: #{tpu_custom_call.1} parent=5 // pred_fallthru
        _
      %p420 = scmp.lt.s32.totalorder %s20, 2
      // Predicated region
      $region17: #{tpu_custom_call.1} parent=5 // pred_check
        %p421 = pneg %p420
      $region18: #{tpu_custom_call.1} parent=5 // pred_check_branch
        %423 = sbr.rel (%p421) target = $region20
      $region19: #{tpu_custom_call.1} parent=5 // pred_region
        // Predicated region
        $region21: #{tpu_custom_call.1} parent=19 // pred_check
          %p424 = pneg %p78
        $region22: #{tpu_custom_call.1} parent=19 // pred_check_branch
          %426 = sbr.rel (%p424) target = $region24
        $region23: #{tpu_custom_call.1} parent=19 // pred_region
          %p427 = scmp.lt.s32.totalorder %s28, 1
          %s428 = scalar_select %p427, %s28, 1
          %s429 = smul.addr %s428, 16
          %s430 = smul.addr %s429, 8
          %s431 = scalar_lea.vmem %s1, %s430
        $region24: #{tpu_custom_call.1} parent=19 // pred_fallthru
          _
        // Predicated region
        $region25: #{tpu_custom_call.1} parent=19 // pred_check
          %p432 = pneg %p104
        $region26: #{tpu_custom_call.1} parent=19 // pred_check_branch
          %434 = sbr.rel (%p432) target = $region28
        $region27: #{tpu_custom_call.1} parent=19 // pred_region
          %p435 = scmp.lt.s32.totalorder %s28, 1
          %s436 = scalar_select %p435, %s28, 1
          %s437 = smul.addr %s436, 4
          %s438 = scalar_lea.vmem %s2, %s437
        $region28: #{tpu_custom_call.1} parent=19 // pred_fallthru
          _
        // Predicated region
        $region29: #{tpu_custom_call.1} parent=19 // pred_check
          %p439 = pneg %p130
        $region30: #{tpu_custom_call.1} parent=19 // pred_check_branch
          %441 = sbr.rel (%p439) target = $region32
        $region31: #{tpu_custom_call.1} parent=19 // pred_region
          %p442 = scmp.lt.s32.totalorder %s28, 1
          %s443 = scalar_select %p442, %s28, 1
          %s444 = smul.addr %s443, 16
          %s445 = smul.addr %s444, 8
          %s446 = scalar_lea.vmem %s3, %s445
        $region32: #{tpu_custom_call.1} parent=19 // pred_fallthru
          _
        // Predicated region
        $region33: #{tpu_custom_call.1} parent=19 // pred_check
          %p447 = pneg %p156
        $region34: #{tpu_custom_call.1} parent=19 // pred_check_branch
          %449 = sbr.rel (%p447) target = $region36
        $region35: #{tpu_custom_call.1} parent=19 // pred_region
          %p450 = scmp.lt.s32.totalorder %s28, 1
          %s451 = scalar_select %p450, %s28, 1
          %s452 = smul.addr %s451, 4
          %s453 = scalar_lea.vmem %s4, %s452
        $region36: #{tpu_custom_call.1} parent=19 // pred_fallthru
          _
        // Predicated region
        $region37: #{tpu_custom_call.1} parent=19 // pred_check
          %p454 = pneg %p182
        $region38: #{tpu_custom_call.1} parent=19 // pred_check_branch
          %456 = sbr.rel (%p454) target = $region40
        $region39: #{tpu_custom_call.1} parent=19 // pred_region
          %p457 = scmp.lt.s32.totalorder %s28, 1
          %s458 = scalar_select %p457, %s28, 1
          %s459 = smul.addr %s458, 16
          %s460 = smul.addr %s459, 8
          %s461 = scalar_lea.vmem %s5, %s460
        $region40: #{tpu_custom_call.1} parent=19 // pred_fallthru
          _
        // Predicated region
        $region41: #{tpu_custom_call.1} parent=19 // pred_check
          %p462 = pneg %p208
        $region42: #{tpu_custom_call.1} parent=19 // pred_check_branch
          %464 = sbr.rel (%p462) target = $region44
        $region43: #{tpu_custom_call.1} parent=19 // pred_region
          %p465 = scmp.lt.s32.totalorder %s28, 1
          %s466 = scalar_select %p465, %s28, 1
          %s467 = smul.addr %s466, 4
          %s468 = scalar_lea.vmem %s6, %s467
        $region44: #{tpu_custom_call.1} parent=19 // pred_fallthru
          _
        // Predicated region
        $region45: #{tpu_custom_call.1} parent=19 // pred_check
          %p469 = pneg %p234
        $region46: #{tpu_custom_call.1} parent=19 // pred_check_branch
          %471 = sbr.rel (%p469) target = $region48
        $region47: #{tpu_custom_call.1} parent=19 // pred_region
          %p472 = scmp.lt.s32.totalorder %s28, 1
          %s473 = scalar_select %p472, %s28, 1
          %s474 = smul.addr %s473, 4
          %s475 = smul.addr %s474, 8
          %s476 = scalar_lea.vmem %s7, %s475
        $region48: #{tpu_custom_call.1} parent=19 // pred_fallthru
          _
        // Predicated region
        $region49: #{tpu_custom_call.1} parent=19 // pred_check
          %p477 = pneg %p260
        $region50: #{tpu_custom_call.1} parent=19 // pred_check_branch
          %479 = sbr.rel (%p477) target = $region52
        $region51: #{tpu_custom_call.1} parent=19 // pred_region
          %p480 = scmp.lt.s32.totalorder %s28, 1
          %s481 = scalar_select %p480, %s28, 1
          %s482 = scalar_lea.vmem %s8, %s481
        $region52: #{tpu_custom_call.1} parent=19 // pred_fallthru
          _
        // Predicated region
        $region53: #{tpu_custom_call.1} parent=19 // pred_check
          %p483 = pneg %p286
        $region54: #{tpu_custom_call.1} parent=19 // pred_check_branch
          %485 = sbr.rel (%p483) target = $region56
        $region55: #{tpu_custom_call.1} parent=19 // pred_region
          %p486 = scmp.lt.s32.totalorder %s28, 1
          %s487 = scalar_select %p486, %s28, 1
          %s488 = scalar_lea.vmem %s9, %s487
        $region56: #{tpu_custom_call.1} parent=19 // pred_fallthru
          _
        // Predicated region
        $region57: #{tpu_custom_call.1} parent=19 // pred_check
          %p489 = pneg %p312
        $region58: #{tpu_custom_call.1} parent=19 // pred_check_branch
          %491 = sbr.rel (%p489) target = $region60
        $region59: #{tpu_custom_call.1} parent=19 // pred_region
          %p492 = scmp.lt.s32.totalorder %s28, 1
          %s493 = scalar_select %p492, %s28, 1
          %s494 = scalar_lea.vmem %s10, %s493
        $region60: #{tpu_custom_call.1} parent=19 // pred_fallthru
          _
        // Predicated region
        $region61: #{tpu_custom_call.1} parent=19 // pred_check
          %p495 = pneg %p338
        $region62: #{tpu_custom_call.1} parent=19 // pred_check_branch
          %497 = sbr.rel (%p495) target = $region64
        $region63: #{tpu_custom_call.1} parent=19 // pred_region
          %p498 = scmp.lt.s32.totalorder %s28, 1
          %s499 = scalar_select %p498, %s28, 1
          %s500 = scalar_lea.vmem %s11, %s499
        $region64: #{tpu_custom_call.1} parent=19 // pred_fallthru
          _
        // Predicated region
        $region65: #{tpu_custom_call.1} parent=19 // pred_check
          %p501 = pneg %p364
        $region66: #{tpu_custom_call.1} parent=19 // pred_check_branch
          %503 = sbr.rel (%p501) target = $region68
        $region67: #{tpu_custom_call.1} parent=19 // pred_region
          %p504 = scmp.lt.s32.totalorder %s28, 1
          %s505 = scalar_select %p504, %s28, 1
          %s506 = scalar_lea.vmem %s12, %s505
        $region68: #{tpu_custom_call.1} parent=19 // pred_fallthru
          _
      $region20: #{tpu_custom_call.1} parent=5 // pred_fallthru
        _
      %p507 = scmp.le.s32.totalorder 1, %s20
      %p508 = scmp.lt.s32.totalorder %s20, 3
      %p509 = pnand %p507, %p508
      %p510 = pneg %p509
      // Predicated region
      $region69: #{tpu_custom_call.1} parent=5 // pred_check
        _
      $region70: #{tpu_custom_call.1} parent=5 // pred_check_branch
        %512 = sbr.rel (%p509) target = $region72
      $region71: #{tpu_custom_call.1} parent=5 // pred_region
        %s513 = ssub.s32 %s20, 1
        %s514 = smul.u32 2, %s29
        %p515 = scmp.lt.s32.totalorder %s514, 1
        %s516 = scalar_select %p515, %s514, 1
        %s517 = smul.addr %s516, 8
        %s518 = scalar_lea.vmem %s0, %s517
        %p519 = pneg %p58
        %p520 = pneg %p55
        %p521 = scmp.lt.s32.totalorder %s30, 1
        %s522 = scalar_select %p521, %s30, 1
        %s523 = smul.addr %s522, 16
        %s524 = smul.addr %s523, 8
        %s525 = scalar_lea.vmem %s1, %s524
        %p526 = pneg %p84
        %p527 = pneg %p81
        %p528 = scmp.lt.s32.totalorder %s30, 1
        %s529 = scalar_select %p528, %s30, 1
        %s530 = smul.addr %s529, 4
        %s531 = scalar_lea.vmem %s2, %s530
        %p532 = pneg %p110
        %p533 = pneg %p107
        %p534 = scmp.lt.s32.totalorder %s30, 1
        %s535 = scalar_select %p534, %s30, 1
        %s536 = smul.addr %s535, 16
        %s537 = smul.addr %s536, 8
        %s538 = scalar_lea.vmem %s3, %s537
        %p539 = pneg %p136
        %p540 = pneg %p133
        %p541 = scmp.lt.s32.totalorder %s30, 1
        %s542 = scalar_select %p541, %s30, 1
        %s543 = smul.addr %s542, 4
        %s544 = scalar_lea.vmem %s4, %s543
        %p545 = pneg %p162
        %p546 = pneg %p159
        %p547 = scmp.lt.s32.totalorder %s30, 1
        %s548 = scalar_select %p547, %s30, 1
        %s549 = smul.addr %s548, 16
        %s550 = smul.addr %s549, 8
        %s551 = scalar_lea.vmem %s5, %s550
        %p552 = pneg %p188
        %p553 = pneg %p185
        %p554 = scmp.lt.s32.totalorder %s30, 1
        %s555 = scalar_select %p554, %s30, 1
        %s556 = smul.addr %s555, 4
        %s557 = scalar_lea.vmem %s6, %s556
        %p558 = pneg %p214
        %p559 = pneg %p211
        %p560 = scmp.lt.s32.totalorder %s30, 1
        %s561 = scalar_select %p560, %s30, 1
        %s562 = smul.addr %s561, 4
        %s563 = smul.addr %s562, 8
        %s564 = scalar_lea.vmem %s7, %s563
        %p565 = pneg %p240
        %p566 = pneg %p237
        %p567 = scmp.lt.s32.totalorder %s30, 1
        %s568 = scalar_select %p567, %s30, 1
        %s569 = scalar_lea.vmem %s8, %s568
        %p570 = pneg %p266
        %p571 = pneg %p263
        %p572 = scmp.lt.s32.totalorder %s30, 1
        %s573 = scalar_select %p572, %s30, 1
        %s574 = scalar_lea.vmem %s9, %s573
        %p575 = pneg %p292
        %p576 = pneg %p289
        %p577 = scmp.lt.s32.totalorder %s30, 1
        %s578 = scalar_select %p577, %s30, 1
        %s579 = scalar_lea.vmem %s10, %s578
        %p580 = pneg %p318
        %p581 = pneg %p315
        %p582 = scmp.lt.s32.totalorder %s30, 1
        %s583 = scalar_select %p582, %s30, 1
        %s584 = scalar_lea.vmem %s11, %s583
        %p585 = pneg %p344
        %p586 = pneg %p341
        %p587 = scmp.lt.s32.totalorder %s30, 1
        %s588 = scalar_select %p587, %s30, 1
        %s589 = scalar_lea.vmem %s12, %s588
        %p590 = pneg %p370
        %p591 = pneg %p367
        %p592 = pneg %p396
        %p593 = pneg %p393
        %s594 = smul.u32 2, %s29
        %p595 = scmp.lt.s32.totalorder %s594, 1
        %s596 = scalar_select %p595, %s594, 1
        %s597 = smul.addr %s596, 8
        %s598 = scalar_lea.vmem %s0, %s597
        %s599 = smul.u32 2, %s29
        %p600 = scmp.lt.s32.totalorder %s30, 1
        %s601 = scalar_select %p600, %s30, 1
        %s602 = smul.addr %s601, 16
        %s603 = smul.addr %s602, 8
        %s604 = scalar_lea.vmem %s1, %s603
        %p605 = scmp.lt.s32.totalorder %s30, 1
        %s606 = scalar_select %p605, %s30, 1
        %s607 = smul.addr %s606, 4
        %s608 = scalar_lea.vmem %s2, %s607
        %p609 = scmp.lt.s32.totalorder %s30, 1
        %s610 = scalar_select %p609, %s30, 1
        %s611 = smul.addr %s610, 16
        %s612 = smul.addr %s611, 8
        %s613 = scalar_lea.vmem %s3, %s612
        %p614 = scmp.lt.s32.totalorder %s30, 1
        %s615 = scalar_select %p614, %s30, 1
        %s616 = smul.addr %s615, 4
        %s617 = scalar_lea.vmem %s4, %s616
        %p618 = scmp.lt.s32.totalorder %s30, 1
        %s619 = scalar_select %p618, %s30, 1
        %s620 = smul.addr %s619, 16
        %s621 = smul.addr %s620, 8
        %s622 = scalar_lea.vmem %s5, %s621
        %p623 = scmp.lt.s32.totalorder %s30, 1
        %s624 = scalar_select %p623, %s30, 1
        %s625 = smul.addr %s624, 4
        %s626 = scalar_lea.vmem %s6, %s625
        %p627 = scmp.lt.s32.totalorder %s30, 1
        %s628 = scalar_select %p627, %s30, 1
        %s629 = smul.addr %s628, 4
        %s630 = smul.addr %s629, 8
        %s631 = scalar_lea.vmem %s7, %s630
        %p632 = scmp.lt.s32.totalorder %s30, 1
        %s633 = scalar_select %p632, %s30, 1
        %s634 = scalar_lea.vmem %s8, %s633
        %p635 = scmp.lt.s32.totalorder %s30, 1
        %s636 = scalar_select %p635, %s30, 1
        %s637 = scalar_lea.vmem %s9, %s636
        %p638 = scmp.lt.s32.totalorder %s30, 1
        %s639 = scalar_select %p638, %s30, 1
        %s640 = scalar_lea.vmem %s10, %s639
        %p641 = scmp.lt.s32.totalorder %s30, 1
        %s642 = scalar_select %p641, %s30, 1
        %s643 = scalar_lea.vmem %s11, %s642
        %p644 = scmp.lt.s32.totalorder %s30, 1
        %s645 = scalar_select %p644, %s30, 1
        %s646 = scalar_lea.vmem %s12, %s645
        %s647 = smul.u32 2, %s29
        %p648 = scmp.eq.s32.totalorder %s30, 0
        // Predicated region
        $region73: #{tpu_custom_call.1} parent=71 // pred_check
          %p649 = pneg %p648
        $region74: #{tpu_custom_call.1} parent=71 // pred_check_branch
          %651 = sbr.rel (%p649) target = $region76
        $region75: #{tpu_custom_call.1} parent=71 // pred_region
          %v652 = vld [vmem:[%s598] sm:$0xff]
          %v653 = vld [vmem:[%s598 + $0x8] sm:$0xff]
          %vm654 = vcmask 261120
          %655 = vst.msk [vmem:[#allocation2] sm:$0xff] %vm654, %v652
          %656 = vst.msk [vmem:[#allocation2 + $0x8] sm:$0xff] %vm654, %v653
        $region76: #{tpu_custom_call.1} parent=71 // pred_fallthru
          _
        %v657 = vld [vmem:[#allocation2] sm:$0xff]
        %v658 = vld [vmem:[#allocation2 + $0x8] sm:$0xff]
        %v659 = vld [vmem:[%s604] sm:$0xff]
        %v660 = vld [vmem:[%s604 + $0x8] sm:$0xff]
        %v661 = vld [vmem:[%s604 + $0x10] sm:$0xff]
        %v662 = vld [vmem:[%s604 + $0x18] sm:$0xff]
        %v663 = vld [vmem:[%s604 + $0x20] sm:$0xff]
        %v664 = vld [vmem:[%s604 + $0x28] sm:$0xff]
        %v665 = vld [vmem:[%s604 + $0x30] sm:$0xff]
        %v666 = vld [vmem:[%s604 + $0x38] sm:$0xff]
        %v667 = vld [vmem:[%s604 + $0x40] sm:$0xff]
        %v668 = vld [vmem:[%s604 + $0x48] sm:$0xff]
        %v669 = vld [vmem:[%s604 + $0x50] sm:$0xff]
        %v670 = vld [vmem:[%s604 + $0x58] sm:$0xff]
        %v671 = vld [vmem:[%s604 + $0x60] sm:$0xff]
        %v672 = vld [vmem:[%s604 + $0x68] sm:$0xff]
        %v673 = vld [vmem:[%s604 + $0x70] sm:$0xff]
        %v674 = vld [vmem:[%s604 + $0x78] sm:$0xff]
        %v675 = vld [vmem:[%s613] sm:$0xff]
        %v676 = vld [vmem:[%s613 + $0x8] sm:$0xff]
        %v677 = vld [vmem:[%s613 + $0x10] sm:$0xff]
        %v678 = vld [vmem:[%s613 + $0x18] sm:$0xff]
        %v679 = vld [vmem:[%s613 + $0x20] sm:$0xff]
        %v680 = vld [vmem:[%s613 + $0x28] sm:$0xff]
        %v681 = vld [vmem:[%s613 + $0x30] sm:$0xff]
        %v682 = vld [vmem:[%s613 + $0x38] sm:$0xff]
        %v683 = vld [vmem:[%s613 + $0x40] sm:$0xff]
        %v684 = vld [vmem:[%s613 + $0x48] sm:$0xff]
        %v685 = vld [vmem:[%s613 + $0x50] sm:$0xff]
        %v686 = vld [vmem:[%s613 + $0x58] sm:$0xff]
        %v687 = vld [vmem:[%s613 + $0x60] sm:$0xff]
        %v688 = vld [vmem:[%s613 + $0x68] sm:$0xff]
        %v689 = vld [vmem:[%s613 + $0x70] sm:$0xff]
        %v690 = vld [vmem:[%s613 + $0x78] sm:$0xff]
        %v691 = vld [vmem:[%s622] sm:$0xff]
        %v692 = vld [vmem:[%s622 + $0x8] sm:$0xff]
        %v693 = vld [vmem:[%s622 + $0x10] sm:$0xff]
        %v694 = vld [vmem:[%s622 + $0x18] sm:$0xff]
        %v695 = vld [vmem:[%s622 + $0x20] sm:$0xff]
        %v696 = vld [vmem:[%s622 + $0x28] sm:$0xff]
        %v697 = vld [vmem:[%s622 + $0x30] sm:$0xff]
        %v698 = vld [vmem:[%s622 + $0x38] sm:$0xff]
        %v699 = vld [vmem:[%s622 + $0x40] sm:$0xff]
        %v700 = vld [vmem:[%s622 + $0x48] sm:$0xff]
        %v701 = vld [vmem:[%s622 + $0x50] sm:$0xff]
        %v702 = vld [vmem:[%s622 + $0x58] sm:$0xff]
        %v703 = vld [vmem:[%s622 + $0x60] sm:$0xff]
        %v704 = vld [vmem:[%s622 + $0x68] sm:$0xff]
        %v705 = vld [vmem:[%s622 + $0x70] sm:$0xff]
        %v706 = vld [vmem:[%s622 + $0x78] sm:$0xff]
        %v707 = vld [vmem:[%s631] sm:$0xff]
        %v708 = vld [vmem:[%s631 + $0x8] sm:$0xff]
        %v709 = vld [vmem:[%s631 + $0x10] sm:$0xff]
        %v710 = vld [vmem:[%s631 + $0x18] sm:$0xff]
        %v711 = vld [vmem:[%s608] sm:$0x1]
        %v712 = vld [vmem:[%s608 + $0x1] sm:$0x1]
        %v713 = vld [vmem:[%s608 + $0x2] sm:$0x1]
        %v714 = vld [vmem:[%s608 + $0x3] sm:$0x1]
        %v715 = vld [vmem:[%s617] sm:$0x1]
        %v716 = vld [vmem:[%s617 + $0x1] sm:$0x1]
        %v717 = vld [vmem:[%s617 + $0x2] sm:$0x1]
        %v718 = vld [vmem:[%s617 + $0x3] sm:$0x1]
        %v719 = vld [vmem:[%s626] sm:$0x1]
        %v720 = vld [vmem:[%s626 + $0x1] sm:$0x1]
        %v721 = vld [vmem:[%s626 + $0x2] sm:$0x1]
        %v722 = vld [vmem:[%s626 + $0x3] sm:$0x1]
        %v727 = vlaneseq
        %v728 = vshrl.u32 %v727, 7
        %v729 = vsub.s32 0, %v728
        %v730 = vrot.slane %v711, %v729
        %v731 = vlaneseq
        %v732 = vshrl.u32 %v731, 7
        %v733 = vsub.s32 0, %v732
        %v734 = vrot.slane %v712, %v733
        %v735 = vlaneseq
        %v736 = vshrl.u32 %v735, 7
        %v737 = vsub.s32 0, %v736
        %v738 = vrot.slane %v713, %v737
        %v739 = vlaneseq
        %v740 = vshrl.u32 %v739, 7
        %v741 = vsub.s32 0, %v740
        %v742 = vrot.slane %v714, %v741
        %vm747 = vcmask 261120
        %v749 = vsel %vm747, %v657, 0
        %751 = vmatprep.subr.mxu0 0.0
        %752 = vmatpush1.msra.mxu0 0.0
        %753 = vmatprep.subr.mxu0 0.0
        %754 = vmatpush1.msra.mxu0 0.0
        %755 = vmatprep.subr.mxu0 0.0
        %756 = vmatpush1.msra.mxu0 0.0
        %757 = vmatprep.subr.mxu0 0.0
        %758 = vmatpush1.msra.mxu0 0.0
        %759 = vmatprep.subr.mxu0 0.0
        %760 = vmatpush1.msra.mxu0 0.0
        %761 = vmatprep.subr.mxu0 0.0
        %762 = vmatpush1.msra.mxu0 0.0
        %763 = vmatprep.subr.mxu0 0.0
        %764 = vmatpush1.msra.mxu0 0.0
        %765 = vmatprep.subr.mxu0 0.0
        %766 = vmatpush1.msra.mxu0 0.0
        %767 = vmatprep.subr.mxu0 0.0
        %768 = vmatpush1.msra.mxu0 0.0
        %769 = vmatprep.subr.mxu0 0.0
        %770 = vmatpush1.msra.mxu0 0.0
        %771 = vmatprep.subr.mxu0 0.0
        %772 = vmatpush1.msra.mxu0 0.0
        %773 = vmatprep.subr.mxu0 0.0
        %774 = vmatpush1.msra.mxu0 0.0
        %775 = vmatprep.subr.mxu0 0.0
        %776 = vmatpush1.msra.mxu0 %v662
        %777 = vmatprep.subr.mxu0 0.0
        %778 = vmatpush1.msra.mxu0 %v661
        %779 = vmatprep.subr.mxu0 0.0
        %780 = vmatpush1.msra.mxu0 %v660
        %781 = vmatprep.subr.mxu0 0.0
        %782 = vmatpush1.msra.mxu0 %v659
        %783 = vmatprep.subr.mxu0 0.0
        %784 = vmatpush2.msra.mxu0 0.0
        %785 = vmatprep.subr.mxu0 0.0
        %786 = vmatpush2.msra.mxu0 0.0
        %787 = vmatprep.subr.mxu0 0.0
        %788 = vmatpush2.msra.mxu0 0.0
        %789 = vmatprep.subr.mxu0 0.0
        %790 = vmatpush2.msra.mxu0 0.0
        %791 = vmatprep.subr.mxu0 0.0
        %792 = vmatpush2.msra.mxu0 0.0
        %793 = vmatprep.subr.mxu0 0.0
        %794 = vmatpush2.msra.mxu0 0.0
        %795 = vmatprep.subr.mxu0 0.0
        %796 = vmatpush2.msra.mxu0 0.0
        %797 = vmatprep.subr.mxu0 0.0
        %798 = vmatpush2.msra.mxu0 0.0
        %799 = vmatprep.subr.mxu0 0.0
        %800 = vmatpush2.msra.mxu0 0.0
        %801 = vmatprep.subr.mxu0 0.0
        %802 = vmatpush2.msra.mxu0 0.0
        %803 = vmatprep.subr.mxu0 0.0
        %804 = vmatpush2.msra.mxu0 0.0
        %805 = vmatprep.subr.mxu0 0.0
        %806 = vmatpush2.msra.mxu0 0.0
        %807 = vmatprep.subr.mxu0 0.0
        %808 = vmatpush2.msra.mxu0 0.0
        %809 = vmatprep.subr.mxu0 0.0
        %810 = vmatpush2.msra.mxu0 0.0
        %811 = vmatprep.subr.mxu0 0.0
        %812 = vmatpush2.msra.mxu0 0.0
        %813 = vmatprep.subr.mxu0 0.0
        %814 = vmatpush2.msra.mxu0 0.0
        %815 = vmatprep.mubr.f32.mxu0 0.0
        %816 = vmatmul.mubr.f32.gmra.mxu0 %v749
        %v817 = vpop.f32.mrf.mxu0
        %v818 = vadd.f32 %v730, %v817
        %v819 = vpop.f32.mrf.mxu0
        %820 = vdwg.mxu0
        %821 = vmatprep.subr.mxu0 0.0
        %822 = vmatpush1.msra.mxu0 0.0
        %823 = vmatprep.subr.mxu0 0.0
        %824 = vmatpush1.msra.mxu0 0.0
        %825 = vmatprep.subr.mxu0 0.0
        %826 = vmatpush1.msra.mxu0 0.0
        %827 = vmatprep.subr.mxu0 0.0
        %828 = vmatpush1.msra.mxu0 0.0
        %829 = vmatprep.subr.mxu0 0.0
        %830 = vmatpush1.msra.mxu0 0.0
        %831 = vmatprep.subr.mxu0 0.0
        %832 = vmatpush1.msra.mxu0 0.0
        %833 = vmatprep.subr.mxu0 0.0
        %834 = vmatpush1.msra.mxu0 0.0
        %835 = vmatprep.subr.mxu0 0.0
        %836 = vmatpush1.msra.mxu0 0.0
        %837 = vmatprep.subr.mxu0 0.0
        %838 = vmatpush1.msra.mxu0 0.0
        %839 = vmatprep.subr.mxu0 0.0
        %840 = vmatpush1.msra.mxu0 0.0
        %841 = vmatprep.subr.mxu0 0.0
        %842 = vmatpush1.msra.mxu0 0.0
        %843 = vmatprep.subr.mxu0 0.0
        %844 = vmatpush1.msra.mxu0 0.0
        %845 = vmatprep.subr.mxu0 0.0
        %846 = vmatpush1.msra.mxu0 %v666
        %847 = vmatprep.subr.mxu0 0.0
        %848 = vmatpush1.msra.mxu0 %v665
        %849 = vmatprep.subr.mxu0 0.0
        %850 = vmatpush1.msra.mxu0 %v664
        %851 = vmatprep.subr.mxu0 0.0
        %852 = vmatpush1.msra.mxu0 %v663
        %853 = vmatprep.subr.mxu0 0.0
        %854 = vmatpush2.msra.mxu0 0.0
        %855 = vmatprep.subr.mxu0 0.0
        %856 = vmatpush2.msra.mxu0 0.0
        %857 = vmatprep.subr.mxu0 0.0
        %858 = vmatpush2.msra.mxu0 0.0
        %859 = vmatprep.subr.mxu0 0.0
        %860 = vmatpush2.msra.mxu0 0.0
        %861 = vmatprep.subr.mxu0 0.0
        %862 = vmatpush2.msra.mxu0 0.0
        %863 = vmatprep.subr.mxu0 0.0
        %864 = vmatpush2.msra.mxu0 0.0
        %865 = vmatprep.subr.mxu0 0.0
        %866 = vmatpush2.msra.mxu0 0.0
        %867 = vmatprep.subr.mxu0 0.0
        %868 = vmatpush2.msra.mxu0 0.0
        %869 = vmatprep.subr.mxu0 0.0
        %870 = vmatpush2.msra.mxu0 0.0
        %871 = vmatprep.subr.mxu0 0.0
        %872 = vmatpush2.msra.mxu0 0.0
        %873 = vmatprep.subr.mxu0 0.0
        %874 = vmatpush2.msra.mxu0 0.0
        %875 = vmatprep.subr.mxu0 0.0
        %876 = vmatpush2.msra.mxu0 0.0
        %877 = vmatprep.subr.mxu0 0.0
        %878 = vmatpush2.msra.mxu0 0.0
        %879 = vmatprep.subr.mxu0 0.0
        %880 = vmatpush2.msra.mxu0 0.0
        %881 = vmatprep.subr.mxu0 0.0
        %882 = vmatpush2.msra.mxu0 0.0
        %883 = vmatprep.subr.mxu0 0.0
        %884 = vmatpush2.msra.mxu0 0.0
        %885 = vmatprep.mubr.f32.mxu0 0.0
        %886 = vmatmul.mubr.f32.gmra.mxu0 %v749
        %v887 = vpop.f32.mrf.mxu0
        %v888 = vadd.f32 %v734, %v887
        %v889 = vpop.f32.mrf.mxu0
        %890 = vdwg.mxu0
        %891 = vmatprep.subr.mxu0 0.0
        %892 = vmatpush1.msra.mxu0 0.0
        %893 = vmatprep.subr.mxu0 0.0
        %894 = vmatpush1.msra.mxu0 0.0
        %895 = vmatprep.subr.mxu0 0.0
        %896 = vmatpush1.msra.mxu0 0.0
        %897 = vmatprep.subr.mxu0 0.0
        %898 = vmatpush1.msra.mxu0 0.0
        %899 = vmatprep.subr.mxu0 0.0
        %900 = vmatpush1.msra.mxu0 0.0
        %901 = vmatprep.subr.mxu0 0.0
        %902 = vmatpush1.msra.mxu0 0.0
        %903 = vmatprep.subr.mxu0 0.0
        %904 = vmatpush1.msra.mxu0 0.0
        %905 = vmatprep.subr.mxu0 0.0
        %906 = vmatpush1.msra.mxu0 0.0
        %907 = vmatprep.subr.mxu0 0.0
        %908 = vmatpush1.msra.mxu0 0.0
        %909 = vmatprep.subr.mxu0 0.0
        %910 = vmatpush1.msra.mxu0 0.0
        %911 = vmatprep.subr.mxu0 0.0
        %912 = vmatpush1.msra.mxu0 0.0
        %913 = vmatprep.subr.mxu0 0.0
        %914 = vmatpush1.msra.mxu0 0.0
        %915 = vmatprep.subr.mxu0 0.0
        %916 = vmatpush1.msra.mxu0 %v670
        %917 = vmatprep.subr.mxu0 0.0
        %918 = vmatpush1.msra.mxu0 %v669
        %919 = vmatprep.subr.mxu0 0.0
        %920 = vmatpush1.msra.mxu0 %v668
        %921 = vmatprep.subr.mxu0 0.0
        %922 = vmatpush1.msra.mxu0 %v667
        %923 = vmatprep.subr.mxu0 0.0
        %924 = vmatpush2.msra.mxu0 0.0
        %925 = vmatprep.subr.mxu0 0.0
        %926 = vmatpush2.msra.mxu0 0.0
        %927 = vmatprep.subr.mxu0 0.0
        %928 = vmatpush2.msra.mxu0 0.0
        %929 = vmatprep.subr.mxu0 0.0
        %930 = vmatpush2.msra.mxu0 0.0
        %931 = vmatprep.subr.mxu0 0.0
        %932 = vmatpush2.msra.mxu0 0.0
        %933 = vmatprep.subr.mxu0 0.0
        %934 = vmatpush2.msra.mxu0 0.0
        %935 = vmatprep.subr.mxu0 0.0
        %936 = vmatpush2.msra.mxu0 0.0
        %937 = vmatprep.subr.mxu0 0.0
        %938 = vmatpush2.msra.mxu0 0.0
        %939 = vmatprep.subr.mxu0 0.0
        %940 = vmatpush2.msra.mxu0 0.0
        %941 = vmatprep.subr.mxu0 0.0
        %942 = vmatpush2.msra.mxu0 0.0
        %943 = vmatprep.subr.mxu0 0.0
        %944 = vmatpush2.msra.mxu0 0.0
        %945 = vmatprep.subr.mxu0 0.0
        %946 = vmatpush2.msra.mxu0 0.0
        %947 = vmatprep.subr.mxu0 0.0
        %948 = vmatpush2.msra.mxu0 0.0
        %949 = vmatprep.subr.mxu0 0.0
        %950 = vmatpush2.msra.mxu0 0.0
        %951 = vmatprep.subr.mxu0 0.0
        %952 = vmatpush2.msra.mxu0 0.0
        %953 = vmatprep.subr.mxu0 0.0
        %954 = vmatpush2.msra.mxu0 0.0
        %955 = vmatprep.mubr.f32.mxu0 0.0
        %956 = vmatmul.mubr.f32.gmra.mxu0 %v749
        %v957 = vpop.f32.mrf.mxu0
        %v958 = vadd.f32 %v738, %v957
        %v959 = vpop.f32.mrf.mxu0
        %960 = vdwg.mxu0
        %961 = vmatprep.subr.mxu0 0.0
        %962 = vmatpush1.msra.mxu0 0.0
        %963 = vmatprep.subr.mxu0 0.0
        %964 = vmatpush1.msra.mxu0 0.0
        %965 = vmatprep.subr.mxu0 0.0
        %966 = vmatpush1.msra.mxu0 0.0
        %967 = vmatprep.subr.mxu0 0.0
        %968 = vmatpush1.msra.mxu0 0.0
        %969 = vmatprep.subr.mxu0 0.0
        %970 = vmatpush1.msra.mxu0 0.0
        %971 = vmatprep.subr.mxu0 0.0
        %972 = vmatpush1.msra.mxu0 0.0
        %973 = vmatprep.subr.mxu0 0.0
        %974 = vmatpush1.msra.mxu0 0.0
        %975 = vmatprep.subr.mxu0 0.0
        %976 = vmatpush1.msra.mxu0 0.0
        %977 = vmatprep.subr.mxu0 0.0
        %978 = vmatpush1.msra.mxu0 0.0
        %979 = vmatprep.subr.mxu0 0.0
        %980 = vmatpush1.msra.mxu0 0.0
        %981 = vmatprep.subr.mxu0 0.0
        %982 = vmatpush1.msra.mxu0 0.0
        %983 = vmatprep.subr.mxu0 0.0
        %984 = vmatpush1.msra.mxu0 0.0
        %985 = vmatprep.subr.mxu0 0.0
        %986 = vmatpush1.msra.mxu0 %v674
        %987 = vmatprep.subr.mxu0 0.0
        %988 = vmatpush1.msra.mxu0 %v673
        %989 = vmatprep.subr.mxu0 0.0
        %990 = vmatpush1.msra.mxu0 %v672
        %991 = vmatprep.subr.mxu0 0.0
        %992 = vmatpush1.msra.mxu0 %v671
        %993 = vmatprep.subr.mxu0 0.0
        %994 = vmatpush2.msra.mxu0 0.0
        %995 = vmatprep.subr.mxu0 0.0
        %996 = vmatpush2.msra.mxu0 0.0
        %997 = vmatprep.subr.mxu0 0.0
        %998 = vmatpush2.msra.mxu0 0.0
        %999 = vmatprep.subr.mxu0 0.0
        %1000 = vmatpush2.msra.mxu0 0.0
        %1001 = vmatprep.subr.mxu0 0.0
        %1002 = vmatpush2.msra.mxu0 0.0
        %1003 = vmatprep.subr.mxu0 0.0
        %1004 = vmatpush2.msra.mxu0 0.0
        %1005 = vmatprep.subr.mxu0 0.0
        %1006 = vmatpush2.msra.mxu0 0.0
        %1007 = vmatprep.subr.mxu0 0.0
        %1008 = vmatpush2.msra.mxu0 0.0
        %1009 = vmatprep.subr.mxu0 0.0
        %1010 = vmatpush2.msra.mxu0 0.0
        %1011 = vmatprep.subr.mxu0 0.0
        %1012 = vmatpush2.msra.mxu0 0.0
        %1013 = vmatprep.subr.mxu0 0.0
        %1014 = vmatpush2.msra.mxu0 0.0
        %1015 = vmatprep.subr.mxu0 0.0
        %1016 = vmatpush2.msra.mxu0 0.0
        %1017 = vmatprep.subr.mxu0 0.0
        %1018 = vmatpush2.msra.mxu0 0.0
        %1019 = vmatprep.subr.mxu0 0.0
        %1020 = vmatpush2.msra.mxu0 0.0
        %1021 = vmatprep.subr.mxu0 0.0
        %1022 = vmatpush2.msra.mxu0 0.0
        %1023 = vmatprep.subr.mxu0 0.0
        %1024 = vmatpush2.msra.mxu0 0.0
        %1025 = vmatprep.mubr.f32.mxu0 0.0
        %1026 = vmatmul.mubr.f32.gmra.mxu0 %v749
        %v1027 = vpop.f32.mrf.mxu0
        %v1028 = vadd.f32 %v742, %v1027
        %v1029 = vpop.f32.mrf.mxu0
        %1030 = vdwg.mxu0
        %v1035 = vlaneseq
        %v1036 = vshrl.u32 %v1035, 7
        %v1037 = vsub.s32 0, %v1036
        %v1038 = vrot.slane %v715, %v1037
        %v1039 = vlaneseq
        %v1040 = vshrl.u32 %v1039, 7
        %v1041 = vsub.s32 0, %v1040
        %v1042 = vrot.slane %v716, %v1041
        %v1043 = vlaneseq
        %v1044 = vshrl.u32 %v1043, 7
        %v1045 = vsub.s32 0, %v1044
        %v1046 = vrot.slane %v717, %v1045
        %v1047 = vlaneseq
        %v1048 = vshrl.u32 %v1047, 7
        %v1049 = vsub.s32 0, %v1048
        %v1050 = vrot.slane %v718, %v1049
        %1055 = vmatprep.subr.mxu0 0.0
        %1056 = vmatpush1.msra.mxu0 0.0
        %1057 = vmatprep.subr.mxu0 0.0
        %1058 = vmatpush1.msra.mxu0 0.0
        %1059 = vmatprep.subr.mxu0 0.0
        %1060 = vmatpush1.msra.mxu0 0.0
        %1061 = vmatprep.subr.mxu0 0.0
        %1062 = vmatpush1.msra.mxu0 0.0
        %1063 = vmatprep.subr.mxu0 0.0
        %1064 = vmatpush1.msra.mxu0 0.0
        %1065 = vmatprep.subr.mxu0 0.0
        %1066 = vmatpush1.msra.mxu0 0.0
        %1067 = vmatprep.subr.mxu0 0.0
        %1068 = vmatpush1.msra.mxu0 0.0
        %1069 = vmatprep.subr.mxu0 0.0
        %1070 = vmatpush1.msra.mxu0 0.0
        %1071 = vmatprep.subr.mxu0 0.0
        %1072 = vmatpush1.msra.mxu0 0.0
        %1073 = vmatprep.subr.mxu0 0.0
        %1074 = vmatpush1.msra.mxu0 0.0
        %1075 = vmatprep.subr.mxu0 0.0
        %1076 = vmatpush1.msra.mxu0 0.0
        %1077 = vmatprep.subr.mxu0 0.0
        %1078 = vmatpush1.msra.mxu0 0.0
        %1079 = vmatprep.subr.mxu0 0.0
        %1080 = vmatpush1.msra.mxu0 %v678
        %1081 = vmatprep.subr.mxu0 0.0
        %1082 = vmatpush1.msra.mxu0 %v677
        %1083 = vmatprep.subr.mxu0 0.0
        %1084 = vmatpush1.msra.mxu0 %v676
        %1085 = vmatprep.subr.mxu0 0.0
        %1086 = vmatpush1.msra.mxu0 %v675
        %1087 = vmatprep.subr.mxu0 0.0
        %1088 = vmatpush2.msra.mxu0 0.0
        %1089 = vmatprep.subr.mxu0 0.0
        %1090 = vmatpush2.msra.mxu0 0.0
        %1091 = vmatprep.subr.mxu0 0.0
        %1092 = vmatpush2.msra.mxu0 0.0
        %1093 = vmatprep.subr.mxu0 0.0
        %1094 = vmatpush2.msra.mxu0 0.0
        %1095 = vmatprep.subr.mxu0 0.0
        %1096 = vmatpush2.msra.mxu0 0.0
        %1097 = vmatprep.subr.mxu0 0.0
        %1098 = vmatpush2.msra.mxu0 0.0
        %1099 = vmatprep.subr.mxu0 0.0
        %1100 = vmatpush2.msra.mxu0 0.0
        %1101 = vmatprep.subr.mxu0 0.0
        %1102 = vmatpush2.msra.mxu0 0.0
        %1103 = vmatprep.subr.mxu0 0.0
        %1104 = vmatpush2.msra.mxu0 0.0
        %1105 = vmatprep.subr.mxu0 0.0
        %1106 = vmatpush2.msra.mxu0 0.0
        %1107 = vmatprep.subr.mxu0 0.0
        %1108 = vmatpush2.msra.mxu0 0.0
        %1109 = vmatprep.subr.mxu0 0.0
        %1110 = vmatpush2.msra.mxu0 0.0
        %1111 = vmatprep.subr.mxu0 0.0
        %1112 = vmatpush2.msra.mxu0 0.0
        %1113 = vmatprep.subr.mxu0 0.0
        %1114 = vmatpush2.msra.mxu0 0.0
        %1115 = vmatprep.subr.mxu0 0.0
        %1116 = vmatpush2.msra.mxu0 0.0
        %1117 = vmatprep.subr.mxu0 0.0
        %1118 = vmatpush2.msra.mxu0 0.0
        %1119 = vmatprep.mubr.f32.mxu0 0.0
        %1120 = vmatmul.mubr.f32.gmra.mxu0 %v749
        %v1121 = vpop.f32.mrf.mxu0
        %v1122 = vadd.f32 %v1038, %v1121
        %v1123 = vpop.f32.mrf.mxu0
        %1124 = vdwg.mxu0
        %1125 = vmatprep.subr.mxu0 0.0
        %1126 = vmatpush1.msra.mxu0 0.0
        %1127 = vmatprep.subr.mxu0 0.0
        %1128 = vmatpush1.msra.mxu0 0.0
        %1129 = vmatprep.subr.mxu0 0.0
        %1130 = vmatpush1.msra.mxu0 0.0
        %1131 = vmatprep.subr.mxu0 0.0
        %1132 = vmatpush1.msra.mxu0 0.0
        %1133 = vmatprep.subr.mxu0 0.0
        %1134 = vmatpush1.msra.mxu0 0.0
        %1135 = vmatprep.subr.mxu0 0.0
        %1136 = vmatpush1.msra.mxu0 0.0
        %1137 = vmatprep.subr.mxu0 0.0
        %1138 = vmatpush1.msra.mxu0 0.0
        %1139 = vmatprep.subr.mxu0 0.0
        %1140 = vmatpush1.msra.mxu0 0.0
        %1141 = vmatprep.subr.mxu0 0.0
        %1142 = vmatpush1.msra.mxu0 0.0
        %1143 = vmatprep.subr.mxu0 0.0
        %1144 = vmatpush1.msra.mxu0 0.0
        %1145 = vmatprep.subr.mxu0 0.0
        %1146 = vmatpush1.msra.mxu0 0.0
        %1147 = vmatprep.subr.mxu0 0.0
        %1148 = vmatpush1.msra.mxu0 0.0
        %1149 = vmatprep.subr.mxu0 0.0
        %1150 = vmatpush1.msra.mxu0 %v682
        %1151 = vmatprep.subr.mxu0 0.0
        %1152 = vmatpush1.msra.mxu0 %v681
        %1153 = vmatprep.subr.mxu0 0.0
        %1154 = vmatpush1.msra.mxu0 %v680
        %1155 = vmatprep.subr.mxu0 0.0
        %1156 = vmatpush1.msra.mxu0 %v679
        %1157 = vmatprep.subr.mxu0 0.0
        %1158 = vmatpush2.msra.mxu0 0.0
        %1159 = vmatprep.subr.mxu0 0.0
        %1160 = vmatpush2.msra.mxu0 0.0
        %1161 = vmatprep.subr.mxu0 0.0
        %1162 = vmatpush2.msra.mxu0 0.0
        %1163 = vmatprep.subr.mxu0 0.0
        %1164 = vmatpush2.msra.mxu0 0.0
        %1165 = vmatprep.subr.mxu0 0.0
        %1166 = vmatpush2.msra.mxu0 0.0
        %1167 = vmatprep.subr.mxu0 0.0
        %1168 = vmatpush2.msra.mxu0 0.0
        %1169 = vmatprep.subr.mxu0 0.0
        %1170 = vmatpush2.msra.mxu0 0.0
        %1171 = vmatprep.subr.mxu0 0.0
        %1172 = vmatpush2.msra.mxu0 0.0
        %1173 = vmatprep.subr.mxu0 0.0
        %1174 = vmatpush2.msra.mxu0 0.0
        %1175 = vmatprep.subr.mxu0 0.0
        %1176 = vmatpush2.msra.mxu0 0.0
        %1177 = vmatprep.subr.mxu0 0.0
        %1178 = vmatpush2.msra.mxu0 0.0
        %1179 = vmatprep.subr.mxu0 0.0
        %1180 = vmatpush2.msra.mxu0 0.0
        %1181 = vmatprep.subr.mxu0 0.0
        %1182 = vmatpush2.msra.mxu0 0.0
        %1183 = vmatprep.subr.mxu0 0.0
        %1184 = vmatpush2.msra.mxu0 0.0
        %1185 = vmatprep.subr.mxu0 0.0
        %1186 = vmatpush2.msra.mxu0 0.0
        %1187 = vmatprep.subr.mxu0 0.0
        %1188 = vmatpush2.msra.mxu0 0.0
        %1189 = vmatprep.mubr.f32.mxu0 0.0
        %1190 = vmatmul.mubr.f32.gmra.mxu0 %v749
        %v1191 = vpop.f32.mrf.mxu0
        %v1192 = vadd.f32 %v1042, %v1191
        %v1193 = vpop.f32.mrf.mxu0
        %1194 = vdwg.mxu0
        %1195 = vmatprep.subr.mxu0 0.0
        %1196 = vmatpush1.msra.mxu0 0.0
        %1197 = vmatprep.subr.mxu0 0.0
        %1198 = vmatpush1.msra.mxu0 0.0
        %1199 = vmatprep.subr.mxu0 0.0
        %1200 = vmatpush1.msra.mxu0 0.0
        %1201 = vmatprep.subr.mxu0 0.0
        %1202 = vmatpush1.msra.mxu0 0.0
        %1203 = vmatprep.subr.mxu0 0.0
        %1204 = vmatpush1.msra.mxu0 0.0
        %1205 = vmatprep.subr.mxu0 0.0
        %1206 = vmatpush1.msra.mxu0 0.0
        %1207 = vmatprep.subr.mxu0 0.0
        %1208 = vmatpush1.msra.mxu0 0.0
        %1209 = vmatprep.subr.mxu0 0.0
        %1210 = vmatpush1.msra.mxu0 0.0
        %1211 = vmatprep.subr.mxu0 0.0
        %1212 = vmatpush1.msra.mxu0 0.0
        %1213 = vmatprep.subr.mxu0 0.0
        %1214 = vmatpush1.msra.mxu0 0.0
        %1215 = vmatprep.subr.mxu0 0.0
        %1216 = vmatpush1.msra.mxu0 0.0
        %1217 = vmatprep.subr.mxu0 0.0
        %1218 = vmatpush1.msra.mxu0 0.0
        %1219 = vmatprep.subr.mxu0 0.0
        %1220 = vmatpush1.msra.mxu0 %v686
        %1221 = vmatprep.subr.mxu0 0.0
        %1222 = vmatpush1.msra.mxu0 %v685
        %1223 = vmatprep.subr.mxu0 0.0
        %1224 = vmatpush1.msra.mxu0 %v684
        %1225 = vmatprep.subr.mxu0 0.0
        %1226 = vmatpush1.msra.mxu0 %v683
        %1227 = vmatprep.subr.mxu0 0.0
        %1228 = vmatpush2.msra.mxu0 0.0
        %1229 = vmatprep.subr.mxu0 0.0
        %1230 = vmatpush2.msra.mxu0 0.0
        %1231 = vmatprep.subr.mxu0 0.0
        %1232 = vmatpush2.msra.mxu0 0.0
        %1233 = vmatprep.subr.mxu0 0.0
        %1234 = vmatpush2.msra.mxu0 0.0
        %1235 = vmatprep.subr.mxu0 0.0
        %1236 = vmatpush2.msra.mxu0 0.0
        %1237 = vmatprep.subr.mxu0 0.0
        %1238 = vmatpush2.msra.mxu0 0.0
        %1239 = vmatprep.subr.mxu0 0.0
        %1240 = vmatpush2.msra.mxu0 0.0
        %1241 = vmatprep.subr.mxu0 0.0
        %1242 = vmatpush2.msra.mxu0 0.0
        %1243 = vmatprep.subr.mxu0 0.0
        %1244 = vmatpush2.msra.mxu0 0.0
        %1245 = vmatprep.subr.mxu0 0.0
        %1246 = vmatpush2.msra.mxu0 0.0
        %1247 = vmatprep.subr.mxu0 0.0
        %1248 = vmatpush2.msra.mxu0 0.0
        %1249 = vmatprep.subr.mxu0 0.0
        %1250 = vmatpush2.msra.mxu0 0.0
        %1251 = vmatprep.subr.mxu0 0.0
        %1252 = vmatpush2.msra.mxu0 0.0
        %1253 = vmatprep.subr.mxu0 0.0
        %1254 = vmatpush2.msra.mxu0 0.0
        %1255 = vmatprep.subr.mxu0 0.0
        %1256 = vmatpush2.msra.mxu0 0.0
        %1257 = vmatprep.subr.mxu0 0.0
        %1258 = vmatpush2.msra.mxu0 0.0
        %1259 = vmatprep.mubr.f32.mxu0 0.0
        %1260 = vmatmul.mubr.f32.gmra.mxu0 %v749
        %v1261 = vpop.f32.mrf.mxu0
        %v1262 = vadd.f32 %v1046, %v1261
        %v1263 = vpop.f32.mrf.mxu0
        %1264 = vdwg.mxu0
        %1265 = vmatprep.subr.mxu0 0.0
        %1266 = vmatpush1.msra.mxu0 0.0
        %1267 = vmatprep.subr.mxu0 0.0
        %1268 = vmatpush1.msra.mxu0 0.0
        %1269 = vmatprep.subr.mxu0 0.0
        %1270 = vmatpush1.msra.mxu0 0.0
        %1271 = vmatprep.subr.mxu0 0.0
        %1272 = vmatpush1.msra.mxu0 0.0
        %1273 = vmatprep.subr.mxu0 0.0
        %1274 = vmatpush1.msra.mxu0 0.0
        %1275 = vmatprep.subr.mxu0 0.0
        %1276 = vmatpush1.msra.mxu0 0.0
        %1277 = vmatprep.subr.mxu0 0.0
        %1278 = vmatpush1.msra.mxu0 0.0
        %1279 = vmatprep.subr.mxu0 0.0
        %1280 = vmatpush1.msra.mxu0 0.0
        %1281 = vmatprep.subr.mxu0 0.0
        %1282 = vmatpush1.msra.mxu0 0.0
        %1283 = vmatprep.subr.mxu0 0.0
        %1284 = vmatpush1.msra.mxu0 0.0
        %1285 = vmatprep.subr.mxu0 0.0
        %1286 = vmatpush1.msra.mxu0 0.0
        %1287 = vmatprep.subr.mxu0 0.0
        %1288 = vmatpush1.msra.mxu0 0.0
        %1289 = vmatprep.subr.mxu0 0.0
        %1290 = vmatpush1.msra.mxu0 %v690
        %1291 = vmatprep.subr.mxu0 0.0
        %1292 = vmatpush1.msra.mxu0 %v689
        %1293 = vmatprep.subr.mxu0 0.0
        %1294 = vmatpush1.msra.mxu0 %v688
        %1295 = vmatprep.subr.mxu0 0.0
        %1296 = vmatpush1.msra.mxu0 %v687
        %1297 = vmatprep.subr.mxu0 0.0
        %1298 = vmatpush2.msra.mxu0 0.0
        %1299 = vmatprep.subr.mxu0 0.0
        %1300 = vmatpush2.msra.mxu0 0.0
        %1301 = vmatprep.subr.mxu0 0.0
        %1302 = vmatpush2.msra.mxu0 0.0
        %1303 = vmatprep.subr.mxu0 0.0
        %1304 = vmatpush2.msra.mxu0 0.0
        %1305 = vmatprep.subr.mxu0 0.0
        %1306 = vmatpush2.msra.mxu0 0.0
        %1307 = vmatprep.subr.mxu0 0.0
        %1308 = vmatpush2.msra.mxu0 0.0
        %1309 = vmatprep.subr.mxu0 0.0
        %1310 = vmatpush2.msra.mxu0 0.0
        %1311 = vmatprep.subr.mxu0 0.0
        %1312 = vmatpush2.msra.mxu0 0.0
        %1313 = vmatprep.subr.mxu0 0.0
        %1314 = vmatpush2.msra.mxu0 0.0
        %1315 = vmatprep.subr.mxu0 0.0
        %1316 = vmatpush2.msra.mxu0 0.0
        %1317 = vmatprep.subr.mxu0 0.0
        %1318 = vmatpush2.msra.mxu0 0.0
        %1319 = vmatprep.subr.mxu0 0.0
        %1320 = vmatpush2.msra.mxu0 0.0
        %1321 = vmatprep.subr.mxu0 0.0
        %1322 = vmatpush2.msra.mxu0 0.0
        %1323 = vmatprep.subr.mxu0 0.0
        %1324 = vmatpush2.msra.mxu0 0.0
        %1325 = vmatprep.subr.mxu0 0.0
        %1326 = vmatpush2.msra.mxu0 0.0
        %1327 = vmatprep.subr.mxu0 0.0
        %1328 = vmatpush2.msra.mxu0 0.0
        %1329 = vmatprep.mubr.f32.mxu0 0.0
        %1330 = vmatmul.mubr.f32.gmra.mxu0 %v749
        %v1331 = vpop.f32.mrf.mxu0
        %v1332 = vadd.f32 %v1050, %v1331
        %v1333 = vpop.f32.mrf.mxu0
        %1334 = vdwg.mxu0
        %v1339 = vlaneseq
        %v1340 = vshrl.u32 %v1339, 7
        %v1341 = vsub.s32 0, %v1340
        %v1342 = vrot.slane %v719, %v1341
        %v1343 = vlaneseq
        %v1344 = vshrl.u32 %v1343, 7
        %v1345 = vsub.s32 0, %v1344
        %v1346 = vrot.slane %v720, %v1345
        %v1347 = vlaneseq
        %v1348 = vshrl.u32 %v1347, 7
        %v1349 = vsub.s32 0, %v1348
        %v1350 = vrot.slane %v721, %v1349
        %v1351 = vlaneseq
        %v1352 = vshrl.u32 %v1351, 7
        %v1353 = vsub.s32 0, %v1352
        %v1354 = vrot.slane %v722, %v1353
        %1359 = vmatprep.subr.mxu0 0.0
        %1360 = vmatpush1.msra.mxu0 0.0
        %1361 = vmatprep.subr.mxu0 0.0
        %1362 = vmatpush1.msra.mxu0 0.0
        %1363 = vmatprep.subr.mxu0 0.0
        %1364 = vmatpush1.msra.mxu0 0.0
        %1365 = vmatprep.subr.mxu0 0.0
        %1366 = vmatpush1.msra.mxu0 0.0
        %1367 = vmatprep.subr.mxu0 0.0
        %1368 = vmatpush1.msra.mxu0 0.0
        %1369 = vmatprep.subr.mxu0 0.0
        %1370 = vmatpush1.msra.mxu0 0.0
        %1371 = vmatprep.subr.mxu0 0.0
        %1372 = vmatpush1.msra.mxu0 0.0
        %1373 = vmatprep.subr.mxu0 0.0
        %1374 = vmatpush1.msra.mxu0 0.0
        %1375 = vmatprep.subr.mxu0 0.0
        %1376 = vmatpush1.msra.mxu0 0.0
        %1377 = vmatprep.subr.mxu0 0.0
        %1378 = vmatpush1.msra.mxu0 0.0
        %1379 = vmatprep.subr.mxu0 0.0
        %1380 = vmatpush1.msra.mxu0 0.0
        %1381 = vmatprep.subr.mxu0 0.0
        %1382 = vmatpush1.msra.mxu0 0.0
        %1383 = vmatprep.subr.mxu0 0.0
        %1384 = vmatpush1.msra.mxu0 %v694
        %1385 = vmatprep.subr.mxu0 0.0
        %1386 = vmatpush1.msra.mxu0 %v693
        %1387 = vmatprep.subr.mxu0 0.0
        %1388 = vmatpush1.msra.mxu0 %v692
        %1389 = vmatprep.subr.mxu0 0.0
        %1390 = vmatpush1.msra.mxu0 %v691
        %1391 = vmatprep.subr.mxu0 0.0
        %1392 = vmatpush2.msra.mxu0 0.0
        %1393 = vmatprep.subr.mxu0 0.0
        %1394 = vmatpush2.msra.mxu0 0.0
        %1395 = vmatprep.subr.mxu0 0.0
        %1396 = vmatpush2.msra.mxu0 0.0
        %1397 = vmatprep.subr.mxu0 0.0
        %1398 = vmatpush2.msra.mxu0 0.0
        %1399 = vmatprep.subr.mxu0 0.0
        %1400 = vmatpush2.msra.mxu0 0.0
        %1401 = vmatprep.subr.mxu0 0.0
        %1402 = vmatpush2.msra.mxu0 0.0
        %1403 = vmatprep.subr.mxu0 0.0
        %1404 = vmatpush2.msra.mxu0 0.0
        %1405 = vmatprep.subr.mxu0 0.0
        %1406 = vmatpush2.msra.mxu0 0.0
        %1407 = vmatprep.subr.mxu0 0.0
        %1408 = vmatpush2.msra.mxu0 0.0
        %1409 = vmatprep.subr.mxu0 0.0
        %1410 = vmatpush2.msra.mxu0 0.0
        %1411 = vmatprep.subr.mxu0 0.0
        %1412 = vmatpush2.msra.mxu0 0.0
        %1413 = vmatprep.subr.mxu0 0.0
        %1414 = vmatpush2.msra.mxu0 0.0
        %1415 = vmatprep.subr.mxu0 0.0
        %1416 = vmatpush2.msra.mxu0 0.0
        %1417 = vmatprep.subr.mxu0 0.0
        %1418 = vmatpush2.msra.mxu0 0.0
        %1419 = vmatprep.subr.mxu0 0.0
        %1420 = vmatpush2.msra.mxu0 0.0
        %1421 = vmatprep.subr.mxu0 0.0
        %1422 = vmatpush2.msra.mxu0 0.0
        %1423 = vmatprep.mubr.f32.mxu0 0.0
        %1424 = vmatmul.mubr.f32.gmra.mxu0 %v749
        %v1425 = vpop.f32.mrf.mxu0
        %v1426 = vadd.f32 %v1342, %v1425
        %v1427 = vpop.f32.mrf.mxu0
        %1428 = vdwg.mxu0
        %1429 = vmatprep.subr.mxu0 0.0
        %1430 = vmatpush1.msra.mxu0 0.0
        %1431 = vmatprep.subr.mxu0 0.0
        %1432 = vmatpush1.msra.mxu0 0.0
        %1433 = vmatprep.subr.mxu0 0.0
        %1434 = vmatpush1.msra.mxu0 0.0
        %1435 = vmatprep.subr.mxu0 0.0
        %1436 = vmatpush1.msra.mxu0 0.0
        %1437 = vmatprep.subr.mxu0 0.0
        %1438 = vmatpush1.msra.mxu0 0.0
        %1439 = vmatprep.subr.mxu0 0.0
        %1440 = vmatpush1.msra.mxu0 0.0
        %1441 = vmatprep.subr.mxu0 0.0
        %1442 = vmatpush1.msra.mxu0 0.0
        %1443 = vmatprep.subr.mxu0 0.0
        %1444 = vmatpush1.msra.mxu0 0.0
        %1445 = vmatprep.subr.mxu0 0.0
        %1446 = vmatpush1.msra.mxu0 0.0
        %1447 = vmatprep.subr.mxu0 0.0
        %1448 = vmatpush1.msra.mxu0 0.0
        %1449 = vmatprep.subr.mxu0 0.0
        %1450 = vmatpush1.msra.mxu0 0.0
        %1451 = vmatprep.subr.mxu0 0.0
        %1452 = vmatpush1.msra.mxu0 0.0
        %1453 = vmatprep.subr.mxu0 0.0
        %1454 = vmatpush1.msra.mxu0 %v698
        %1455 = vmatprep.subr.mxu0 0.0
        %1456 = vmatpush1.msra.mxu0 %v697
        %1457 = vmatprep.subr.mxu0 0.0
        %1458 = vmatpush1.msra.mxu0 %v696
        %1459 = vmatprep.subr.mxu0 0.0
        %1460 = vmatpush1.msra.mxu0 %v695
        %1461 = vmatprep.subr.mxu0 0.0
        %1462 = vmatpush2.msra.mxu0 0.0
        %1463 = vmatprep.subr.mxu0 0.0
        %1464 = vmatpush2.msra.mxu0 0.0
        %1465 = vmatprep.subr.mxu0 0.0
        %1466 = vmatpush2.msra.mxu0 0.0
        %1467 = vmatprep.subr.mxu0 0.0
        %1468 = vmatpush2.msra.mxu0 0.0
        %1469 = vmatprep.subr.mxu0 0.0
        %1470 = vmatpush2.msra.mxu0 0.0
        %1471 = vmatprep.subr.mxu0 0.0
        %1472 = vmatpush2.msra.mxu0 0.0
        %1473 = vmatprep.subr.mxu0 0.0
        %1474 = vmatpush2.msra.mxu0 0.0
        %1475 = vmatprep.subr.mxu0 0.0
        %1476 = vmatpush2.msra.mxu0 0.0
        %1477 = vmatprep.subr.mxu0 0.0
        %1478 = vmatpush2.msra.mxu0 0.0
        %1479 = vmatprep.subr.mxu0 0.0
        %1480 = vmatpush2.msra.mxu0 0.0
        %1481 = vmatprep.subr.mxu0 0.0
        %1482 = vmatpush2.msra.mxu0 0.0
        %1483 = vmatprep.subr.mxu0 0.0
        %1484 = vmatpush2.msra.mxu0 0.0
        %1485 = vmatprep.subr.mxu0 0.0
        %1486 = vmatpush2.msra.mxu0 0.0
        %1487 = vmatprep.subr.mxu0 0.0
        %1488 = vmatpush2.msra.mxu0 0.0
        %1489 = vmatprep.subr.mxu0 0.0
        %1490 = vmatpush2.msra.mxu0 0.0
        %1491 = vmatprep.subr.mxu0 0.0
        %1492 = vmatpush2.msra.mxu0 0.0
        %1493 = vmatprep.mubr.f32.mxu0 0.0
        %1494 = vmatmul.mubr.f32.gmra.mxu0 %v749
        %v1495 = vpop.f32.mrf.mxu0
        %v1496 = vadd.f32 %v1346, %v1495
        %v1497 = vpop.f32.mrf.mxu0
        %1498 = vdwg.mxu0
        %1499 = vmatprep.subr.mxu0 0.0
        %1500 = vmatpush1.msra.mxu0 0.0
        %1501 = vmatprep.subr.mxu0 0.0
        %1502 = vmatpush1.msra.mxu0 0.0
        %1503 = vmatprep.subr.mxu0 0.0
        %1504 = vmatpush1.msra.mxu0 0.0
        %1505 = vmatprep.subr.mxu0 0.0
        %1506 = vmatpush1.msra.mxu0 0.0
        %1507 = vmatprep.subr.mxu0 0.0
        %1508 = vmatpush1.msra.mxu0 0.0
        %1509 = vmatprep.subr.mxu0 0.0
        %1510 = vmatpush1.msra.mxu0 0.0
        %1511 = vmatprep.subr.mxu0 0.0
        %1512 = vmatpush1.msra.mxu0 0.0
        %1513 = vmatprep.subr.mxu0 0.0
        %1514 = vmatpush1.msra.mxu0 0.0
        %1515 = vmatprep.subr.mxu0 0.0
        %1516 = vmatpush1.msra.mxu0 0.0
        %1517 = vmatprep.subr.mxu0 0.0
        %1518 = vmatpush1.msra.mxu0 0.0
        %1519 = vmatprep.subr.mxu0 0.0
        %1520 = vmatpush1.msra.mxu0 0.0
        %1521 = vmatprep.subr.mxu0 0.0
        %1522 = vmatpush1.msra.mxu0 0.0
        %1523 = vmatprep.subr.mxu0 0.0
        %1524 = vmatpush1.msra.mxu0 %v702
        %1525 = vmatprep.subr.mxu0 0.0
        %1526 = vmatpush1.msra.mxu0 %v701
        %1527 = vmatprep.subr.mxu0 0.0
        %1528 = vmatpush1.msra.mxu0 %v700
        %1529 = vmatprep.subr.mxu0 0.0
        %1530 = vmatpush1.msra.mxu0 %v699
        %1531 = vmatprep.subr.mxu0 0.0
        %1532 = vmatpush2.msra.mxu0 0.0
        %1533 = vmatprep.subr.mxu0 0.0
        %1534 = vmatpush2.msra.mxu0 0.0
        %1535 = vmatprep.subr.mxu0 0.0
        %1536 = vmatpush2.msra.mxu0 0.0
        %1537 = vmatprep.subr.mxu0 0.0
        %1538 = vmatpush2.msra.mxu0 0.0
        %1539 = vmatprep.subr.mxu0 0.0
        %1540 = vmatpush2.msra.mxu0 0.0
        %1541 = vmatprep.subr.mxu0 0.0
        %1542 = vmatpush2.msra.mxu0 0.0
        %1543 = vmatprep.subr.mxu0 0.0
        %1544 = vmatpush2.msra.mxu0 0.0
        %1545 = vmatprep.subr.mxu0 0.0
        %1546 = vmatpush2.msra.mxu0 0.0
        %1547 = vmatprep.subr.mxu0 0.0
        %1548 = vmatpush2.msra.mxu0 0.0
        %1549 = vmatprep.subr.mxu0 0.0
        %1550 = vmatpush2.msra.mxu0 0.0
        %1551 = vmatprep.subr.mxu0 0.0
        %1552 = vmatpush2.msra.mxu0 0.0
        %1553 = vmatprep.subr.mxu0 0.0
        %1554 = vmatpush2.msra.mxu0 0.0
        %1555 = vmatprep.subr.mxu0 0.0
        %1556 = vmatpush2.msra.mxu0 0.0
        %1557 = vmatprep.subr.mxu0 0.0
        %1558 = vmatpush2.msra.mxu0 0.0
        %1559 = vmatprep.subr.mxu0 0.0
        %1560 = vmatpush2.msra.mxu0 0.0
        %1561 = vmatprep.subr.mxu0 0.0
        %1562 = vmatpush2.msra.mxu0 0.0
        %1563 = vmatprep.mubr.f32.mxu0 0.0
        %1564 = vmatmul.mubr.f32.gmra.mxu0 %v749
        %v1565 = vpop.f32.mrf.mxu0
        %v1566 = vadd.f32 %v1350, %v1565
        %v1567 = vpop.f32.mrf.mxu0
        %1568 = vdwg.mxu0
        %1569 = vmatprep.subr.mxu0 0.0
        %1570 = vmatpush1.msra.mxu0 0.0
        %1571 = vmatprep.subr.mxu0 0.0
        %1572 = vmatpush1.msra.mxu0 0.0
        %1573 = vmatprep.subr.mxu0 0.0
        %1574 = vmatpush1.msra.mxu0 0.0
        %1575 = vmatprep.subr.mxu0 0.0
        %1576 = vmatpush1.msra.mxu0 0.0
        %1577 = vmatprep.subr.mxu0 0.0
        %1578 = vmatpush1.msra.mxu0 0.0
        %1579 = vmatprep.subr.mxu0 0.0
        %1580 = vmatpush1.msra.mxu0 0.0
        %1581 = vmatprep.subr.mxu0 0.0
        %1582 = vmatpush1.msra.mxu0 0.0
        %1583 = vmatprep.subr.mxu0 0.0
        %1584 = vmatpush1.msra.mxu0 0.0
        %1585 = vmatprep.subr.mxu0 0.0
        %1586 = vmatpush1.msra.mxu0 0.0
        %1587 = vmatprep.subr.mxu0 0.0
        %1588 = vmatpush1.msra.mxu0 0.0
        %1589 = vmatprep.subr.mxu0 0.0
        %1590 = vmatpush1.msra.mxu0 0.0
        %1591 = vmatprep.subr.mxu0 0.0
        %1592 = vmatpush1.msra.mxu0 0.0
        %1593 = vmatprep.subr.mxu0 0.0
        %1594 = vmatpush1.msra.mxu0 %v706
        %1595 = vmatprep.subr.mxu0 0.0
        %1596 = vmatpush1.msra.mxu0 %v705
        %1597 = vmatprep.subr.mxu0 0.0
        %1598 = vmatpush1.msra.mxu0 %v704
        %1599 = vmatprep.subr.mxu0 0.0
        %1600 = vmatpush1.msra.mxu0 %v703
        %1601 = vmatprep.subr.mxu0 0.0
        %1602 = vmatpush2.msra.mxu0 0.0
        %1603 = vmatprep.subr.mxu0 0.0
        %1604 = vmatpush2.msra.mxu0 0.0
        %1605 = vmatprep.subr.mxu0 0.0
        %1606 = vmatpush2.msra.mxu0 0.0
        %1607 = vmatprep.subr.mxu0 0.0
        %1608 = vmatpush2.msra.mxu0 0.0
        %1609 = vmatprep.subr.mxu0 0.0
        %1610 = vmatpush2.msra.mxu0 0.0
        %1611 = vmatprep.subr.mxu0 0.0
        %1612 = vmatpush2.msra.mxu0 0.0
        %1613 = vmatprep.subr.mxu0 0.0
        %1614 = vmatpush2.msra.mxu0 0.0
        %1615 = vmatprep.subr.mxu0 0.0
        %1616 = vmatpush2.msra.mxu0 0.0
        %1617 = vmatprep.subr.mxu0 0.0
        %1618 = vmatpush2.msra.mxu0 0.0
        %1619 = vmatprep.subr.mxu0 0.0
        %1620 = vmatpush2.msra.mxu0 0.0
        %1621 = vmatprep.subr.mxu0 0.0
        %1622 = vmatpush2.msra.mxu0 0.0
        %1623 = vmatprep.subr.mxu0 0.0
        %1624 = vmatpush2.msra.mxu0 0.0
        %1625 = vmatprep.subr.mxu0 0.0
        %1626 = vmatpush2.msra.mxu0 0.0
        %1627 = vmatprep.subr.mxu0 0.0
        %1628 = vmatpush2.msra.mxu0 0.0
        %1629 = vmatprep.subr.mxu0 0.0
        %1630 = vmatpush2.msra.mxu0 0.0
        %1631 = vmatprep.subr.mxu0 0.0
        %1632 = vmatpush2.msra.mxu0 0.0
        %1633 = vmatprep.mubr.f32.mxu0 0.0
        %1634 = vmatmul.mubr.f32.gmra.mxu0 %v749
        %v1635 = vpop.f32.mrf.mxu0
        %v1636 = vadd.f32 %v1354, %v1635
        %v1637 = vpop.f32.mrf.mxu0
        %1638 = vdwg.mxu0
        %vm1639 = vcmask 64512
        %v1641 = vsel %vm1639, %v818, 0
        %v1644 = vsel %vm1639, %v1122, 0
        %1646 = vmatprep.subr.mxu0 0.0
        %1647 = vmatpush1.xpose.msra.mxu0 0.0
        %1648 = vmatprep.subr.mxu0 0.0
        %1649 = vmatpush1.xpose.msra.mxu0 0.0
        %1650 = vmatprep.subr.mxu0 0.0
        %1651 = vmatpush1.xpose.msra.mxu0 0.0
        %1652 = vmatprep.subr.mxu0 0.0
        %1653 = vmatpush1.xpose.msra.mxu0 0.0
        %1654 = vmatprep.subr.mxu0 0.0
        %1655 = vmatpush1.xpose.msra.mxu0 0.0
        %1656 = vmatprep.subr.mxu0 0.0
        %1657 = vmatpush1.xpose.msra.mxu0 0.0
        %1658 = vmatprep.subr.mxu0 0.0
        %1659 = vmatpush1.xpose.msra.mxu0 0.0
        %1660 = vmatprep.subr.mxu0 0.0
        %1661 = vmatpush1.xpose.msra.mxu0 0.0
        %1662 = vmatprep.subr.mxu0 0.0
        %1663 = vmatpush1.xpose.msra.mxu0 0.0
        %1664 = vmatprep.subr.mxu0 0.0
        %1665 = vmatpush1.xpose.msra.mxu0 0.0
        %1666 = vmatprep.subr.mxu0 0.0
        %1667 = vmatpush1.xpose.msra.mxu0 0.0
        %1668 = vmatprep.subr.mxu0 0.0
        %1669 = vmatpush1.xpose.msra.mxu0 0.0
        %1670 = vmatprep.subr.mxu0 0.0
        %1671 = vmatpush1.xpose.msra.mxu0 0.0
        %1672 = vmatprep.subr.mxu0 0.0
        %1673 = vmatpush1.xpose.msra.mxu0 0.0
        %1674 = vmatprep.subr.mxu0 0.0
        %1675 = vmatpush1.xpose.msra.mxu0 0.0
        %1676 = vmatprep.subr.mxu0 0.0
        %1677 = vmatpush1.xpose.msra.mxu0 %v1644
        %1678 = vmatprep.subr.mxu0 0.0
        %1679 = vmatpush2.xpose.msra.mxu0 0.0
        %1680 = vmatprep.subr.mxu0 0.0
        %1681 = vmatpush2.xpose.msra.mxu0 0.0
        %1682 = vmatprep.subr.mxu0 0.0
        %1683 = vmatpush2.xpose.msra.mxu0 0.0
        %1684 = vmatprep.subr.mxu0 0.0
        %1685 = vmatpush2.xpose.msra.mxu0 0.0
        %1686 = vmatprep.subr.mxu0 0.0
        %1687 = vmatpush2.xpose.msra.mxu0 0.0
        %1688 = vmatprep.subr.mxu0 0.0
        %1689 = vmatpush2.xpose.msra.mxu0 0.0
        %1690 = vmatprep.subr.mxu0 0.0
        %1691 = vmatpush2.xpose.msra.mxu0 0.0
        %1692 = vmatprep.subr.mxu0 0.0
        %1693 = vmatpush2.xpose.msra.mxu0 0.0
        %1694 = vmatprep.subr.mxu0 0.0
        %1695 = vmatpush2.xpose.msra.mxu0 0.0
        %1696 = vmatprep.subr.mxu0 0.0
        %1697 = vmatpush2.xpose.msra.mxu0 0.0
        %1698 = vmatprep.subr.mxu0 0.0
        %1699 = vmatpush2.xpose.msra.mxu0 0.0
        %1700 = vmatprep.subr.mxu0 0.0
        %1701 = vmatpush2.xpose.msra.mxu0 0.0
        %1702 = vmatprep.subr.mxu0 0.0
        %1703 = vmatpush2.xpose.msra.mxu0 0.0
        %1704 = vmatprep.subr.mxu0 0.0
        %1705 = vmatpush2.xpose.msra.mxu0 0.0
        %1706 = vmatprep.subr.mxu0 0.0
        %1707 = vmatpush2.xpose.msra.mxu0 0.0
        %1708 = vmatprep.subr.mxu0 0.0
        %1709 = vmatpush2.xpose.msra.mxu0 0.0
        %1710 = vmatprep.mubr.f32.mxu0 0.0
        %1711 = vmatmul.mubr.f32.gmra.mxu0 %v1641
        %v1712 = vpop.f32.mrf.mxu0
        %v1713 = vadd.f32 0.0, %v1712
        %v1714 = vpop.f32.mrf.mxu0
        %1715 = vdwg.mxu0
        %v1717 = vsel %vm1639, %v888, 0
        %v1720 = vsel %vm1639, %v1192, 0
        %1722 = vmatprep.subr.mxu0 0.0
        %1723 = vmatpush1.xpose.msra.mxu0 0.0
        %1724 = vmatprep.subr.mxu0 0.0
        %1725 = vmatpush1.xpose.msra.mxu0 0.0
        %1726 = vmatprep.subr.mxu0 0.0
        %1727 = vmatpush1.xpose.msra.mxu0 0.0
        %1728 = vmatprep.subr.mxu0 0.0
        %1729 = vmatpush1.xpose.msra.mxu0 0.0
        %1730 = vmatprep.subr.mxu0 0.0
        %1731 = vmatpush1.xpose.msra.mxu0 0.0
        %1732 = vmatprep.subr.mxu0 0.0
        %1733 = vmatpush1.xpose.msra.mxu0 0.0
        %1734 = vmatprep.subr.mxu0 0.0
        %1735 = vmatpush1.xpose.msra.mxu0 0.0
        %1736 = vmatprep.subr.mxu0 0.0
        %1737 = vmatpush1.xpose.msra.mxu0 0.0
        %1738 = vmatprep.subr.mxu0 0.0
        %1739 = vmatpush1.xpose.msra.mxu0 0.0
        %1740 = vmatprep.subr.mxu0 0.0
        %1741 = vmatpush1.xpose.msra.mxu0 0.0
        %1742 = vmatprep.subr.mxu0 0.0
        %1743 = vmatpush1.xpose.msra.mxu0 0.0
        %1744 = vmatprep.subr.mxu0 0.0
        %1745 = vmatpush1.xpose.msra.mxu0 0.0
        %1746 = vmatprep.subr.mxu0 0.0
        %1747 = vmatpush1.xpose.msra.mxu0 0.0
        %1748 = vmatprep.subr.mxu0 0.0
        %1749 = vmatpush1.xpose.msra.mxu0 0.0
        %1750 = vmatprep.subr.mxu0 0.0
        %1751 = vmatpush1.xpose.msra.mxu0 0.0
        %1752 = vmatprep.subr.mxu0 0.0
        %1753 = vmatpush1.xpose.msra.mxu0 %v1720
        %1754 = vmatprep.subr.mxu0 0.0
        %1755 = vmatpush2.xpose.msra.mxu0 0.0
        %1756 = vmatprep.subr.mxu0 0.0
        %1757 = vmatpush2.xpose.msra.mxu0 0.0
        %1758 = vmatprep.subr.mxu0 0.0
        %1759 = vmatpush2.xpose.msra.mxu0 0.0
        %1760 = vmatprep.subr.mxu0 0.0
        %1761 = vmatpush2.xpose.msra.mxu0 0.0
        %1762 = vmatprep.subr.mxu0 0.0
        %1763 = vmatpush2.xpose.msra.mxu0 0.0
        %1764 = vmatprep.subr.mxu0 0.0
        %1765 = vmatpush2.xpose.msra.mxu0 0.0
        %1766 = vmatprep.subr.mxu0 0.0
        %1767 = vmatpush2.xpose.msra.mxu0 0.0
        %1768 = vmatprep.subr.mxu0 0.0
        %1769 = vmatpush2.xpose.msra.mxu0 0.0
        %1770 = vmatprep.subr.mxu0 0.0
        %1771 = vmatpush2.xpose.msra.mxu0 0.0
        %1772 = vmatprep.subr.mxu0 0.0
        %1773 = vmatpush2.xpose.msra.mxu0 0.0
        %1774 = vmatprep.subr.mxu0 0.0
        %1775 = vmatpush2.xpose.msra.mxu0 0.0
        %1776 = vmatprep.subr.mxu0 0.0
        %1777 = vmatpush2.xpose.msra.mxu0 0.0
        %1778 = vmatprep.subr.mxu0 0.0
        %1779 = vmatpush2.xpose.msra.mxu0 0.0
        %1780 = vmatprep.subr.mxu0 0.0
        %1781 = vmatpush2.xpose.msra.mxu0 0.0
        %1782 = vmatprep.subr.mxu0 0.0
        %1783 = vmatpush2.xpose.msra.mxu0 0.0
        %1784 = vmatprep.subr.mxu0 0.0
        %1785 = vmatpush2.xpose.msra.mxu0 0.0
        %1786 = vmatprep.mubr.f32.mxu0 0.0
        %1787 = vmatmul.mubr.f32.gmra.mxu0 %v1717
        %v1788 = vpop.f32.mrf.mxu0
        %v1789 = vadd.f32 0.0, %v1788
        %v1790 = vpop.f32.mrf.mxu0
        %1791 = vdwg.mxu0
        %v1793 = vsel %vm1639, %v958, 0
        %v1796 = vsel %vm1639, %v1262, 0
        %1798 = vmatprep.subr.mxu0 0.0
        %1799 = vmatpush1.xpose.msra.mxu0 0.0
        %1800 = vmatprep.subr.mxu0 0.0
        %1801 = vmatpush1.xpose.msra.mxu0 0.0
        %1802 = vmatprep.subr.mxu0 0.0
        %1803 = vmatpush1.xpose.msra.mxu0 0.0
        %1804 = vmatprep.subr.mxu0 0.0
        %1805 = vmatpush1.xpose.msra.mxu0 0.0
        %1806 = vmatprep.subr.mxu0 0.0
        %1807 = vmatpush1.xpose.msra.mxu0 0.0
        %1808 = vmatprep.subr.mxu0 0.0
        %1809 = vmatpush1.xpose.msra.mxu0 0.0
        %1810 = vmatprep.subr.mxu0 0.0
        %1811 = vmatpush1.xpose.msra.mxu0 0.0
        %1812 = vmatprep.subr.mxu0 0.0
        %1813 = vmatpush1.xpose.msra.mxu0 0.0
        %1814 = vmatprep.subr.mxu0 0.0
        %1815 = vmatpush1.xpose.msra.mxu0 0.0
        %1816 = vmatprep.subr.mxu0 0.0
        %1817 = vmatpush1.xpose.msra.mxu0 0.0
        %1818 = vmatprep.subr.mxu0 0.0
        %1819 = vmatpush1.xpose.msra.mxu0 0.0
        %1820 = vmatprep.subr.mxu0 0.0
        %1821 = vmatpush1.xpose.msra.mxu0 0.0
        %1822 = vmatprep.subr.mxu0 0.0
        %1823 = vmatpush1.xpose.msra.mxu0 0.0
        %1824 = vmatprep.subr.mxu0 0.0
        %1825 = vmatpush1.xpose.msra.mxu0 0.0
        %1826 = vmatprep.subr.mxu0 0.0
        %1827 = vmatpush1.xpose.msra.mxu0 0.0
        %1828 = vmatprep.subr.mxu0 0.0
        %1829 = vmatpush1.xpose.msra.mxu0 %v1796
        %1830 = vmatprep.subr.mxu0 0.0
        %1831 = vmatpush2.xpose.msra.mxu0 0.0
        %1832 = vmatprep.subr.mxu0 0.0
        %1833 = vmatpush2.xpose.msra.mxu0 0.0
        %1834 = vmatprep.subr.mxu0 0.0
        %1835 = vmatpush2.xpose.msra.mxu0 0.0
        %1836 = vmatprep.subr.mxu0 0.0
        %1837 = vmatpush2.xpose.msra.mxu0 0.0
        %1838 = vmatprep.subr.mxu0 0.0
        %1839 = vmatpush2.xpose.msra.mxu0 0.0
        %1840 = vmatprep.subr.mxu0 0.0
        %1841 = vmatpush2.xpose.msra.mxu0 0.0
        %1842 = vmatprep.subr.mxu0 0.0
        %1843 = vmatpush2.xpose.msra.mxu0 0.0
        %1844 = vmatprep.subr.mxu0 0.0
        %1845 = vmatpush2.xpose.msra.mxu0 0.0
        %1846 = vmatprep.subr.mxu0 0.0
        %1847 = vmatpush2.xpose.msra.mxu0 0.0
        %1848 = vmatprep.subr.mxu0 0.0
        %1849 = vmatpush2.xpose.msra.mxu0 0.0
        %1850 = vmatprep.subr.mxu0 0.0
        %1851 = vmatpush2.xpose.msra.mxu0 0.0
        %1852 = vmatprep.subr.mxu0 0.0
        %1853 = vmatpush2.xpose.msra.mxu0 0.0
        %1854 = vmatprep.subr.mxu0 0.0
        %1855 = vmatpush2.xpose.msra.mxu0 0.0
        %1856 = vmatprep.subr.mxu0 0.0
        %1857 = vmatpush2.xpose.msra.mxu0 0.0
        %1858 = vmatprep.subr.mxu0 0.0
        %1859 = vmatpush2.xpose.msra.mxu0 0.0
        %1860 = vmatprep.subr.mxu0 0.0
        %1861 = vmatpush2.xpose.msra.mxu0 0.0
        %1862 = vmatprep.mubr.f32.mxu0 0.0
        %1863 = vmatmul.mubr.f32.gmra.mxu0 %v1793
        %v1864 = vpop.f32.mrf.mxu0
        %v1865 = vadd.f32 0.0, %v1864
        %v1866 = vpop.f32.mrf.mxu0
        %1867 = vdwg.mxu0
        %v1869 = vsel %vm1639, %v1028, 0
        %v1872 = vsel %vm1639, %v1332, 0
        %1874 = vmatprep.subr.mxu0 0.0
        %1875 = vmatpush1.xpose.msra.mxu0 0.0
        %1876 = vmatprep.subr.mxu0 0.0
        %1877 = vmatpush1.xpose.msra.mxu0 0.0
        %1878 = vmatprep.subr.mxu0 0.0
        %1879 = vmatpush1.xpose.msra.mxu0 0.0
        %1880 = vmatprep.subr.mxu0 0.0
        %1881 = vmatpush1.xpose.msra.mxu0 0.0
        %1882 = vmatprep.subr.mxu0 0.0
        %1883 = vmatpush1.xpose.msra.mxu0 0.0
        %1884 = vmatprep.subr.mxu0 0.0
        %1885 = vmatpush1.xpose.msra.mxu0 0.0
        %1886 = vmatprep.subr.mxu0 0.0
        %1887 = vmatpush1.xpose.msra.mxu0 0.0
        %1888 = vmatprep.subr.mxu0 0.0
        %1889 = vmatpush1.xpose.msra.mxu0 0.0
        %1890 = vmatprep.subr.mxu0 0.0
        %1891 = vmatpush1.xpose.msra.mxu0 0.0
        %1892 = vmatprep.subr.mxu0 0.0
        %1893 = vmatpush1.xpose.msra.mxu0 0.0
        %1894 = vmatprep.subr.mxu0 0.0
        %1895 = vmatpush1.xpose.msra.mxu0 0.0
        %1896 = vmatprep.subr.mxu0 0.0
        %1897 = vmatpush1.xpose.msra.mxu0 0.0
        %1898 = vmatprep.subr.mxu0 0.0
        %1899 = vmatpush1.xpose.msra.mxu0 0.0
        %1900 = vmatprep.subr.mxu0 0.0
        %1901 = vmatpush1.xpose.msra.mxu0 0.0
        %1902 = vmatprep.subr.mxu0 0.0
        %1903 = vmatpush1.xpose.msra.mxu0 0.0
        %1904 = vmatprep.subr.mxu0 0.0
        %1905 = vmatpush1.xpose.msra.mxu0 %v1872
        %1906 = vmatprep.subr.mxu0 0.0
        %1907 = vmatpush2.xpose.msra.mxu0 0.0
        %1908 = vmatprep.subr.mxu0 0.0
        %1909 = vmatpush2.xpose.msra.mxu0 0.0
        %1910 = vmatprep.subr.mxu0 0.0
        %1911 = vmatpush2.xpose.msra.mxu0 0.0
        %1912 = vmatprep.subr.mxu0 0.0
        %1913 = vmatpush2.xpose.msra.mxu0 0.0
        %1914 = vmatprep.subr.mxu0 0.0
        %1915 = vmatpush2.xpose.msra.mxu0 0.0
        %1916 = vmatprep.subr.mxu0 0.0
        %1917 = vmatpush2.xpose.msra.mxu0 0.0
        %1918 = vmatprep.subr.mxu0 0.0
        %1919 = vmatpush2.xpose.msra.mxu0 0.0
        %1920 = vmatprep.subr.mxu0 0.0
        %1921 = vmatpush2.xpose.msra.mxu0 0.0
        %1922 = vmatprep.subr.mxu0 0.0
        %1923 = vmatpush2.xpose.msra.mxu0 0.0
        %1924 = vmatprep.subr.mxu0 0.0
        %1925 = vmatpush2.xpose.msra.mxu0 0.0
        %1926 = vmatprep.subr.mxu0 0.0
        %1927 = vmatpush2.xpose.msra.mxu0 0.0
        %1928 = vmatprep.subr.mxu0 0.0
        %1929 = vmatpush2.xpose.msra.mxu0 0.0
        %1930 = vmatprep.subr.mxu0 0.0
        %1931 = vmatpush2.xpose.msra.mxu0 0.0
        %1932 = vmatprep.subr.mxu0 0.0
        %1933 = vmatpush2.xpose.msra.mxu0 0.0
        %1934 = vmatprep.subr.mxu0 0.0
        %1935 = vmatpush2.xpose.msra.mxu0 0.0
        %1936 = vmatprep.subr.mxu0 0.0
        %1937 = vmatpush2.xpose.msra.mxu0 0.0
        %1938 = vmatprep.mubr.f32.mxu0 0.0
        %1939 = vmatmul.mubr.f32.gmra.mxu0 %v1869
        %v1940 = vpop.f32.mrf.mxu0
        %v1941 = vadd.f32 0.0, %v1940
        %v1942 = vpop.f32.mrf.mxu0
        %1943 = vdwg.mxu0
        %v1944 = vmul.f32 %v1713, 0.35355338
        %v1945 = vmul.f32 %v1789, 0.35355338
        %v1946 = vmul.f32 %v1865, 0.35355338
        %v1947 = vmul.f32 %v1941, 0.35355338
        %v1948 = vsel %vm1639, %v1944, -inf
        %1949 = vmax.xlane.f32.xlu0 %v1948
        %v1950 = vpop.xlane.xlu0 %1949
        %v1951 = vsel %vm1639, %v1945, -inf
        %1952 = vmax.xlane.f32.xlu0 %v1951
        %v1953 = vpop.xlane.xlu0 %1952
        %v1954 = vsel %vm1639, %v1946, -inf
        %1955 = vmax.xlane.f32.xlu0 %v1954
        %v1956 = vpop.xlane.xlu0 %1955
        %v1957 = vsel %vm1639, %v1947, -inf
        %1958 = vmax.xlane.f32.xlu0 %v1957
        %v1959 = vpop.xlane.xlu0 %1958
        %v1960 = vsub.f32 %v1944, %v1950
        %v1961 = vsub.f32 %v1945, %v1953
        %v1962 = vsub.f32 %v1946, %v1956
        %v1963 = vsub.f32 %v1947, %v1959
        %v1964 = vmul.f32 %v1960, 1.442695
        %v1965 = vpow.pop %v1964
        %v1966 = vmul.f32 %v1961, 1.442695
        %v1967 = vpow.pop %v1966
        %v1968 = vmul.f32 %v1962, 1.442695
        %v1969 = vpow.pop %v1968
        %v1970 = vmul.f32 %v1963, 1.442695
        %v1971 = vpow.pop %v1970
        %v1972 = vsel %vm1639, %v1965, 0.0
        %1973 = vadd.xlane.f32.xlu0 %v1972
        %v1974 = vpop.xlane.xlu0 %1973
        %v1975 = vsel %vm1639, %v1967, 0.0
        %1976 = vadd.xlane.f32.xlu0 %v1975
        %v1977 = vpop.xlane.xlu0 %1976
        %v1978 = vsel %vm1639, %v1969, 0.0
        %1979 = vadd.xlane.f32.xlu0 %v1978
        %v1980 = vpop.xlane.xlu0 %1979
        %v1981 = vsel %vm1639, %v1971, 0.0
        %1982 = vadd.xlane.f32.xlu0 %v1981
        %v1983 = vpop.xlane.xlu0 %1982
        %v1984 = vrcp.pop %v1974
        %v1985 = vrcp.pop %v1977
        %v1986 = vrcp.pop %v1980
        %v1987 = vrcp.pop %v1983
        %v1988 = vmul.f32 %v1965, %v1984
        %v1989 = vmul.f32 %v1967, %v1985
        %v1990 = vmul.f32 %v1969, %v1986
        %v1991 = vmul.f32 %v1971, %v1987
        %v1993 = vsel %vm1639, %v1988, 0
        %1995 = vmatprep.subr.mxu0 0.0
        %1996 = vmatpush1.msra.mxu0 0.0
        %1997 = vmatprep.subr.mxu0 0.0
        %1998 = vmatpush1.msra.mxu0 0.0
        %1999 = vmatprep.subr.mxu0 0.0
        %2000 = vmatpush1.msra.mxu0 0.0
        %2001 = vmatprep.subr.mxu0 0.0
        %2002 = vmatpush1.msra.mxu0 0.0
        %2003 = vmatprep.subr.mxu0 0.0
        %2004 = vmatpush1.msra.mxu0 0.0
        %2005 = vmatprep.subr.mxu0 0.0
        %2006 = vmatpush1.msra.mxu0 0.0
        %2007 = vmatprep.subr.mxu0 0.0
        %2008 = vmatpush1.msra.mxu0 0.0
        %2009 = vmatprep.subr.mxu0 0.0
        %2010 = vmatpush1.msra.mxu0 0.0
        %2011 = vmatprep.subr.mxu0 0.0
        %2012 = vmatpush1.msra.mxu0 0.0
        %2013 = vmatprep.subr.mxu0 0.0
        %2014 = vmatpush1.msra.mxu0 0.0
        %2015 = vmatprep.subr.mxu0 0.0
        %2016 = vmatpush1.msra.mxu0 0.0
        %2017 = vmatprep.subr.mxu0 0.0
        %2018 = vmatpush1.msra.mxu0 0.0
        %2019 = vmatprep.subr.mxu0 0.0
        %2020 = vmatpush1.msra.mxu0 0.0
        %2021 = vmatprep.subr.mxu0 0.0
        %2022 = vmatpush1.msra.mxu0 0.0
        %2023 = vmatprep.subr.mxu0 0.0
        %2024 = vmatpush1.msra.mxu0 0.0
        %2025 = vmatprep.subr.mxu0 0.0
        %2026 = vmatpush1.msra.mxu0 %v1426
        %2027 = vmatprep.subr.mxu0 0.0
        %2028 = vmatpush2.msra.mxu0 0.0
        %2029 = vmatprep.subr.mxu0 0.0
        %2030 = vmatpush2.msra.mxu0 0.0
        %2031 = vmatprep.subr.mxu0 0.0
        %2032 = vmatpush2.msra.mxu0 0.0
        %2033 = vmatprep.subr.mxu0 0.0
        %2034 = vmatpush2.msra.mxu0 0.0
        %2035 = vmatprep.subr.mxu0 0.0
        %2036 = vmatpush2.msra.mxu0 0.0
        %2037 = vmatprep.subr.mxu0 0.0
        %2038 = vmatpush2.msra.mxu0 0.0
        %2039 = vmatprep.subr.mxu0 0.0
        %2040 = vmatpush2.msra.mxu0 0.0
        %2041 = vmatprep.subr.mxu0 0.0
        %2042 = vmatpush2.msra.mxu0 0.0
        %2043 = vmatprep.subr.mxu0 0.0
        %2044 = vmatpush2.msra.mxu0 0.0
        %2045 = vmatprep.subr.mxu0 0.0
        %2046 = vmatpush2.msra.mxu0 0.0
        %2047 = vmatprep.subr.mxu0 0.0
        %2048 = vmatpush2.msra.mxu0 0.0
        %2049 = vmatprep.subr.mxu0 0.0
        %2050 = vmatpush2.msra.mxu0 0.0
        %2051 = vmatprep.subr.mxu0 0.0
        %2052 = vmatpush2.msra.mxu0 0.0
        %2053 = vmatprep.subr.mxu0 0.0
        %2054 = vmatpush2.msra.mxu0 0.0
        %2055 = vmatprep.subr.mxu0 0.0
        %2056 = vmatpush2.msra.mxu0 0.0
        %2057 = vmatprep.subr.mxu0 0.0
        %2058 = vmatpush2.msra.mxu0 0.0
        %2059 = vmatprep.mubr.f32.mxu0 0.0
        %2060 = vmatmul.mubr.f32.gmra.mxu0 %v1993
        %v2061 = vpop.f32.mrf.mxu0
        %v2062 = vadd.f32 0.0, %v2061
        %v2063 = vpop.f32.mrf.mxu0
        %2064 = vdwg.mxu0
        %v2066 = vsel %vm1639, %v1989, 0
        %2068 = vmatprep.subr.mxu0 0.0
        %2069 = vmatpush1.msra.mxu0 0.0
        %2070 = vmatprep.subr.mxu0 0.0
        %2071 = vmatpush1.msra.mxu0 0.0
        %2072 = vmatprep.subr.mxu0 0.0
        %2073 = vmatpush1.msra.mxu0 0.0
        %2074 = vmatprep.subr.mxu0 0.0
        %2075 = vmatpush1.msra.mxu0 0.0
        %2076 = vmatprep.subr.mxu0 0.0
        %2077 = vmatpush1.msra.mxu0 0.0
        %2078 = vmatprep.subr.mxu0 0.0
        %2079 = vmatpush1.msra.mxu0 0.0
        %2080 = vmatprep.subr.mxu0 0.0
        %2081 = vmatpush1.msra.mxu0 0.0
        %2082 = vmatprep.subr.mxu0 0.0
        %2083 = vmatpush1.msra.mxu0 0.0
        %2084 = vmatprep.subr.mxu0 0.0
        %2085 = vmatpush1.msra.mxu0 0.0
        %2086 = vmatprep.subr.mxu0 0.0
        %2087 = vmatpush1.msra.mxu0 0.0
        %2088 = vmatprep.subr.mxu0 0.0
        %2089 = vmatpush1.msra.mxu0 0.0
        %2090 = vmatprep.subr.mxu0 0.0
        %2091 = vmatpush1.msra.mxu0 0.0
        %2092 = vmatprep.subr.mxu0 0.0
        %2093 = vmatpush1.msra.mxu0 0.0
        %2094 = vmatprep.subr.mxu0 0.0
        %2095 = vmatpush1.msra.mxu0 0.0
        %2096 = vmatprep.subr.mxu0 0.0
        %2097 = vmatpush1.msra.mxu0 0.0
        %2098 = vmatprep.subr.mxu0 0.0
        %2099 = vmatpush1.msra.mxu0 %v1496
        %2100 = vmatprep.subr.mxu0 0.0
        %2101 = vmatpush2.msra.mxu0 0.0
        %2102 = vmatprep.subr.mxu0 0.0
        %2103 = vmatpush2.msra.mxu0 0.0
        %2104 = vmatprep.subr.mxu0 0.0
        %2105 = vmatpush2.msra.mxu0 0.0
        %2106 = vmatprep.subr.mxu0 0.0
        %2107 = vmatpush2.msra.mxu0 0.0
        %2108 = vmatprep.subr.mxu0 0.0
        %2109 = vmatpush2.msra.mxu0 0.0
        %2110 = vmatprep.subr.mxu0 0.0
        %2111 = vmatpush2.msra.mxu0 0.0
        %2112 = vmatprep.subr.mxu0 0.0
        %2113 = vmatpush2.msra.mxu0 0.0
        %2114 = vmatprep.subr.mxu0 0.0
        %2115 = vmatpush2.msra.mxu0 0.0
        %2116 = vmatprep.subr.mxu0 0.0
        %2117 = vmatpush2.msra.mxu0 0.0
        %2118 = vmatprep.subr.mxu0 0.0
        %2119 = vmatpush2.msra.mxu0 0.0
        %2120 = vmatprep.subr.mxu0 0.0
        %2121 = vmatpush2.msra.mxu0 0.0
        %2122 = vmatprep.subr.mxu0 0.0
        %2123 = vmatpush2.msra.mxu0 0.0
        %2124 = vmatprep.subr.mxu0 0.0
        %2125 = vmatpush2.msra.mxu0 0.0
        %2126 = vmatprep.subr.mxu0 0.0
        %2127 = vmatpush2.msra.mxu0 0.0
        %2128 = vmatprep.subr.mxu0 0.0
        %2129 = vmatpush2.msra.mxu0 0.0
        %2130 = vmatprep.subr.mxu0 0.0
        %2131 = vmatpush2.msra.mxu0 0.0
        %2132 = vmatprep.mubr.f32.mxu0 0.0
        %2133 = vmatmul.mubr.f32.gmra.mxu0 %v2066
        %v2134 = vpop.f32.mrf.mxu0
        %v2135 = vadd.f32 0.0, %v2134
        %v2136 = vpop.f32.mrf.mxu0
        %2137 = vdwg.mxu0
        %v2139 = vsel %vm1639, %v1990, 0
        %2141 = vmatprep.subr.mxu0 0.0
        %2142 = vmatpush1.msra.mxu0 0.0
        %2143 = vmatprep.subr.mxu0 0.0
        %2144 = vmatpush1.msra.mxu0 0.0
        %2145 = vmatprep.subr.mxu0 0.0
        %2146 = vmatpush1.msra.mxu0 0.0
        %2147 = vmatprep.subr.mxu0 0.0
        %2148 = vmatpush1.msra.mxu0 0.0
        %2149 = vmatprep.subr.mxu0 0.0
        %2150 = vmatpush1.msra.mxu0 0.0
        %2151 = vmatprep.subr.mxu0 0.0
        %2152 = vmatpush1.msra.mxu0 0.0
        %2153 = vmatprep.subr.mxu0 0.0
        %2154 = vmatpush1.msra.mxu0 0.0
        %2155 = vmatprep.subr.mxu0 0.0
        %2156 = vmatpush1.msra.mxu0 0.0
        %2157 = vmatprep.subr.mxu0 0.0
        %2158 = vmatpush1.msra.mxu0 0.0
        %2159 = vmatprep.subr.mxu0 0.0
        %2160 = vmatpush1.msra.mxu0 0.0
        %2161 = vmatprep.subr.mxu0 0.0
        %2162 = vmatpush1.msra.mxu0 0.0
        %2163 = vmatprep.subr.mxu0 0.0
        %2164 = vmatpush1.msra.mxu0 0.0
        %2165 = vmatprep.subr.mxu0 0.0
        %2166 = vmatpush1.msra.mxu0 0.0
        %2167 = vmatprep.subr.mxu0 0.0
        %2168 = vmatpush1.msra.mxu0 0.0
        %2169 = vmatprep.subr.mxu0 0.0
        %2170 = vmatpush1.msra.mxu0 0.0
        %2171 = vmatprep.subr.mxu0 0.0
        %2172 = vmatpush1.msra.mxu0 %v1566
        %2173 = vmatprep.subr.mxu0 0.0
        %2174 = vmatpush2.msra.mxu0 0.0
        %2175 = vmatprep.subr.mxu0 0.0
        %2176 = vmatpush2.msra.mxu0 0.0
        %2177 = vmatprep.subr.mxu0 0.0
        %2178 = vmatpush2.msra.mxu0 0.0
        %2179 = vmatprep.subr.mxu0 0.0
        %2180 = vmatpush2.msra.mxu0 0.0
        %2181 = vmatprep.subr.mxu0 0.0
        %2182 = vmatpush2.msra.mxu0 0.0
        %2183 = vmatprep.subr.mxu0 0.0
        %2184 = vmatpush2.msra.mxu0 0.0
        %2185 = vmatprep.subr.mxu0 0.0
        %2186 = vmatpush2.msra.mxu0 0.0
        %2187 = vmatprep.subr.mxu0 0.0
        %2188 = vmatpush2.msra.mxu0 0.0
        %2189 = vmatprep.subr.mxu0 0.0
        %2190 = vmatpush2.msra.mxu0 0.0
        %2191 = vmatprep.subr.mxu0 0.0
        %2192 = vmatpush2.msra.mxu0 0.0
        %2193 = vmatprep.subr.mxu0 0.0
        %2194 = vmatpush2.msra.mxu0 0.0
        %2195 = vmatprep.subr.mxu0 0.0
        %2196 = vmatpush2.msra.mxu0 0.0
        %2197 = vmatprep.subr.mxu0 0.0
        %2198 = vmatpush2.msra.mxu0 0.0
        %2199 = vmatprep.subr.mxu0 0.0
        %2200 = vmatpush2.msra.mxu0 0.0
        %2201 = vmatprep.subr.mxu0 0.0
        %2202 = vmatpush2.msra.mxu0 0.0
        %2203 = vmatprep.subr.mxu0 0.0
        %2204 = vmatpush2.msra.mxu0 0.0
        %2205 = vmatprep.mubr.f32.mxu0 0.0
        %2206 = vmatmul.mubr.f32.gmra.mxu0 %v2139
        %v2207 = vpop.f32.mrf.mxu0
        %v2208 = vadd.f32 0.0, %v2207
        %v2209 = vpop.f32.mrf.mxu0
        %2210 = vdwg.mxu0
        %v2212 = vsel %vm1639, %v1991, 0
        %2214 = vmatprep.subr.mxu0 0.0
        %2215 = vmatpush1.msra.mxu0 0.0
        %2216 = vmatprep.subr.mxu0 0.0
        %2217 = vmatpush1.msra.mxu0 0.0
        %2218 = vmatprep.subr.mxu0 0.0
        %2219 = vmatpush1.msra.mxu0 0.0
        %2220 = vmatprep.subr.mxu0 0.0
        %2221 = vmatpush1.msra.mxu0 0.0
        %2222 = vmatprep.subr.mxu0 0.0
        %2223 = vmatpush1.msra.mxu0 0.0
        %2224 = vmatprep.subr.mxu0 0.0
        %2225 = vmatpush1.msra.mxu0 0.0
        %2226 = vmatprep.subr.mxu0 0.0
        %2227 = vmatpush1.msra.mxu0 0.0
        %2228 = vmatprep.subr.mxu0 0.0
        %2229 = vmatpush1.msra.mxu0 0.0
        %2230 = vmatprep.subr.mxu0 0.0
        %2231 = vmatpush1.msra.mxu0 0.0
        %2232 = vmatprep.subr.mxu0 0.0
        %2233 = vmatpush1.msra.mxu0 0.0
        %2234 = vmatprep.subr.mxu0 0.0
        %2235 = vmatpush1.msra.mxu0 0.0
        %2236 = vmatprep.subr.mxu0 0.0
        %2237 = vmatpush1.msra.mxu0 0.0
        %2238 = vmatprep.subr.mxu0 0.0
        %2239 = vmatpush1.msra.mxu0 0.0
        %2240 = vmatprep.subr.mxu0 0.0
        %2241 = vmatpush1.msra.mxu0 0.0
        %2242 = vmatprep.subr.mxu0 0.0
        %2243 = vmatpush1.msra.mxu0 0.0
        %2244 = vmatprep.subr.mxu0 0.0
        %2245 = vmatpush1.msra.mxu0 %v1636
        %2246 = vmatprep.subr.mxu0 0.0
        %2247 = vmatpush2.msra.mxu0 0.0
        %2248 = vmatprep.subr.mxu0 0.0
        %2249 = vmatpush2.msra.mxu0 0.0
        %2250 = vmatprep.subr.mxu0 0.0
        %2251 = vmatpush2.msra.mxu0 0.0
        %2252 = vmatprep.subr.mxu0 0.0
        %2253 = vmatpush2.msra.mxu0 0.0
        %2254 = vmatprep.subr.mxu0 0.0
        %2255 = vmatpush2.msra.mxu0 0.0
        %2256 = vmatprep.subr.mxu0 0.0
        %2257 = vmatpush2.msra.mxu0 0.0
        %2258 = vmatprep.subr.mxu0 0.0
        %2259 = vmatpush2.msra.mxu0 0.0
        %2260 = vmatprep.subr.mxu0 0.0
        %2261 = vmatpush2.msra.mxu0 0.0
        %2262 = vmatprep.subr.mxu0 0.0
        %2263 = vmatpush2.msra.mxu0 0.0
        %2264 = vmatprep.subr.mxu0 0.0
        %2265 = vmatpush2.msra.mxu0 0.0
        %2266 = vmatprep.subr.mxu0 0.0
        %2267 = vmatpush2.msra.mxu0 0.0
        %2268 = vmatprep.subr.mxu0 0.0
        %2269 = vmatpush2.msra.mxu0 0.0
        %2270 = vmatprep.subr.mxu0 0.0
        %2271 = vmatpush2.msra.mxu0 0.0
        %2272 = vmatprep.subr.mxu0 0.0
        %2273 = vmatpush2.msra.mxu0 0.0
        %2274 = vmatprep.subr.mxu0 0.0
        %2275 = vmatpush2.msra.mxu0 0.0
        %2276 = vmatprep.subr.mxu0 0.0
        %2277 = vmatpush2.msra.mxu0 0.0
        %2278 = vmatprep.mubr.f32.mxu0 0.0
        %2279 = vmatmul.mubr.f32.gmra.mxu0 %v2212
        %v2280 = vpop.f32.mrf.mxu0
        %v2281 = vadd.f32 0.0, %v2280
        %v2282 = vpop.f32.mrf.mxu0
        %2283 = vdwg.mxu0
        %v2285 = vsel %vm1639, %v2062, 0
        %2287 = vmatprep.subr.mxu0 0.0
        %2288 = vmatpush1.msra.mxu0 0.0
        %2289 = vmatprep.subr.mxu0 0.0
        %2290 = vmatpush1.msra.mxu0 0.0
        %2291 = vmatprep.subr.mxu0 0.0
        %2292 = vmatpush1.msra.mxu0 0.0
        %2293 = vmatprep.subr.mxu0 0.0
        %2294 = vmatpush1.msra.mxu0 0.0
        %2295 = vmatprep.subr.mxu0 0.0
        %2296 = vmatpush1.msra.mxu0 0.0
        %2297 = vmatprep.subr.mxu0 0.0
        %2298 = vmatpush1.msra.mxu0 0.0
        %2299 = vmatprep.subr.mxu0 0.0
        %2300 = vmatpush1.msra.mxu0 0.0
        %2301 = vmatprep.subr.mxu0 0.0
        %2302 = vmatpush1.msra.mxu0 0.0
        %2303 = vmatprep.subr.mxu0 0.0
        %2304 = vmatpush1.msra.mxu0 0.0
        %2305 = vmatprep.subr.mxu0 0.0
        %2306 = vmatpush1.msra.mxu0 0.0
        %2307 = vmatprep.subr.mxu0 0.0
        %2308 = vmatpush1.msra.mxu0 0.0
        %2309 = vmatprep.subr.mxu0 0.0
        %2310 = vmatpush1.msra.mxu0 0.0
        %2311 = vmatprep.subr.mxu0 0.0
        %2312 = vmatpush1.msra.mxu0 0.0
        %2313 = vmatprep.subr.mxu0 0.0
        %2314 = vmatpush1.msra.mxu0 0.0
        %2315 = vmatprep.subr.mxu0 0.0
        %2316 = vmatpush1.msra.mxu0 0.0
        %2317 = vmatprep.subr.mxu0 0.0
        %2318 = vmatpush1.msra.mxu0 %v707
        %2319 = vmatprep.subr.mxu0 0.0
        %2320 = vmatpush2.msra.mxu0 0.0
        %2321 = vmatprep.subr.mxu0 0.0
        %2322 = vmatpush2.msra.mxu0 0.0
        %2323 = vmatprep.subr.mxu0 0.0
        %2324 = vmatpush2.msra.mxu0 0.0
        %2325 = vmatprep.subr.mxu0 0.0
        %2326 = vmatpush2.msra.mxu0 0.0
        %2327 = vmatprep.subr.mxu0 0.0
        %2328 = vmatpush2.msra.mxu0 0.0
        %2329 = vmatprep.subr.mxu0 0.0
        %2330 = vmatpush2.msra.mxu0 0.0
        %2331 = vmatprep.subr.mxu0 0.0
        %2332 = vmatpush2.msra.mxu0 0.0
        %2333 = vmatprep.subr.mxu0 0.0
        %2334 = vmatpush2.msra.mxu0 0.0
        %2335 = vmatprep.subr.mxu0 0.0
        %2336 = vmatpush2.msra.mxu0 0.0
        %2337 = vmatprep.subr.mxu0 0.0
        %2338 = vmatpush2.msra.mxu0 0.0
        %2339 = vmatprep.subr.mxu0 0.0
        %2340 = vmatpush2.msra.mxu0 0.0
        %2341 = vmatprep.subr.mxu0 0.0
        %2342 = vmatpush2.msra.mxu0 0.0
        %2343 = vmatprep.subr.mxu0 0.0
        %2344 = vmatpush2.msra.mxu0 0.0
        %2345 = vmatprep.subr.mxu0 0.0
        %2346 = vmatpush2.msra.mxu0 0.0
        %2347 = vmatprep.subr.mxu0 0.0
        %2348 = vmatpush2.msra.mxu0 0.0
        %2349 = vmatprep.subr.mxu0 0.0
        %2350 = vmatpush2.msra.mxu0 0.0
        %2351 = vmatprep.mubr.f32.mxu0 0.0
        %2352 = vmatmul.mubr.f32.gmra.mxu0 %v2285
        %v2353 = vpop.f32.mrf.mxu0
        %v2354 = vadd.f32 0.0, %v2353
        %v2355 = vpop.f32.mrf.mxu0
        %2356 = vdwg.mxu0
        %v2358 = vsel %vm1639, %v2135, 0
        %2360 = vmatprep.subr.mxu0 0.0
        %2361 = vmatpush1.msra.mxu0 0.0
        %2362 = vmatprep.subr.mxu0 0.0
        %2363 = vmatpush1.msra.mxu0 0.0
        %2364 = vmatprep.subr.mxu0 0.0
        %2365 = vmatpush1.msra.mxu0 0.0
        %2366 = vmatprep.subr.mxu0 0.0
        %2367 = vmatpush1.msra.mxu0 0.0
        %2368 = vmatprep.subr.mxu0 0.0
        %2369 = vmatpush1.msra.mxu0 0.0
        %2370 = vmatprep.subr.mxu0 0.0
        %2371 = vmatpush1.msra.mxu0 0.0
        %2372 = vmatprep.subr.mxu0 0.0
        %2373 = vmatpush1.msra.mxu0 0.0
        %2374 = vmatprep.subr.mxu0 0.0
        %2375 = vmatpush1.msra.mxu0 0.0
        %2376 = vmatprep.subr.mxu0 0.0
        %2377 = vmatpush1.msra.mxu0 0.0
        %2378 = vmatprep.subr.mxu0 0.0
        %2379 = vmatpush1.msra.mxu0 0.0
        %2380 = vmatprep.subr.mxu0 0.0
        %2381 = vmatpush1.msra.mxu0 0.0
        %2382 = vmatprep.subr.mxu0 0.0
        %2383 = vmatpush1.msra.mxu0 0.0
        %2384 = vmatprep.subr.mxu0 0.0
        %2385 = vmatpush1.msra.mxu0 0.0
        %2386 = vmatprep.subr.mxu0 0.0
        %2387 = vmatpush1.msra.mxu0 0.0
        %2388 = vmatprep.subr.mxu0 0.0
        %2389 = vmatpush1.msra.mxu0 0.0
        %2390 = vmatprep.subr.mxu0 0.0
        %2391 = vmatpush1.msra.mxu0 %v708
        %2392 = vmatprep.subr.mxu0 0.0
        %2393 = vmatpush2.msra.mxu0 0.0
        %2394 = vmatprep.subr.mxu0 0.0
        %2395 = vmatpush2.msra.mxu0 0.0
        %2396 = vmatprep.subr.mxu0 0.0
        %2397 = vmatpush2.msra.mxu0 0.0
        %2398 = vmatprep.subr.mxu0 0.0
        %2399 = vmatpush2.msra.mxu0 0.0
        %2400 = vmatprep.subr.mxu0 0.0
        %2401 = vmatpush2.msra.mxu0 0.0
        %2402 = vmatprep.subr.mxu0 0.0
        %2403 = vmatpush2.msra.mxu0 0.0
        %2404 = vmatprep.subr.mxu0 0.0
        %2405 = vmatpush2.msra.mxu0 0.0
        %2406 = vmatprep.subr.mxu0 0.0
        %2407 = vmatpush2.msra.mxu0 0.0
        %2408 = vmatprep.subr.mxu0 0.0
        %2409 = vmatpush2.msra.mxu0 0.0
        %2410 = vmatprep.subr.mxu0 0.0
        %2411 = vmatpush2.msra.mxu0 0.0
        %2412 = vmatprep.subr.mxu0 0.0
        %2413 = vmatpush2.msra.mxu0 0.0
        %2414 = vmatprep.subr.mxu0 0.0
        %2415 = vmatpush2.msra.mxu0 0.0
        %2416 = vmatprep.subr.mxu0 0.0
        %2417 = vmatpush2.msra.mxu0 0.0
        %2418 = vmatprep.subr.mxu0 0.0
        %2419 = vmatpush2.msra.mxu0 0.0
        %2420 = vmatprep.subr.mxu0 0.0
        %2421 = vmatpush2.msra.mxu0 0.0
        %2422 = vmatprep.subr.mxu0 0.0
        %2423 = vmatpush2.msra.mxu0 0.0
        %2424 = vmatprep.mubr.f32.mxu0 0.0
        %2425 = vmatmul.mubr.f32.gmra.mxu0 %v2358
        %v2426 = vpop.f32.mrf.mxu0
        %v2427 = vadd.f32 0.0, %v2426
        %v2428 = vpop.f32.mrf.mxu0
        %2429 = vdwg.mxu0
        %v2431 = vsel %vm1639, %v2208, 0
        %2433 = vmatprep.subr.mxu0 0.0
        %2434 = vmatpush1.msra.mxu0 0.0
        %2435 = vmatprep.subr.mxu0 0.0
        %2436 = vmatpush1.msra.mxu0 0.0
        %2437 = vmatprep.subr.mxu0 0.0
        %2438 = vmatpush1.msra.mxu0 0.0
        %2439 = vmatprep.subr.mxu0 0.0
        %2440 = vmatpush1.msra.mxu0 0.0
        %2441 = vmatprep.subr.mxu0 0.0
        %2442 = vmatpush1.msra.mxu0 0.0
        %2443 = vmatprep.subr.mxu0 0.0
        %2444 = vmatpush1.msra.mxu0 0.0
        %2445 = vmatprep.subr.mxu0 0.0
        %2446 = vmatpush1.msra.mxu0 0.0
        %2447 = vmatprep.subr.mxu0 0.0
        %2448 = vmatpush1.msra.mxu0 0.0
        %2449 = vmatprep.subr.mxu0 0.0
        %2450 = vmatpush1.msra.mxu0 0.0
        %2451 = vmatprep.subr.mxu0 0.0
        %2452 = vmatpush1.msra.mxu0 0.0
        %2453 = vmatprep.subr.mxu0 0.0
        %2454 = vmatpush1.msra.mxu0 0.0
        %2455 = vmatprep.subr.mxu0 0.0
        %2456 = vmatpush1.msra.mxu0 0.0
        %2457 = vmatprep.subr.mxu0 0.0
        %2458 = vmatpush1.msra.mxu0 0.0
        %2459 = vmatprep.subr.mxu0 0.0
        %2460 = vmatpush1.msra.mxu0 0.0
        %2461 = vmatprep.subr.mxu0 0.0
        %2462 = vmatpush1.msra.mxu0 0.0
        %2463 = vmatprep.subr.mxu0 0.0
        %2464 = vmatpush1.msra.mxu0 %v709
        %2465 = vmatprep.subr.mxu0 0.0
        %2466 = vmatpush2.msra.mxu0 0.0
        %2467 = vmatprep.subr.mxu0 0.0
        %2468 = vmatpush2.msra.mxu0 0.0
        %2469 = vmatprep.subr.mxu0 0.0
        %2470 = vmatpush2.msra.mxu0 0.0
        %2471 = vmatprep.subr.mxu0 0.0
        %2472 = vmatpush2.msra.mxu0 0.0
        %2473 = vmatprep.subr.mxu0 0.0
        %2474 = vmatpush2.msra.mxu0 0.0
        %2475 = vmatprep.subr.mxu0 0.0
        %2476 = vmatpush2.msra.mxu0 0.0
        %2477 = vmatprep.subr.mxu0 0.0
        %2478 = vmatpush2.msra.mxu0 0.0
        %2479 = vmatprep.subr.mxu0 0.0
        %2480 = vmatpush2.msra.mxu0 0.0
        %2481 = vmatprep.subr.mxu0 0.0
        %2482 = vmatpush2.msra.mxu0 0.0
        %2483 = vmatprep.subr.mxu0 0.0
        %2484 = vmatpush2.msra.mxu0 0.0
        %2485 = vmatprep.subr.mxu0 0.0
        %2486 = vmatpush2.msra.mxu0 0.0
        %2487 = vmatprep.subr.mxu0 0.0
        %2488 = vmatpush2.msra.mxu0 0.0
        %2489 = vmatprep.subr.mxu0 0.0
        %2490 = vmatpush2.msra.mxu0 0.0
        %2491 = vmatprep.subr.mxu0 0.0
        %2492 = vmatpush2.msra.mxu0 0.0
        %2493 = vmatprep.subr.mxu0 0.0
        %2494 = vmatpush2.msra.mxu0 0.0
        %2495 = vmatprep.subr.mxu0 0.0
        %2496 = vmatpush2.msra.mxu0 0.0
        %2497 = vmatprep.mubr.f32.mxu0 0.0
        %2498 = vmatmul.mubr.f32.gmra.mxu0 %v2431
        %v2499 = vpop.f32.mrf.mxu0
        %v2500 = vadd.f32 0.0, %v2499
        %v2501 = vpop.f32.mrf.mxu0
        %2502 = vdwg.mxu0
        %v2504 = vsel %vm1639, %v2281, 0
        %2506 = vmatprep.subr.mxu0 0.0
        %2507 = vmatpush1.msra.mxu0 0.0
        %2508 = vmatprep.subr.mxu0 0.0
        %2509 = vmatpush1.msra.mxu0 0.0
        %2510 = vmatprep.subr.mxu0 0.0
        %2511 = vmatpush1.msra.mxu0 0.0
        %2512 = vmatprep.subr.mxu0 0.0
        %2513 = vmatpush1.msra.mxu0 0.0
        %2514 = vmatprep.subr.mxu0 0.0
        %2515 = vmatpush1.msra.mxu0 0.0
        %2516 = vmatprep.subr.mxu0 0.0
        %2517 = vmatpush1.msra.mxu0 0.0
        %2518 = vmatprep.subr.mxu0 0.0
        %2519 = vmatpush1.msra.mxu0 0.0
        %2520 = vmatprep.subr.mxu0 0.0
        %2521 = vmatpush1.msra.mxu0 0.0
        %2522 = vmatprep.subr.mxu0 0.0
        %2523 = vmatpush1.msra.mxu0 0.0
        %2524 = vmatprep.subr.mxu0 0.0
        %2525 = vmatpush1.msra.mxu0 0.0
        %2526 = vmatprep.subr.mxu0 0.0
        %2527 = vmatpush1.msra.mxu0 0.0
        %2528 = vmatprep.subr.mxu0 0.0
        %2529 = vmatpush1.msra.mxu0 0.0
        %2530 = vmatprep.subr.mxu0 0.0
        %2531 = vmatpush1.msra.mxu0 0.0
        %2532 = vmatprep.subr.mxu0 0.0
        %2533 = vmatpush1.msra.mxu0 0.0
        %2534 = vmatprep.subr.mxu0 0.0
        %2535 = vmatpush1.msra.mxu0 0.0
        %2536 = vmatprep.subr.mxu0 0.0
        %2537 = vmatpush1.msra.mxu0 %v710
        %2538 = vmatprep.subr.mxu0 0.0
        %2539 = vmatpush2.msra.mxu0 0.0
        %2540 = vmatprep.subr.mxu0 0.0
        %2541 = vmatpush2.msra.mxu0 0.0
        %2542 = vmatprep.subr.mxu0 0.0
        %2543 = vmatpush2.msra.mxu0 0.0
        %2544 = vmatprep.subr.mxu0 0.0
        %2545 = vmatpush2.msra.mxu0 0.0
        %2546 = vmatprep.subr.mxu0 0.0
        %2547 = vmatpush2.msra.mxu0 0.0
        %2548 = vmatprep.subr.mxu0 0.0
        %2549 = vmatpush2.msra.mxu0 0.0
        %2550 = vmatprep.subr.mxu0 0.0
        %2551 = vmatpush2.msra.mxu0 0.0
        %2552 = vmatprep.subr.mxu0 0.0
        %2553 = vmatpush2.msra.mxu0 0.0
        %2554 = vmatprep.subr.mxu0 0.0
        %2555 = vmatpush2.msra.mxu0 0.0
        %2556 = vmatprep.subr.mxu0 0.0
        %2557 = vmatpush2.msra.mxu0 0.0
        %2558 = vmatprep.subr.mxu0 0.0
        %2559 = vmatpush2.msra.mxu0 0.0
        %2560 = vmatprep.subr.mxu0 0.0
        %2561 = vmatpush2.msra.mxu0 0.0
        %2562 = vmatprep.subr.mxu0 0.0
        %2563 = vmatpush2.msra.mxu0 0.0
        %2564 = vmatprep.subr.mxu0 0.0
        %2565 = vmatpush2.msra.mxu0 0.0
        %2566 = vmatprep.subr.mxu0 0.0
        %2567 = vmatpush2.msra.mxu0 0.0
        %2568 = vmatprep.subr.mxu0 0.0
        %2569 = vmatpush2.msra.mxu0 0.0
        %2570 = vmatprep.mubr.f32.mxu0 0.0
        %2571 = vmatmul.mubr.f32.gmra.mxu0 %v2504
        %v2572 = vpop.f32.mrf.mxu0
        %v2573 = vadd.f32 0.0, %v2572
        %v2574 = vpop.f32.mrf.mxu0
        %2575 = vdwg.mxu0
        %v2576 = vsel %vm747, %v2354, 0.0
        %v2577 = vsel %vm747, %v2427, 0.0
        %v2578 = vadd.f32 %v2576, %v2577
        %v2579 = vsel %vm747, %v2500, 0.0
        %v2580 = vadd.f32 %v2578, %v2579
        %v2581 = vsel %vm747, %v2573, 0.0
        %v2582 = vadd.f32 %v2580, %v2581
        %v2584 = vsel %vm747, %v658, 0
        %2586 = vmatprep.subr.mxu0 0.0
        %2587 = vmatpush1.msra.mxu0 0.0
        %2588 = vmatprep.subr.mxu0 0.0
        %2589 = vmatpush1.msra.mxu0 0.0
        %2590 = vmatprep.subr.mxu0 0.0
        %2591 = vmatpush1.msra.mxu0 0.0
        %2592 = vmatprep.subr.mxu0 0.0
        %2593 = vmatpush1.msra.mxu0 0.0
        %2594 = vmatprep.subr.mxu0 0.0
        %2595 = vmatpush1.msra.mxu0 0.0
        %2596 = vmatprep.subr.mxu0 0.0
        %2597 = vmatpush1.msra.mxu0 0.0
        %2598 = vmatprep.subr.mxu0 0.0
        %2599 = vmatpush1.msra.mxu0 0.0
        %2600 = vmatprep.subr.mxu0 0.0
        %2601 = vmatpush1.msra.mxu0 0.0
        %2602 = vmatprep.subr.mxu0 0.0
        %2603 = vmatpush1.msra.mxu0 0.0
        %2604 = vmatprep.subr.mxu0 0.0
        %2605 = vmatpush1.msra.mxu0 0.0
        %2606 = vmatprep.subr.mxu0 0.0
        %2607 = vmatpush1.msra.mxu0 0.0
        %2608 = vmatprep.subr.mxu0 0.0
        %2609 = vmatpush1.msra.mxu0 0.0
        %2610 = vmatprep.subr.mxu0 0.0
        %2611 = vmatpush1.msra.mxu0 %v662
        %2612 = vmatprep.subr.mxu0 0.0
        %2613 = vmatpush1.msra.mxu0 %v661
        %2614 = vmatprep.subr.mxu0 0.0
        %2615 = vmatpush1.msra.mxu0 %v660
        %2616 = vmatprep.subr.mxu0 0.0
        %2617 = vmatpush1.msra.mxu0 %v659
        %2618 = vmatprep.subr.mxu0 0.0
        %2619 = vmatpush2.msra.mxu0 0.0
        %2620 = vmatprep.subr.mxu0 0.0
        %2621 = vmatpush2.msra.mxu0 0.0
        %2622 = vmatprep.subr.mxu0 0.0
        %2623 = vmatpush2.msra.mxu0 0.0
        %2624 = vmatprep.subr.mxu0 0.0
        %2625 = vmatpush2.msra.mxu0 0.0
        %2626 = vmatprep.subr.mxu0 0.0
        %2627 = vmatpush2.msra.mxu0 0.0
        %2628 = vmatprep.subr.mxu0 0.0
        %2629 = vmatpush2.msra.mxu0 0.0
        %2630 = vmatprep.subr.mxu0 0.0
        %2631 = vmatpush2.msra.mxu0 0.0
        %2632 = vmatprep.subr.mxu0 0.0
        %2633 = vmatpush2.msra.mxu0 0.0
        %2634 = vmatprep.subr.mxu0 0.0
        %2635 = vmatpush2.msra.mxu0 0.0
        %2636 = vmatprep.subr.mxu0 0.0
        %2637 = vmatpush2.msra.mxu0 0.0
        %2638 = vmatprep.subr.mxu0 0.0
        %2639 = vmatpush2.msra.mxu0 0.0
        %2640 = vmatprep.subr.mxu0 0.0
        %2641 = vmatpush2.msra.mxu0 0.0
        %2642 = vmatprep.subr.mxu0 0.0
        %2643 = vmatpush2.msra.mxu0 0.0
        %2644 = vmatprep.subr.mxu0 0.0
        %2645 = vmatpush2.msra.mxu0 0.0
        %2646 = vmatprep.subr.mxu0 0.0
        %2647 = vmatpush2.msra.mxu0 0.0
        %2648 = vmatprep.subr.mxu0 0.0
        %2649 = vmatpush2.msra.mxu0 0.0
        %2650 = vmatprep.mubr.f32.mxu0 0.0
        %2651 = vmatmul.mubr.f32.gmra.mxu0 %v2584
        %v2652 = vpop.f32.mrf.mxu0
        %v2653 = vadd.f32 %v730, %v2652
        %v2654 = vpop.f32.mrf.mxu0
        %2655 = vdwg.mxu0
        %2656 = vmatprep.subr.mxu0 0.0
        %2657 = vmatpush1.msra.mxu0 0.0
        %2658 = vmatprep.subr.mxu0 0.0
        %2659 = vmatpush1.msra.mxu0 0.0
        %2660 = vmatprep.subr.mxu0 0.0
        %2661 = vmatpush1.msra.mxu0 0.0
        %2662 = vmatprep.subr.mxu0 0.0
        %2663 = vmatpush1.msra.mxu0 0.0
        %2664 = vmatprep.subr.mxu0 0.0
        %2665 = vmatpush1.msra.mxu0 0.0
        %2666 = vmatprep.subr.mxu0 0.0
        %2667 = vmatpush1.msra.mxu0 0.0
        %2668 = vmatprep.subr.mxu0 0.0
        %2669 = vmatpush1.msra.mxu0 0.0
        %2670 = vmatprep.subr.mxu0 0.0
        %2671 = vmatpush1.msra.mxu0 0.0
        %2672 = vmatprep.subr.mxu0 0.0
        %2673 = vmatpush1.msra.mxu0 0.0
        %2674 = vmatprep.subr.mxu0 0.0
        %2675 = vmatpush1.msra.mxu0 0.0
        %2676 = vmatprep.subr.mxu0 0.0
        %2677 = vmatpush1.msra.mxu0 0.0
        %2678 = vmatprep.subr.mxu0 0.0
        %2679 = vmatpush1.msra.mxu0 0.0
        %2680 = vmatprep.subr.mxu0 0.0
        %2681 = vmatpush1.msra.mxu0 %v666
        %2682 = vmatprep.subr.mxu0 0.0
        %2683 = vmatpush1.msra.mxu0 %v665
        %2684 = vmatprep.subr.mxu0 0.0
        %2685 = vmatpush1.msra.mxu0 %v664
        %2686 = vmatprep.subr.mxu0 0.0
        %2687 = vmatpush1.msra.mxu0 %v663
        %2688 = vmatprep.subr.mxu0 0.0
        %2689 = vmatpush2.msra.mxu0 0.0
        %2690 = vmatprep.subr.mxu0 0.0
        %2691 = vmatpush2.msra.mxu0 0.0
        %2692 = vmatprep.subr.mxu0 0.0
        %2693 = vmatpush2.msra.mxu0 0.0
        %2694 = vmatprep.subr.mxu0 0.0
        %2695 = vmatpush2.msra.mxu0 0.0
        %2696 = vmatprep.subr.mxu0 0.0
        %2697 = vmatpush2.msra.mxu0 0.0
        %2698 = vmatprep.subr.mxu0 0.0
        %2699 = vmatpush2.msra.mxu0 0.0
        %2700 = vmatprep.subr.mxu0 0.0
        %2701 = vmatpush2.msra.mxu0 0.0
        %2702 = vmatprep.subr.mxu0 0.0
        %2703 = vmatpush2.msra.mxu0 0.0
        %2704 = vmatprep.subr.mxu0 0.0
        %2705 = vmatpush2.msra.mxu0 0.0
        %2706 = vmatprep.subr.mxu0 0.0
        %2707 = vmatpush2.msra.mxu0 0.0
        %2708 = vmatprep.subr.mxu0 0.0
        %2709 = vmatpush2.msra.mxu0 0.0
        %2710 = vmatprep.subr.mxu0 0.0
        %2711 = vmatpush2.msra.mxu0 0.0
        %2712 = vmatprep.subr.mxu0 0.0
        %2713 = vmatpush2.msra.mxu0 0.0
        %2714 = vmatprep.subr.mxu0 0.0
        %2715 = vmatpush2.msra.mxu0 0.0
        %2716 = vmatprep.subr.mxu0 0.0
        %2717 = vmatpush2.msra.mxu0 0.0
        %2718 = vmatprep.subr.mxu0 0.0
        %2719 = vmatpush2.msra.mxu0 0.0
        %2720 = vmatprep.mubr.f32.mxu0 0.0
        %2721 = vmatmul.mubr.f32.gmra.mxu0 %v2584
        %v2722 = vpop.f32.mrf.mxu0
        %v2723 = vadd.f32 %v734, %v2722
        %v2724 = vpop.f32.mrf.mxu0
        %2725 = vdwg.mxu0
        %2726 = vmatprep.subr.mxu0 0.0
        %2727 = vmatpush1.msra.mxu0 0.0
        %2728 = vmatprep.subr.mxu0 0.0
        %2729 = vmatpush1.msra.mxu0 0.0
        %2730 = vmatprep.subr.mxu0 0.0
        %2731 = vmatpush1.msra.mxu0 0.0
        %2732 = vmatprep.subr.mxu0 0.0
        %2733 = vmatpush1.msra.mxu0 0.0
        %2734 = vmatprep.subr.mxu0 0.0
        %2735 = vmatpush1.msra.mxu0 0.0
        %2736 = vmatprep.subr.mxu0 0.0
        %2737 = vmatpush1.msra.mxu0 0.0
        %2738 = vmatprep.subr.mxu0 0.0
        %2739 = vmatpush1.msra.mxu0 0.0
        %2740 = vmatprep.subr.mxu0 0.0
        %2741 = vmatpush1.msra.mxu0 0.0
        %2742 = vmatprep.subr.mxu0 0.0
        %2743 = vmatpush1.msra.mxu0 0.0
        %2744 = vmatprep.subr.mxu0 0.0
        %2745 = vmatpush1.msra.mxu0 0.0
        %2746 = vmatprep.subr.mxu0 0.0
        %2747 = vmatpush1.msra.mxu0 0.0
        %2748 = vmatprep.subr.mxu0 0.0
        %2749 = vmatpush1.msra.mxu0 0.0
        %2750 = vmatprep.subr.mxu0 0.0
        %2751 = vmatpush1.msra.mxu0 %v670
        %2752 = vmatprep.subr.mxu0 0.0
        %2753 = vmatpush1.msra.mxu0 %v669
        %2754 = vmatprep.subr.mxu0 0.0
        %2755 = vmatpush1.msra.mxu0 %v668
        %2756 = vmatprep.subr.mxu0 0.0
        %2757 = vmatpush1.msra.mxu0 %v667
        %2758 = vmatprep.subr.mxu0 0.0
        %2759 = vmatpush2.msra.mxu0 0.0
        %2760 = vmatprep.subr.mxu0 0.0
        %2761 = vmatpush2.msra.mxu0 0.0
        %2762 = vmatprep.subr.mxu0 0.0
        %2763 = vmatpush2.msra.mxu0 0.0
        %2764 = vmatprep.subr.mxu0 0.0
        %2765 = vmatpush2.msra.mxu0 0.0
        %2766 = vmatprep.subr.mxu0 0.0
        %2767 = vmatpush2.msra.mxu0 0.0
        %2768 = vmatprep.subr.mxu0 0.0
        %2769 = vmatpush2.msra.mxu0 0.0
        %2770 = vmatprep.subr.mxu0 0.0
        %2771 = vmatpush2.msra.mxu0 0.0
        %2772 = vmatprep.subr.mxu0 0.0
        %2773 = vmatpush2.msra.mxu0 0.0
        %2774 = vmatprep.subr.mxu0 0.0
        %2775 = vmatpush2.msra.mxu0 0.0
        %2776 = vmatprep.subr.mxu0 0.0
        %2777 = vmatpush2.msra.mxu0 0.0
        %2778 = vmatprep.subr.mxu0 0.0
        %2779 = vmatpush2.msra.mxu0 0.0
        %2780 = vmatprep.subr.mxu0 0.0
        %2781 = vmatpush2.msra.mxu0 0.0
        %2782 = vmatprep.subr.mxu0 0.0
        %2783 = vmatpush2.msra.mxu0 0.0
        %2784 = vmatprep.subr.mxu0 0.0
        %2785 = vmatpush2.msra.mxu0 0.0
        %2786 = vmatprep.subr.mxu0 0.0
        %2787 = vmatpush2.msra.mxu0 0.0
        %2788 = vmatprep.subr.mxu0 0.0
        %2789 = vmatpush2.msra.mxu0 0.0
        %2790 = vmatprep.mubr.f32.mxu0 0.0
        %2791 = vmatmul.mubr.f32.gmra.mxu0 %v2584
        %v2792 = vpop.f32.mrf.mxu0
        %v2793 = vadd.f32 %v738, %v2792
        %v2794 = vpop.f32.mrf.mxu0
        %2795 = vdwg.mxu0
        %2796 = vmatprep.subr.mxu0 0.0
        %2797 = vmatpush1.msra.mxu0 0.0
        %2798 = vmatprep.subr.mxu0 0.0
        %2799 = vmatpush1.msra.mxu0 0.0
        %2800 = vmatprep.subr.mxu0 0.0
        %2801 = vmatpush1.msra.mxu0 0.0
        %2802 = vmatprep.subr.mxu0 0.0
        %2803 = vmatpush1.msra.mxu0 0.0
        %2804 = vmatprep.subr.mxu0 0.0
        %2805 = vmatpush1.msra.mxu0 0.0
        %2806 = vmatprep.subr.mxu0 0.0
        %2807 = vmatpush1.msra.mxu0 0.0
        %2808 = vmatprep.subr.mxu0 0.0
        %2809 = vmatpush1.msra.mxu0 0.0
        %2810 = vmatprep.subr.mxu0 0.0
        %2811 = vmatpush1.msra.mxu0 0.0
        %2812 = vmatprep.subr.mxu0 0.0
        %2813 = vmatpush1.msra.mxu0 0.0
        %2814 = vmatprep.subr.mxu0 0.0
        %2815 = vmatpush1.msra.mxu0 0.0
        %2816 = vmatprep.subr.mxu0 0.0
        %2817 = vmatpush1.msra.mxu0 0.0
        %2818 = vmatprep.subr.mxu0 0.0
        %2819 = vmatpush1.msra.mxu0 0.0
        %2820 = vmatprep.subr.mxu0 0.0
        %2821 = vmatpush1.msra.mxu0 %v674
        %2822 = vmatprep.subr.mxu0 0.0
        %2823 = vmatpush1.msra.mxu0 %v673
        %2824 = vmatprep.subr.mxu0 0.0
        %2825 = vmatpush1.msra.mxu0 %v672
        %2826 = vmatprep.subr.mxu0 0.0
        %2827 = vmatpush1.msra.mxu0 %v671
        %2828 = vmatprep.subr.mxu0 0.0
        %2829 = vmatpush2.msra.mxu0 0.0
        %2830 = vmatprep.subr.mxu0 0.0
        %2831 = vmatpush2.msra.mxu0 0.0
        %2832 = vmatprep.subr.mxu0 0.0
        %2833 = vmatpush2.msra.mxu0 0.0
        %2834 = vmatprep.subr.mxu0 0.0
        %2835 = vmatpush2.msra.mxu0 0.0
        %2836 = vmatprep.subr.mxu0 0.0
        %2837 = vmatpush2.msra.mxu0 0.0
        %2838 = vmatprep.subr.mxu0 0.0
        %2839 = vmatpush2.msra.mxu0 0.0
        %2840 = vmatprep.subr.mxu0 0.0
        %2841 = vmatpush2.msra.mxu0 0.0
        %2842 = vmatprep.subr.mxu0 0.0
        %2843 = vmatpush2.msra.mxu0 0.0
        %2844 = vmatprep.subr.mxu0 0.0
        %2845 = vmatpush2.msra.mxu0 0.0
        %2846 = vmatprep.subr.mxu0 0.0
        %2847 = vmatpush2.msra.mxu0 0.0
        %2848 = vmatprep.subr.mxu0 0.0
        %2849 = vmatpush2.msra.mxu0 0.0
        %2850 = vmatprep.subr.mxu0 0.0
        %2851 = vmatpush2.msra.mxu0 0.0
        %2852 = vmatprep.subr.mxu0 0.0
        %2853 = vmatpush2.msra.mxu0 0.0
        %2854 = vmatprep.subr.mxu0 0.0
        %2855 = vmatpush2.msra.mxu0 0.0
        %2856 = vmatprep.subr.mxu0 0.0
        %2857 = vmatpush2.msra.mxu0 0.0
        %2858 = vmatprep.subr.mxu0 0.0
        %2859 = vmatpush2.msra.mxu0 0.0
        %2860 = vmatprep.mubr.f32.mxu0 0.0
        %2861 = vmatmul.mubr.f32.gmra.mxu0 %v2584
        %v2862 = vpop.f32.mrf.mxu0
        %v2863 = vadd.f32 %v742, %v2862
        %v2864 = vpop.f32.mrf.mxu0
        %2865 = vdwg.mxu0
        %2866 = vmatprep.subr.mxu0 0.0
        %2867 = vmatpush1.msra.mxu0 0.0
        %2868 = vmatprep.subr.mxu0 0.0
        %2869 = vmatpush1.msra.mxu0 0.0
        %2870 = vmatprep.subr.mxu0 0.0
        %2871 = vmatpush1.msra.mxu0 0.0
        %2872 = vmatprep.subr.mxu0 0.0
        %2873 = vmatpush1.msra.mxu0 0.0
        %2874 = vmatprep.subr.mxu0 0.0
        %2875 = vmatpush1.msra.mxu0 0.0
        %2876 = vmatprep.subr.mxu0 0.0
        %2877 = vmatpush1.msra.mxu0 0.0
        %2878 = vmatprep.subr.mxu0 0.0
        %2879 = vmatpush1.msra.mxu0 0.0
        %2880 = vmatprep.subr.mxu0 0.0
        %2881 = vmatpush1.msra.mxu0 0.0
        %2882 = vmatprep.subr.mxu0 0.0
        %2883 = vmatpush1.msra.mxu0 0.0
        %2884 = vmatprep.subr.mxu0 0.0
        %2885 = vmatpush1.msra.mxu0 0.0
        %2886 = vmatprep.subr.mxu0 0.0
        %2887 = vmatpush1.msra.mxu0 0.0
        %2888 = vmatprep.subr.mxu0 0.0
        %2889 = vmatpush1.msra.mxu0 0.0
        %2890 = vmatprep.subr.mxu0 0.0
        %2891 = vmatpush1.msra.mxu0 %v678
        %2892 = vmatprep.subr.mxu0 0.0
        %2893 = vmatpush1.msra.mxu0 %v677
        %2894 = vmatprep.subr.mxu0 0.0
        %2895 = vmatpush1.msra.mxu0 %v676
        %2896 = vmatprep.subr.mxu0 0.0
        %2897 = vmatpush1.msra.mxu0 %v675
        %2898 = vmatprep.subr.mxu0 0.0
        %2899 = vmatpush2.msra.mxu0 0.0
        %2900 = vmatprep.subr.mxu0 0.0
        %2901 = vmatpush2.msra.mxu0 0.0
        %2902 = vmatprep.subr.mxu0 0.0
        %2903 = vmatpush2.msra.mxu0 0.0
        %2904 = vmatprep.subr.mxu0 0.0
        %2905 = vmatpush2.msra.mxu0 0.0
        %2906 = vmatprep.subr.mxu0 0.0
        %2907 = vmatpush2.msra.mxu0 0.0
        %2908 = vmatprep.subr.mxu0 0.0
        %2909 = vmatpush2.msra.mxu0 0.0
        %2910 = vmatprep.subr.mxu0 0.0
        %2911 = vmatpush2.msra.mxu0 0.0
        %2912 = vmatprep.subr.mxu0 0.0
        %2913 = vmatpush2.msra.mxu0 0.0
        %2914 = vmatprep.subr.mxu0 0.0
        %2915 = vmatpush2.msra.mxu0 0.0
        %2916 = vmatprep.subr.mxu0 0.0
        %2917 = vmatpush2.msra.mxu0 0.0
        %2918 = vmatprep.subr.mxu0 0.0
        %2919 = vmatpush2.msra.mxu0 0.0
        %2920 = vmatprep.subr.mxu0 0.0
        %2921 = vmatpush2.msra.mxu0 0.0
        %2922 = vmatprep.subr.mxu0 0.0
        %2923 = vmatpush2.msra.mxu0 0.0
        %2924 = vmatprep.subr.mxu0 0.0
        %2925 = vmatpush2.msra.mxu0 0.0
        %2926 = vmatprep.subr.mxu0 0.0
        %2927 = vmatpush2.msra.mxu0 0.0
        %2928 = vmatprep.subr.mxu0 0.0
        %2929 = vmatpush2.msra.mxu0 0.0
        %2930 = vmatprep.mubr.f32.mxu0 0.0
        %2931 = vmatmul.mubr.f32.gmra.mxu0 %v2584
        %v2932 = vpop.f32.mrf.mxu0
        %v2933 = vadd.f32 %v1038, %v2932
        %v2934 = vpop.f32.mrf.mxu0
        %2935 = vdwg.mxu0
        %2936 = vmatprep.subr.mxu0 0.0
        %2937 = vmatpush1.msra.mxu0 0.0
        %2938 = vmatprep.subr.mxu0 0.0
        %2939 = vmatpush1.msra.mxu0 0.0
        %2940 = vmatprep.subr.mxu0 0.0
        %2941 = vmatpush1.msra.mxu0 0.0
        %2942 = vmatprep.subr.mxu0 0.0
        %2943 = vmatpush1.msra.mxu0 0.0
        %2944 = vmatprep.subr.mxu0 0.0
        %2945 = vmatpush1.msra.mxu0 0.0
        %2946 = vmatprep.subr.mxu0 0.0
        %2947 = vmatpush1.msra.mxu0 0.0
        %2948 = vmatprep.subr.mxu0 0.0
        %2949 = vmatpush1.msra.mxu0 0.0
        %2950 = vmatprep.subr.mxu0 0.0
        %2951 = vmatpush1.msra.mxu0 0.0
        %2952 = vmatprep.subr.mxu0 0.0
        %2953 = vmatpush1.msra.mxu0 0.0
        %2954 = vmatprep.subr.mxu0 0.0
        %2955 = vmatpush1.msra.mxu0 0.0
        %2956 = vmatprep.subr.mxu0 0.0
        %2957 = vmatpush1.msra.mxu0 0.0
        %2958 = vmatprep.subr.mxu0 0.0
        %2959 = vmatpush1.msra.mxu0 0.0
        %2960 = vmatprep.subr.mxu0 0.0
        %2961 = vmatpush1.msra.mxu0 %v682
        %2962 = vmatprep.subr.mxu0 0.0
        %2963 = vmatpush1.msra.mxu0 %v681
        %2964 = vmatprep.subr.mxu0 0.0
        %2965 = vmatpush1.msra.mxu0 %v680
        %2966 = vmatprep.subr.mxu0 0.0
        %2967 = vmatpush1.msra.mxu0 %v679
        %2968 = vmatprep.subr.mxu0 0.0
        %2969 = vmatpush2.msra.mxu0 0.0
        %2970 = vmatprep.subr.mxu0 0.0
        %2971 = vmatpush2.msra.mxu0 0.0
        %2972 = vmatprep.subr.mxu0 0.0
        %2973 = vmatpush2.msra.mxu0 0.0
        %2974 = vmatprep.subr.mxu0 0.0
        %2975 = vmatpush2.msra.mxu0 0.0
        %2976 = vmatprep.subr.mxu0 0.0
        %2977 = vmatpush2.msra.mxu0 0.0
        %2978 = vmatprep.subr.mxu0 0.0
        %2979 = vmatpush2.msra.mxu0 0.0
        %2980 = vmatprep.subr.mxu0 0.0
        %2981 = vmatpush2.msra.mxu0 0.0
        %2982 = vmatprep.subr.mxu0 0.0
        %2983 = vmatpush2.msra.mxu0 0.0
        %2984 = vmatprep.subr.mxu0 0.0
        %2985 = vmatpush2.msra.mxu0 0.0
        %2986 = vmatprep.subr.mxu0 0.0
        %2987 = vmatpush2.msra.mxu0 0.0
        %2988 = vmatprep.subr.mxu0 0.0
        %2989 = vmatpush2.msra.mxu0 0.0
        %2990 = vmatprep.subr.mxu0 0.0
        %2991 = vmatpush2.msra.mxu0 0.0
        %2992 = vmatprep.subr.mxu0 0.0
        %2993 = vmatpush2.msra.mxu0 0.0
        %2994 = vmatprep.subr.mxu0 0.0
        %2995 = vmatpush2.msra.mxu0 0.0
        %2996 = vmatprep.subr.mxu0 0.0
        %2997 = vmatpush2.msra.mxu0 0.0
        %2998 = vmatprep.subr.mxu0 0.0
        %2999 = vmatpush2.msra.mxu0 0.0
        %3000 = vmatprep.mubr.f32.mxu0 0.0
        %3001 = vmatmul.mubr.f32.gmra.mxu0 %v2584
        %v3002 = vpop.f32.mrf.mxu0
        %v3003 = vadd.f32 %v1042, %v3002
        %v3004 = vpop.f32.mrf.mxu0
        %3005 = vdwg.mxu0
        %3006 = vmatprep.subr.mxu0 0.0
        %3007 = vmatpush1.msra.mxu0 0.0
        %3008 = vmatprep.subr.mxu0 0.0
        %3009 = vmatpush1.msra.mxu0 0.0
        %3010 = vmatprep.subr.mxu0 0.0
        %3011 = vmatpush1.msra.mxu0 0.0
        %3012 = vmatprep.subr.mxu0 0.0
        %3013 = vmatpush1.msra.mxu0 0.0
        %3014 = vmatprep.subr.mxu0 0.0
        %3015 = vmatpush1.msra.mxu0 0.0
        %3016 = vmatprep.subr.mxu0 0.0
        %3017 = vmatpush1.msra.mxu0 0.0
        %3018 = vmatprep.subr.mxu0 0.0
        %3019 = vmatpush1.msra.mxu0 0.0
        %3020 = vmatprep.subr.mxu0 0.0
        %3021 = vmatpush1.msra.mxu0 0.0
        %3022 = vmatprep.subr.mxu0 0.0
        %3023 = vmatpush1.msra.mxu0 0.0
        %3024 = vmatprep.subr.mxu0 0.0
        %3025 = vmatpush1.msra.mxu0 0.0
        %3026 = vmatprep.subr.mxu0 0.0
        %3027 = vmatpush1.msra.mxu0 0.0
        %3028 = vmatprep.subr.mxu0 0.0
        %3029 = vmatpush1.msra.mxu0 0.0
        %3030 = vmatprep.subr.mxu0 0.0
        %3031 = vmatpush1.msra.mxu0 %v686
        %3032 = vmatprep.subr.mxu0 0.0
        %3033 = vmatpush1.msra.mxu0 %v685
        %3034 = vmatprep.subr.mxu0 0.0
        %3035 = vmatpush1.msra.mxu0 %v684
        %3036 = vmatprep.subr.mxu0 0.0
        %3037 = vmatpush1.msra.mxu0 %v683
        %3038 = vmatprep.subr.mxu0 0.0
        %3039 = vmatpush2.msra.mxu0 0.0
        %3040 = vmatprep.subr.mxu0 0.0
        %3041 = vmatpush2.msra.mxu0 0.0
        %3042 = vmatprep.subr.mxu0 0.0
        %3043 = vmatpush2.msra.mxu0 0.0
        %3044 = vmatprep.subr.mxu0 0.0
        %3045 = vmatpush2.msra.mxu0 0.0
        %3046 = vmatprep.subr.mxu0 0.0
        %3047 = vmatpush2.msra.mxu0 0.0
        %3048 = vmatprep.subr.mxu0 0.0
        %3049 = vmatpush2.msra.mxu0 0.0
        %3050 = vmatprep.subr.mxu0 0.0
        %3051 = vmatpush2.msra.mxu0 0.0
        %3052 = vmatprep.subr.mxu0 0.0
        %3053 = vmatpush2.msra.mxu0 0.0
        %3054 = vmatprep.subr.mxu0 0.0
        %3055 = vmatpush2.msra.mxu0 0.0
        %3056 = vmatprep.subr.mxu0 0.0
        %3057 = vmatpush2.msra.mxu0 0.0
        %3058 = vmatprep.subr.mxu0 0.0
        %3059 = vmatpush2.msra.mxu0 0.0
        %3060 = vmatprep.subr.mxu0 0.0
        %3061 = vmatpush2.msra.mxu0 0.0
        %3062 = vmatprep.subr.mxu0 0.0
        %3063 = vmatpush2.msra.mxu0 0.0
        %3064 = vmatprep.subr.mxu0 0.0
        %3065 = vmatpush2.msra.mxu0 0.0
        %3066 = vmatprep.subr.mxu0 0.0
        %3067 = vmatpush2.msra.mxu0 0.0
        %3068 = vmatprep.subr.mxu0 0.0
        %3069 = vmatpush2.msra.mxu0 0.0
        %3070 = vmatprep.mubr.f32.mxu0 0.0
        %3071 = vmatmul.mubr.f32.gmra.mxu0 %v2584
        %v3072 = vpop.f32.mrf.mxu0
        %v3073 = vadd.f32 %v1046, %v3072
        %v3074 = vpop.f32.mrf.mxu0
        %3075 = vdwg.mxu0
        %3076 = vmatprep.subr.mxu0 0.0
        %3077 = vmatpush1.msra.mxu0 0.0
        %3078 = vmatprep.subr.mxu0 0.0
        %3079 = vmatpush1.msra.mxu0 0.0
        %3080 = vmatprep.subr.mxu0 0.0
        %3081 = vmatpush1.msra.mxu0 0.0
        %3082 = vmatprep.subr.mxu0 0.0
        %3083 = vmatpush1.msra.mxu0 0.0
        %3084 = vmatprep.subr.mxu0 0.0
        %3085 = vmatpush1.msra.mxu0 0.0
        %3086 = vmatprep.subr.mxu0 0.0
        %3087 = vmatpush1.msra.mxu0 0.0
        %3088 = vmatprep.subr.mxu0 0.0
        %3089 = vmatpush1.msra.mxu0 0.0
        %3090 = vmatprep.subr.mxu0 0.0
        %3091 = vmatpush1.msra.mxu0 0.0
        %3092 = vmatprep.subr.mxu0 0.0
        %3093 = vmatpush1.msra.mxu0 0.0
        %3094 = vmatprep.subr.mxu0 0.0
        %3095 = vmatpush1.msra.mxu0 0.0
        %3096 = vmatprep.subr.mxu0 0.0
        %3097 = vmatpush1.msra.mxu0 0.0
        %3098 = vmatprep.subr.mxu0 0.0
        %3099 = vmatpush1.msra.mxu0 0.0
        %3100 = vmatprep.subr.mxu0 0.0
        %3101 = vmatpush1.msra.mxu0 %v690
        %3102 = vmatprep.subr.mxu0 0.0
        %3103 = vmatpush1.msra.mxu0 %v689
        %3104 = vmatprep.subr.mxu0 0.0
        %3105 = vmatpush1.msra.mxu0 %v688
        %3106 = vmatprep.subr.mxu0 0.0
        %3107 = vmatpush1.msra.mxu0 %v687
        %3108 = vmatprep.subr.mxu0 0.0
        %3109 = vmatpush2.msra.mxu0 0.0
        %3110 = vmatprep.subr.mxu0 0.0
        %3111 = vmatpush2.msra.mxu0 0.0
        %3112 = vmatprep.subr.mxu0 0.0
        %3113 = vmatpush2.msra.mxu0 0.0
        %3114 = vmatprep.subr.mxu0 0.0
        %3115 = vmatpush2.msra.mxu0 0.0
        %3116 = vmatprep.subr.mxu0 0.0
        %3117 = vmatpush2.msra.mxu0 0.0
        %3118 = vmatprep.subr.mxu0 0.0
        %3119 = vmatpush2.msra.mxu0 0.0
        %3120 = vmatprep.subr.mxu0 0.0
        %3121 = vmatpush2.msra.mxu0 0.0
        %3122 = vmatprep.subr.mxu0 0.0
        %3123 = vmatpush2.msra.mxu0 0.0
        %3124 = vmatprep.subr.mxu0 0.0
        %3125 = vmatpush2.msra.mxu0 0.0
        %3126 = vmatprep.subr.mxu0 0.0
        %3127 = vmatpush2.msra.mxu0 0.0
        %3128 = vmatprep.subr.mxu0 0.0
        %3129 = vmatpush2.msra.mxu0 0.0
        %3130 = vmatprep.subr.mxu0 0.0
        %3131 = vmatpush2.msra.mxu0 0.0
        %3132 = vmatprep.subr.mxu0 0.0
        %3133 = vmatpush2.msra.mxu0 0.0
        %3134 = vmatprep.subr.mxu0 0.0
        %3135 = vmatpush2.msra.mxu0 0.0
        %3136 = vmatprep.subr.mxu0 0.0
        %3137 = vmatpush2.msra.mxu0 0.0
        %3138 = vmatprep.subr.mxu0 0.0
        %3139 = vmatpush2.msra.mxu0 0.0
        %3140 = vmatprep.mubr.f32.mxu0 0.0
        %3141 = vmatmul.mubr.f32.gmra.mxu0 %v2584
        %v3142 = vpop.f32.mrf.mxu0
        %v3143 = vadd.f32 %v1050, %v3142
        %v3144 = vpop.f32.mrf.mxu0
        %3145 = vdwg.mxu0
        %3146 = vmatprep.subr.mxu0 0.0
        %3147 = vmatpush1.msra.mxu0 0.0
        %3148 = vmatprep.subr.mxu0 0.0
        %3149 = vmatpush1.msra.mxu0 0.0
        %3150 = vmatprep.subr.mxu0 0.0
        %3151 = vmatpush1.msra.mxu0 0.0
        %3152 = vmatprep.subr.mxu0 0.0
        %3153 = vmatpush1.msra.mxu0 0.0
        %3154 = vmatprep.subr.mxu0 0.0
        %3155 = vmatpush1.msra.mxu0 0.0
        %3156 = vmatprep.subr.mxu0 0.0
        %3157 = vmatpush1.msra.mxu0 0.0
        %3158 = vmatprep.subr.mxu0 0.0
        %3159 = vmatpush1.msra.mxu0 0.0
        %3160 = vmatprep.subr.mxu0 0.0
        %3161 = vmatpush1.msra.mxu0 0.0
        %3162 = vmatprep.subr.mxu0 0.0
        %3163 = vmatpush1.msra.mxu0 0.0
        %3164 = vmatprep.subr.mxu0 0.0
        %3165 = vmatpush1.msra.mxu0 0.0
        %3166 = vmatprep.subr.mxu0 0.0
        %3167 = vmatpush1.msra.mxu0 0.0
        %3168 = vmatprep.subr.mxu0 0.0
        %3169 = vmatpush1.msra.mxu0 0.0
        %3170 = vmatprep.subr.mxu0 0.0
        %3171 = vmatpush1.msra.mxu0 %v694
        %3172 = vmatprep.subr.mxu0 0.0
        %3173 = vmatpush1.msra.mxu0 %v693
        %3174 = vmatprep.subr.mxu0 0.0
        %3175 = vmatpush1.msra.mxu0 %v692
        %3176 = vmatprep.subr.mxu0 0.0
        %3177 = vmatpush1.msra.mxu0 %v691
        %3178 = vmatprep.subr.mxu0 0.0
        %3179 = vmatpush2.msra.mxu0 0.0
        %3180 = vmatprep.subr.mxu0 0.0
        %3181 = vmatpush2.msra.mxu0 0.0
        %3182 = vmatprep.subr.mxu0 0.0
        %3183 = vmatpush2.msra.mxu0 0.0
        %3184 = vmatprep.subr.mxu0 0.0
        %3185 = vmatpush2.msra.mxu0 0.0
        %3186 = vmatprep.subr.mxu0 0.0
        %3187 = vmatpush2.msra.mxu0 0.0
        %3188 = vmatprep.subr.mxu0 0.0
        %3189 = vmatpush2.msra.mxu0 0.0
        %3190 = vmatprep.subr.mxu0 0.0
        %3191 = vmatpush2.msra.mxu0 0.0
        %3192 = vmatprep.subr.mxu0 0.0
        %3193 = vmatpush2.msra.mxu0 0.0
        %3194 = vmatprep.subr.mxu0 0.0
        %3195 = vmatpush2.msra.mxu0 0.0
        %3196 = vmatprep.subr.mxu0 0.0
        %3197 = vmatpush2.msra.mxu0 0.0
        %3198 = vmatprep.subr.mxu0 0.0
        %3199 = vmatpush2.msra.mxu0 0.0
        %3200 = vmatprep.subr.mxu0 0.0
        %3201 = vmatpush2.msra.mxu0 0.0
        %3202 = vmatprep.subr.mxu0 0.0
        %3203 = vmatpush2.msra.mxu0 0.0
        %3204 = vmatprep.subr.mxu0 0.0
        %3205 = vmatpush2.msra.mxu0 0.0
        %3206 = vmatprep.subr.mxu0 0.0
        %3207 = vmatpush2.msra.mxu0 0.0
        %3208 = vmatprep.subr.mxu0 0.0
        %3209 = vmatpush2.msra.mxu0 0.0
        %3210 = vmatprep.mubr.f32.mxu0 0.0
        %3211 = vmatmul.mubr.f32.gmra.mxu0 %v2584
        %v3212 = vpop.f32.mrf.mxu0
        %v3213 = vadd.f32 %v1342, %v3212
        %v3214 = vpop.f32.mrf.mxu0
        %3215 = vdwg.mxu0
        %3216 = vmatprep.subr.mxu0 0.0
        %3217 = vmatpush1.msra.mxu0 0.0
        %3218 = vmatprep.subr.mxu0 0.0
        %3219 = vmatpush1.msra.mxu0 0.0
        %3220 = vmatprep.subr.mxu0 0.0
        %3221 = vmatpush1.msra.mxu0 0.0
        %3222 = vmatprep.subr.mxu0 0.0
        %3223 = vmatpush1.msra.mxu0 0.0
        %3224 = vmatprep.subr.mxu0 0.0
        %3225 = vmatpush1.msra.mxu0 0.0
        %3226 = vmatprep.subr.mxu0 0.0
        %3227 = vmatpush1.msra.mxu0 0.0
        %3228 = vmatprep.subr.mxu0 0.0
        %3229 = vmatpush1.msra.mxu0 0.0
        %3230 = vmatprep.subr.mxu0 0.0
        %3231 = vmatpush1.msra.mxu0 0.0
        %3232 = vmatprep.subr.mxu0 0.0
        %3233 = vmatpush1.msra.mxu0 0.0
        %3234 = vmatprep.subr.mxu0 0.0
        %3235 = vmatpush1.msra.mxu0 0.0
        %3236 = vmatprep.subr.mxu0 0.0
        %3237 = vmatpush1.msra.mxu0 0.0
        %3238 = vmatprep.subr.mxu0 0.0
        %3239 = vmatpush1.msra.mxu0 0.0
        %3240 = vmatprep.subr.mxu0 0.0
        %3241 = vmatpush1.msra.mxu0 %v698
        %3242 = vmatprep.subr.mxu0 0.0
        %3243 = vmatpush1.msra.mxu0 %v697
        %3244 = vmatprep.subr.mxu0 0.0
        %3245 = vmatpush1.msra.mxu0 %v696
        %3246 = vmatprep.subr.mxu0 0.0
        %3247 = vmatpush1.msra.mxu0 %v695
        %3248 = vmatprep.subr.mxu0 0.0
        %3249 = vmatpush2.msra.mxu0 0.0
        %3250 = vmatprep.subr.mxu0 0.0
        %3251 = vmatpush2.msra.mxu0 0.0
        %3252 = vmatprep.subr.mxu0 0.0
        %3253 = vmatpush2.msra.mxu0 0.0
        %3254 = vmatprep.subr.mxu0 0.0
        %3255 = vmatpush2.msra.mxu0 0.0
        %3256 = vmatprep.subr.mxu0 0.0
        %3257 = vmatpush2.msra.mxu0 0.0
        %3258 = vmatprep.subr.mxu0 0.0
        %3259 = vmatpush2.msra.mxu0 0.0
        %3260 = vmatprep.subr.mxu0 0.0
        %3261 = vmatpush2.msra.mxu0 0.0
        %3262 = vmatprep.subr.mxu0 0.0
        %3263 = vmatpush2.msra.mxu0 0.0
        %3264 = vmatprep.subr.mxu0 0.0
        %3265 = vmatpush2.msra.mxu0 0.0
        %3266 = vmatprep.subr.mxu0 0.0
        %3267 = vmatpush2.msra.mxu0 0.0
        %3268 = vmatprep.subr.mxu0 0.0
        %3269 = vmatpush2.msra.mxu0 0.0
        %3270 = vmatprep.subr.mxu0 0.0
        %3271 = vmatpush2.msra.mxu0 0.0
        %3272 = vmatprep.subr.mxu0 0.0
        %3273 = vmatpush2.msra.mxu0 0.0
        %3274 = vmatprep.subr.mxu0 0.0
        %3275 = vmatpush2.msra.mxu0 0.0
        %3276 = vmatprep.subr.mxu0 0.0
        %3277 = vmatpush2.msra.mxu0 0.0
        %3278 = vmatprep.subr.mxu0 0.0
        %3279 = vmatpush2.msra.mxu0 0.0
        %3280 = vmatprep.mubr.f32.mxu0 0.0
        %3281 = vmatmul.mubr.f32.gmra.mxu0 %v2584
        %v3282 = vpop.f32.mrf.mxu0
        %v3283 = vadd.f32 %v1346, %v3282
        %v3284 = vpop.f32.mrf.mxu0
        %3285 = vdwg.mxu0
        %3286 = vmatprep.subr.mxu0 0.0
        %3287 = vmatpush1.msra.mxu0 0.0
        %3288 = vmatprep.subr.mxu0 0.0
        %3289 = vmatpush1.msra.mxu0 0.0
        %3290 = vmatprep.subr.mxu0 0.0
        %3291 = vmatpush1.msra.mxu0 0.0
        %3292 = vmatprep.subr.mxu0 0.0
        %3293 = vmatpush1.msra.mxu0 0.0
        %3294 = vmatprep.subr.mxu0 0.0
        %3295 = vmatpush1.msra.mxu0 0.0
        %3296 = vmatprep.subr.mxu0 0.0
        %3297 = vmatpush1.msra.mxu0 0.0
        %3298 = vmatprep.subr.mxu0 0.0
        %3299 = vmatpush1.msra.mxu0 0.0
        %3300 = vmatprep.subr.mxu0 0.0
        %3301 = vmatpush1.msra.mxu0 0.0
        %3302 = vmatprep.subr.mxu0 0.0
        %3303 = vmatpush1.msra.mxu0 0.0
        %3304 = vmatprep.subr.mxu0 0.0
        %3305 = vmatpush1.msra.mxu0 0.0
        %3306 = vmatprep.subr.mxu0 0.0
        %3307 = vmatpush1.msra.mxu0 0.0
        %3308 = vmatprep.subr.mxu0 0.0
        %3309 = vmatpush1.msra.mxu0 0.0
        %3310 = vmatprep.subr.mxu0 0.0
        %3311 = vmatpush1.msra.mxu0 %v702
        %3312 = vmatprep.subr.mxu0 0.0
        %3313 = vmatpush1.msra.mxu0 %v701
        %3314 = vmatprep.subr.mxu0 0.0
        %3315 = vmatpush1.msra.mxu0 %v700
        %3316 = vmatprep.subr.mxu0 0.0
        %3317 = vmatpush1.msra.mxu0 %v699
        %3318 = vmatprep.subr.mxu0 0.0
        %3319 = vmatpush2.msra.mxu0 0.0
        %3320 = vmatprep.subr.mxu0 0.0
        %3321 = vmatpush2.msra.mxu0 0.0
        %3322 = vmatprep.subr.mxu0 0.0
        %3323 = vmatpush2.msra.mxu0 0.0
        %3324 = vmatprep.subr.mxu0 0.0
        %3325 = vmatpush2.msra.mxu0 0.0
        %3326 = vmatprep.subr.mxu0 0.0
        %3327 = vmatpush2.msra.mxu0 0.0
        %3328 = vmatprep.subr.mxu0 0.0
        %3329 = vmatpush2.msra.mxu0 0.0
        %3330 = vmatprep.subr.mxu0 0.0
        %3331 = vmatpush2.msra.mxu0 0.0
        %3332 = vmatprep.subr.mxu0 0.0
        %3333 = vmatpush2.msra.mxu0 0.0
        %3334 = vmatprep.subr.mxu0 0.0
        %3335 = vmatpush2.msra.mxu0 0.0
        %3336 = vmatprep.subr.mxu0 0.0
        %3337 = vmatpush2.msra.mxu0 0.0
        %3338 = vmatprep.subr.mxu0 0.0
        %3339 = vmatpush2.msra.mxu0 0.0
        %3340 = vmatprep.subr.mxu0 0.0
        %3341 = vmatpush2.msra.mxu0 0.0
        %3342 = vmatprep.subr.mxu0 0.0
        %3343 = vmatpush2.msra.mxu0 0.0
        %3344 = vmatprep.subr.mxu0 0.0
        %3345 = vmatpush2.msra.mxu0 0.0
        %3346 = vmatprep.subr.mxu0 0.0
        %3347 = vmatpush2.msra.mxu0 0.0
        %3348 = vmatprep.subr.mxu0 0.0
        %3349 = vmatpush2.msra.mxu0 0.0
        %3350 = vmatprep.mubr.f32.mxu0 0.0
        %3351 = vmatmul.mubr.f32.gmra.mxu0 %v2584
        %v3352 = vpop.f32.mrf.mxu0
        %v3353 = vadd.f32 %v1350, %v3352
        %v3354 = vpop.f32.mrf.mxu0
        %3355 = vdwg.mxu0
        %3356 = vmatprep.subr.mxu0 0.0
        %3357 = vmatpush1.msra.mxu0 0.0
        %3358 = vmatprep.subr.mxu0 0.0
        %3359 = vmatpush1.msra.mxu0 0.0
        %3360 = vmatprep.subr.mxu0 0.0
        %3361 = vmatpush1.msra.mxu0 0.0
        %3362 = vmatprep.subr.mxu0 0.0
        %3363 = vmatpush1.msra.mxu0 0.0
        %3364 = vmatprep.subr.mxu0 0.0
        %3365 = vmatpush1.msra.mxu0 0.0
        %3366 = vmatprep.subr.mxu0 0.0
        %3367 = vmatpush1.msra.mxu0 0.0
        %3368 = vmatprep.subr.mxu0 0.0
        %3369 = vmatpush1.msra.mxu0 0.0
        %3370 = vmatprep.subr.mxu0 0.0
        %3371 = vmatpush1.msra.mxu0 0.0
        %3372 = vmatprep.subr.mxu0 0.0
        %3373 = vmatpush1.msra.mxu0 0.0
        %3374 = vmatprep.subr.mxu0 0.0
        %3375 = vmatpush1.msra.mxu0 0.0
        %3376 = vmatprep.subr.mxu0 0.0
        %3377 = vmatpush1.msra.mxu0 0.0
        %3378 = vmatprep.subr.mxu0 0.0
        %3379 = vmatpush1.msra.mxu0 0.0
        %3380 = vmatprep.subr.mxu0 0.0
        %3381 = vmatpush1.msra.mxu0 %v706
        %3382 = vmatprep.subr.mxu0 0.0
        %3383 = vmatpush1.msra.mxu0 %v705
        %3384 = vmatprep.subr.mxu0 0.0
        %3385 = vmatpush1.msra.mxu0 %v704
        %3386 = vmatprep.subr.mxu0 0.0
        %3387 = vmatpush1.msra.mxu0 %v703
        %3388 = vmatprep.subr.mxu0 0.0
        %3389 = vmatpush2.msra.mxu0 0.0
        %3390 = vmatprep.subr.mxu0 0.0
        %3391 = vmatpush2.msra.mxu0 0.0
        %3392 = vmatprep.subr.mxu0 0.0
        %3393 = vmatpush2.msra.mxu0 0.0
        %3394 = vmatprep.subr.mxu0 0.0
        %3395 = vmatpush2.msra.mxu0 0.0
        %3396 = vmatprep.subr.mxu0 0.0
        %3397 = vmatpush2.msra.mxu0 0.0
        %3398 = vmatprep.subr.mxu0 0.0
        %3399 = vmatpush2.msra.mxu0 0.0
        %3400 = vmatprep.subr.mxu0 0.0
        %3401 = vmatpush2.msra.mxu0 0.0
        %3402 = vmatprep.subr.mxu0 0.0
        %3403 = vmatpush2.msra.mxu0 0.0
        %3404 = vmatprep.subr.mxu0 0.0
        %3405 = vmatpush2.msra.mxu0 0.0
        %3406 = vmatprep.subr.mxu0 0.0
        %3407 = vmatpush2.msra.mxu0 0.0
        %3408 = vmatprep.subr.mxu0 0.0
        %3409 = vmatpush2.msra.mxu0 0.0
        %3410 = vmatprep.subr.mxu0 0.0
        %3411 = vmatpush2.msra.mxu0 0.0
        %3412 = vmatprep.subr.mxu0 0.0
        %3413 = vmatpush2.msra.mxu0 0.0
        %3414 = vmatprep.subr.mxu0 0.0
        %3415 = vmatpush2.msra.mxu0 0.0
        %3416 = vmatprep.subr.mxu0 0.0
        %3417 = vmatpush2.msra.mxu0 0.0
        %3418 = vmatprep.subr.mxu0 0.0
        %3419 = vmatpush2.msra.mxu0 0.0
        %3420 = vmatprep.mubr.f32.mxu0 0.0
        %3421 = vmatmul.mubr.f32.gmra.mxu0 %v2584
        %v3422 = vpop.f32.mrf.mxu0
        %v3423 = vadd.f32 %v1354, %v3422
        %v3424 = vpop.f32.mrf.mxu0
        %3425 = vdwg.mxu0
        %v3427 = vsel %vm1639, %v2653, 0
        %v3430 = vsel %vm1639, %v2933, 0
        %3432 = vmatprep.subr.mxu0 0.0
        %3433 = vmatpush1.xpose.msra.mxu0 0.0
        %3434 = vmatprep.subr.mxu0 0.0
        %3435 = vmatpush1.xpose.msra.mxu0 0.0
        %3436 = vmatprep.subr.mxu0 0.0
        %3437 = vmatpush1.xpose.msra.mxu0 0.0
        %3438 = vmatprep.subr.mxu0 0.0
        %3439 = vmatpush1.xpose.msra.mxu0 0.0
        %3440 = vmatprep.subr.mxu0 0.0
        %3441 = vmatpush1.xpose.msra.mxu0 0.0
        %3442 = vmatprep.subr.mxu0 0.0
        %3443 = vmatpush1.xpose.msra.mxu0 0.0
        %3444 = vmatprep.subr.mxu0 0.0
        %3445 = vmatpush1.xpose.msra.mxu0 0.0
        %3446 = vmatprep.subr.mxu0 0.0
        %3447 = vmatpush1.xpose.msra.mxu0 0.0
        %3448 = vmatprep.subr.mxu0 0.0
        %3449 = vmatpush1.xpose.msra.mxu0 0.0
        %3450 = vmatprep.subr.mxu0 0.0
        %3451 = vmatpush1.xpose.msra.mxu0 0.0
        %3452 = vmatprep.subr.mxu0 0.0
        %3453 = vmatpush1.xpose.msra.mxu0 0.0
        %3454 = vmatprep.subr.mxu0 0.0
        %3455 = vmatpush1.xpose.msra.mxu0 0.0
        %3456 = vmatprep.subr.mxu0 0.0
        %3457 = vmatpush1.xpose.msra.mxu0 0.0
        %3458 = vmatprep.subr.mxu0 0.0
        %3459 = vmatpush1.xpose.msra.mxu0 0.0
        %3460 = vmatprep.subr.mxu0 0.0
        %3461 = vmatpush1.xpose.msra.mxu0 0.0
        %3462 = vmatprep.subr.mxu0 0.0
        %3463 = vmatpush1.xpose.msra.mxu0 %v3430
        %3464 = vmatprep.subr.mxu0 0.0
        %3465 = vmatpush2.xpose.msra.mxu0 0.0
        %3466 = vmatprep.subr.mxu0 0.0
        %3467 = vmatpush2.xpose.msra.mxu0 0.0
        %3468 = vmatprep.subr.mxu0 0.0
        %3469 = vmatpush2.xpose.msra.mxu0 0.0
        %3470 = vmatprep.subr.mxu0 0.0
        %3471 = vmatpush2.xpose.msra.mxu0 0.0
        %3472 = vmatprep.subr.mxu0 0.0
        %3473 = vmatpush2.xpose.msra.mxu0 0.0
        %3474 = vmatprep.subr.mxu0 0.0
        %3475 = vmatpush2.xpose.msra.mxu0 0.0
        %3476 = vmatprep.subr.mxu0 0.0
        %3477 = vmatpush2.xpose.msra.mxu0 0.0
        %3478 = vmatprep.subr.mxu0 0.0
        %3479 = vmatpush2.xpose.msra.mxu0 0.0
        %3480 = vmatprep.subr.mxu0 0.0
        %3481 = vmatpush2.xpose.msra.mxu0 0.0
        %3482 = vmatprep.subr.mxu0 0.0
        %3483 = vmatpush2.xpose.msra.mxu0 0.0
        %3484 = vmatprep.subr.mxu0 0.0
        %3485 = vmatpush2.xpose.msra.mxu0 0.0
        %3486 = vmatprep.subr.mxu0 0.0
        %3487 = vmatpush2.xpose.msra.mxu0 0.0
        %3488 = vmatprep.subr.mxu0 0.0
        %3489 = vmatpush2.xpose.msra.mxu0 0.0
        %3490 = vmatprep.subr.mxu0 0.0
        %3491 = vmatpush2.xpose.msra.mxu0 0.0
        %3492 = vmatprep.subr.mxu0 0.0
        %3493 = vmatpush2.xpose.msra.mxu0 0.0
        %3494 = vmatprep.subr.mxu0 0.0
        %3495 = vmatpush2.xpose.msra.mxu0 0.0
        %3496 = vmatprep.mubr.f32.mxu0 0.0
        %3497 = vmatmul.mubr.f32.gmra.mxu0 %v3427
        %v3498 = vpop.f32.mrf.mxu0
        %v3499 = vadd.f32 0.0, %v3498
        %v3500 = vpop.f32.mrf.mxu0
        %3501 = vdwg.mxu0
        %v3503 = vsel %vm1639, %v2723, 0
        %v3506 = vsel %vm1639, %v3003, 0
        %3508 = vmatprep.subr.mxu0 0.0
        %3509 = vmatpush1.xpose.msra.mxu0 0.0
        %3510 = vmatprep.subr.mxu0 0.0
        %3511 = vmatpush1.xpose.msra.mxu0 0.0
        %3512 = vmatprep.subr.mxu0 0.0
        %3513 = vmatpush1.xpose.msra.mxu0 0.0
        %3514 = vmatprep.subr.mxu0 0.0
        %3515 = vmatpush1.xpose.msra.mxu0 0.0
        %3516 = vmatprep.subr.mxu0 0.0
        %3517 = vmatpush1.xpose.msra.mxu0 0.0
        %3518 = vmatprep.subr.mxu0 0.0
        %3519 = vmatpush1.xpose.msra.mxu0 0.0
        %3520 = vmatprep.subr.mxu0 0.0
        %3521 = vmatpush1.xpose.msra.mxu0 0.0
        %3522 = vmatprep.subr.mxu0 0.0
        %3523 = vmatpush1.xpose.msra.mxu0 0.0
        %3524 = vmatprep.subr.mxu0 0.0
        %3525 = vmatpush1.xpose.msra.mxu0 0.0
        %3526 = vmatprep.subr.mxu0 0.0
        %3527 = vmatpush1.xpose.msra.mxu0 0.0
        %3528 = vmatprep.subr.mxu0 0.0
        %3529 = vmatpush1.xpose.msra.mxu0 0.0
        %3530 = vmatprep.subr.mxu0 0.0
        %3531 = vmatpush1.xpose.msra.mxu0 0.0
        %3532 = vmatprep.subr.mxu0 0.0
        %3533 = vmatpush1.xpose.msra.mxu0 0.0
        %3534 = vmatprep.subr.mxu0 0.0
        %3535 = vmatpush1.xpose.msra.mxu0 0.0
        %3536 = vmatprep.subr.mxu0 0.0
        %3537 = vmatpush1.xpose.msra.mxu0 0.0
        %3538 = vmatprep.subr.mxu0 0.0
        %3539 = vmatpush1.xpose.msra.mxu0 %v3506
        %3540 = vmatprep.subr.mxu0 0.0
        %3541 = vmatpush2.xpose.msra.mxu0 0.0
        %3542 = vmatprep.subr.mxu0 0.0
        %3543 = vmatpush2.xpose.msra.mxu0 0.0
        %3544 = vmatprep.subr.mxu0 0.0
        %3545 = vmatpush2.xpose.msra.mxu0 0.0
        %3546 = vmatprep.subr.mxu0 0.0
        %3547 = vmatpush2.xpose.msra.mxu0 0.0
        %3548 = vmatprep.subr.mxu0 0.0
        %3549 = vmatpush2.xpose.msra.mxu0 0.0
        %3550 = vmatprep.subr.mxu0 0.0
        %3551 = vmatpush2.xpose.msra.mxu0 0.0
        %3552 = vmatprep.subr.mxu0 0.0
        %3553 = vmatpush2.xpose.msra.mxu0 0.0
        %3554 = vmatprep.subr.mxu0 0.0
        %3555 = vmatpush2.xpose.msra.mxu0 0.0
        %3556 = vmatprep.subr.mxu0 0.0
        %3557 = vmatpush2.xpose.msra.mxu0 0.0
        %3558 = vmatprep.subr.mxu0 0.0
        %3559 = vmatpush2.xpose.msra.mxu0 0.0
        %3560 = vmatprep.subr.mxu0 0.0
        %3561 = vmatpush2.xpose.msra.mxu0 0.0
        %3562 = vmatprep.subr.mxu0 0.0
        %3563 = vmatpush2.xpose.msra.mxu0 0.0
        %3564 = vmatprep.subr.mxu0 0.0
        %3565 = vmatpush2.xpose.msra.mxu0 0.0
        %3566 = vmatprep.subr.mxu0 0.0
        %3567 = vmatpush2.xpose.msra.mxu0 0.0
        %3568 = vmatprep.subr.mxu0 0.0
        %3569 = vmatpush2.xpose.msra.mxu0 0.0
        %3570 = vmatprep.subr.mxu0 0.0
        %3571 = vmatpush2.xpose.msra.mxu0 0.0
        %3572 = vmatprep.mubr.f32.mxu0 0.0
        %3573 = vmatmul.mubr.f32.gmra.mxu0 %v3503
        %v3574 = vpop.f32.mrf.mxu0
        %v3575 = vadd.f32 0.0, %v3574
        %v3576 = vpop.f32.mrf.mxu0
        %3577 = vdwg.mxu0
        %v3579 = vsel %vm1639, %v2793, 0
        %v3582 = vsel %vm1639, %v3073, 0
        %3584 = vmatprep.subr.mxu0 0.0
        %3585 = vmatpush1.xpose.msra.mxu0 0.0
        %3586 = vmatprep.subr.mxu0 0.0
        %3587 = vmatpush1.xpose.msra.mxu0 0.0
        %3588 = vmatprep.subr.mxu0 0.0
        %3589 = vmatpush1.xpose.msra.mxu0 0.0
        %3590 = vmatprep.subr.mxu0 0.0
        %3591 = vmatpush1.xpose.msra.mxu0 0.0
        %3592 = vmatprep.subr.mxu0 0.0
        %3593 = vmatpush1.xpose.msra.mxu0 0.0
        %3594 = vmatprep.subr.mxu0 0.0
        %3595 = vmatpush1.xpose.msra.mxu0 0.0
        %3596 = vmatprep.subr.mxu0 0.0
        %3597 = vmatpush1.xpose.msra.mxu0 0.0
        %3598 = vmatprep.subr.mxu0 0.0
        %3599 = vmatpush1.xpose.msra.mxu0 0.0
        %3600 = vmatprep.subr.mxu0 0.0
        %3601 = vmatpush1.xpose.msra.mxu0 0.0
        %3602 = vmatprep.subr.mxu0 0.0
        %3603 = vmatpush1.xpose.msra.mxu0 0.0
        %3604 = vmatprep.subr.mxu0 0.0
        %3605 = vmatpush1.xpose.msra.mxu0 0.0
        %3606 = vmatprep.subr.mxu0 0.0
        %3607 = vmatpush1.xpose.msra.mxu0 0.0
        %3608 = vmatprep.subr.mxu0 0.0
        %3609 = vmatpush1.xpose.msra.mxu0 0.0
        %3610 = vmatprep.subr.mxu0 0.0
        %3611 = vmatpush1.xpose.msra.mxu0 0.0
        %3612 = vmatprep.subr.mxu0 0.0
        %3613 = vmatpush1.xpose.msra.mxu0 0.0
        %3614 = vmatprep.subr.mxu0 0.0
        %3615 = vmatpush1.xpose.msra.mxu0 %v3582
        %3616 = vmatprep.subr.mxu0 0.0
        %3617 = vmatpush2.xpose.msra.mxu0 0.0
        %3618 = vmatprep.subr.mxu0 0.0
        %3619 = vmatpush2.xpose.msra.mxu0 0.0
        %3620 = vmatprep.subr.mxu0 0.0
        %3621 = vmatpush2.xpose.msra.mxu0 0.0
        %3622 = vmatprep.subr.mxu0 0.0
        %3623 = vmatpush2.xpose.msra.mxu0 0.0
        %3624 = vmatprep.subr.mxu0 0.0
        %3625 = vmatpush2.xpose.msra.mxu0 0.0
        %3626 = vmatprep.subr.mxu0 0.0
        %3627 = vmatpush2.xpose.msra.mxu0 0.0
        %3628 = vmatprep.subr.mxu0 0.0
        %3629 = vmatpush2.xpose.msra.mxu0 0.0
        %3630 = vmatprep.subr.mxu0 0.0
        %3631 = vmatpush2.xpose.msra.mxu0 0.0
        %3632 = vmatprep.subr.mxu0 0.0
        %3633 = vmatpush2.xpose.msra.mxu0 0.0
        %3634 = vmatprep.subr.mxu0 0.0
        %3635 = vmatpush2.xpose.msra.mxu0 0.0
        %3636 = vmatprep.subr.mxu0 0.0
        %3637 = vmatpush2.xpose.msra.mxu0 0.0
        %3638 = vmatprep.subr.mxu0 0.0
        %3639 = vmatpush2.xpose.msra.mxu0 0.0
        %3640 = vmatprep.subr.mxu0 0.0
        %3641 = vmatpush2.xpose.msra.mxu0 0.0
        %3642 = vmatprep.subr.mxu0 0.0
        %3643 = vmatpush2.xpose.msra.mxu0 0.0
        %3644 = vmatprep.subr.mxu0 0.0
        %3645 = vmatpush2.xpose.msra.mxu0 0.0
        %3646 = vmatprep.subr.mxu0 0.0
        %3647 = vmatpush2.xpose.msra.mxu0 0.0
        %3648 = vmatprep.mubr.f32.mxu0 0.0
        %3649 = vmatmul.mubr.f32.gmra.mxu0 %v3579
        %v3650 = vpop.f32.mrf.mxu0
        %v3651 = vadd.f32 0.0, %v3650
        %v3652 = vpop.f32.mrf.mxu0
        %3653 = vdwg.mxu0
        %v3655 = vsel %vm1639, %v2863, 0
        %v3658 = vsel %vm1639, %v3143, 0
        %3660 = vmatprep.subr.mxu0 0.0
        %3661 = vmatpush1.xpose.msra.mxu0 0.0
        %3662 = vmatprep.subr.mxu0 0.0
        %3663 = vmatpush1.xpose.msra.mxu0 0.0
        %3664 = vmatprep.subr.mxu0 0.0
        %3665 = vmatpush1.xpose.msra.mxu0 0.0
        %3666 = vmatprep.subr.mxu0 0.0
        %3667 = vmatpush1.xpose.msra.mxu0 0.0
        %3668 = vmatprep.subr.mxu0 0.0
        %3669 = vmatpush1.xpose.msra.mxu0 0.0
        %3670 = vmatprep.subr.mxu0 0.0
        %3671 = vmatpush1.xpose.msra.mxu0 0.0
        %3672 = vmatprep.subr.mxu0 0.0
        %3673 = vmatpush1.xpose.msra.mxu0 0.0
        %3674 = vmatprep.subr.mxu0 0.0
        %3675 = vmatpush1.xpose.msra.mxu0 0.0
        %3676 = vmatprep.subr.mxu0 0.0
        %3677 = vmatpush1.xpose.msra.mxu0 0.0
        %3678 = vmatprep.subr.mxu0 0.0
        %3679 = vmatpush1.xpose.msra.mxu0 0.0
        %3680 = vmatprep.subr.mxu0 0.0
        %3681 = vmatpush1.xpose.msra.mxu0 0.0
        %3682 = vmatprep.subr.mxu0 0.0
        %3683 = vmatpush1.xpose.msra.mxu0 0.0
        %3684 = vmatprep.subr.mxu0 0.0
        %3685 = vmatpush1.xpose.msra.mxu0 0.0
        %3686 = vmatprep.subr.mxu0 0.0
        %3687 = vmatpush1.xpose.msra.mxu0 0.0
        %3688 = vmatprep.subr.mxu0 0.0
        %3689 = vmatpush1.xpose.msra.mxu0 0.0
        %3690 = vmatprep.subr.mxu0 0.0
        %3691 = vmatpush1.xpose.msra.mxu0 %v3658
        %3692 = vmatprep.subr.mxu0 0.0
        %3693 = vmatpush2.xpose.msra.mxu0 0.0
        %3694 = vmatprep.subr.mxu0 0.0
        %3695 = vmatpush2.xpose.msra.mxu0 0.0
        %3696 = vmatprep.subr.mxu0 0.0
        %3697 = vmatpush2.xpose.msra.mxu0 0.0
        %3698 = vmatprep.subr.mxu0 0.0
        %3699 = vmatpush2.xpose.msra.mxu0 0.0
        %3700 = vmatprep.subr.mxu0 0.0
        %3701 = vmatpush2.xpose.msra.mxu0 0.0
        %3702 = vmatprep.subr.mxu0 0.0
        %3703 = vmatpush2.xpose.msra.mxu0 0.0
        %3704 = vmatprep.subr.mxu0 0.0
        %3705 = vmatpush2.xpose.msra.mxu0 0.0
        %3706 = vmatprep.subr.mxu0 0.0
        %3707 = vmatpush2.xpose.msra.mxu0 0.0
        %3708 = vmatprep.subr.mxu0 0.0
        %3709 = vmatpush2.xpose.msra.mxu0 0.0
        %3710 = vmatprep.subr.mxu0 0.0
        %3711 = vmatpush2.xpose.msra.mxu0 0.0
        %3712 = vmatprep.subr.mxu0 0.0
        %3713 = vmatpush2.xpose.msra.mxu0 0.0
        %3714 = vmatprep.subr.mxu0 0.0
        %3715 = vmatpush2.xpose.msra.mxu0 0.0
        %3716 = vmatprep.subr.mxu0 0.0
        %3717 = vmatpush2.xpose.msra.mxu0 0.0
        %3718 = vmatprep.subr.mxu0 0.0
        %3719 = vmatpush2.xpose.msra.mxu0 0.0
        %3720 = vmatprep.subr.mxu0 0.0
        %3721 = vmatpush2.xpose.msra.mxu0 0.0
        %3722 = vmatprep.subr.mxu0 0.0
        %3723 = vmatpush2.xpose.msra.mxu0 0.0
        %3724 = vmatprep.mubr.f32.mxu0 0.0
        %3725 = vmatmul.mubr.f32.gmra.mxu0 %v3655
        %v3726 = vpop.f32.mrf.mxu0
        %v3727 = vadd.f32 0.0, %v3726
        %v3728 = vpop.f32.mrf.mxu0
        %3729 = vdwg.mxu0
        %v3730 = vmul.f32 %v3499, 0.35355338
        %v3731 = vmul.f32 %v3575, 0.35355338
        %v3732 = vmul.f32 %v3651, 0.35355338
        %v3733 = vmul.f32 %v3727, 0.35355338
        %v3734 = vsel %vm1639, %v3730, -inf
        %3735 = vmax.xlane.f32.xlu0 %v3734
        %v3736 = vpop.xlane.xlu0 %3735
        %v3737 = vsel %vm1639, %v3731, -inf
        %3738 = vmax.xlane.f32.xlu0 %v3737
        %v3739 = vpop.xlane.xlu0 %3738
        %v3740 = vsel %vm1639, %v3732, -inf
        %3741 = vmax.xlane.f32.xlu0 %v3740
        %v3742 = vpop.xlane.xlu0 %3741
        %v3743 = vsel %vm1639, %v3733, -inf
        %3744 = vmax.xlane.f32.xlu0 %v3743
        %v3745 = vpop.xlane.xlu0 %3744
        %v3746 = vsub.f32 %v3730, %v3736
        %v3747 = vsub.f32 %v3731, %v3739
        %v3748 = vsub.f32 %v3732, %v3742
        %v3749 = vsub.f32 %v3733, %v3745
        %v3750 = vmul.f32 %v3746, 1.442695
        %v3751 = vpow.pop %v3750
        %v3752 = vmul.f32 %v3747, 1.442695
        %v3753 = vpow.pop %v3752
        %v3754 = vmul.f32 %v3748, 1.442695
        %v3755 = vpow.pop %v3754
        %v3756 = vmul.f32 %v3749, 1.442695
        %v3757 = vpow.pop %v3756
        %v3758 = vsel %vm1639, %v3751, 0.0
        %3759 = vadd.xlane.f32.xlu0 %v3758
        %v3760 = vpop.xlane.xlu0 %3759
        %v3761 = vsel %vm1639, %v3753, 0.0
        %3762 = vadd.xlane.f32.xlu0 %v3761
        %v3763 = vpop.xlane.xlu0 %3762
        %v3764 = vsel %vm1639, %v3755, 0.0
        %3765 = vadd.xlane.f32.xlu0 %v3764
        %v3766 = vpop.xlane.xlu0 %3765
        %v3767 = vsel %vm1639, %v3757, 0.0
        %3768 = vadd.xlane.f32.xlu0 %v3767
        %v3769 = vpop.xlane.xlu0 %3768
        %v3770 = vrcp.pop %v3760
        %v3771 = vrcp.pop %v3763
        %v3772 = vrcp.pop %v3766
        %v3773 = vrcp.pop %v3769
        %v3774 = vmul.f32 %v3751, %v3770
        %v3775 = vmul.f32 %v3753, %v3771
        %v3776 = vmul.f32 %v3755, %v3772
        %v3777 = vmul.f32 %v3757, %v3773
        %v3779 = vsel %vm1639, %v3774, 0
        %3781 = vmatprep.subr.mxu0 0.0
        %3782 = vmatpush1.msra.mxu0 0.0
        %3783 = vmatprep.subr.mxu0 0.0
        %3784 = vmatpush1.msra.mxu0 0.0
        %3785 = vmatprep.subr.mxu0 0.0
        %3786 = vmatpush1.msra.mxu0 0.0
        %3787 = vmatprep.subr.mxu0 0.0
        %3788 = vmatpush1.msra.mxu0 0.0
        %3789 = vmatprep.subr.mxu0 0.0
        %3790 = vmatpush1.msra.mxu0 0.0
        %3791 = vmatprep.subr.mxu0 0.0
        %3792 = vmatpush1.msra.mxu0 0.0
        %3793 = vmatprep.subr.mxu0 0.0
        %3794 = vmatpush1.msra.mxu0 0.0
        %3795 = vmatprep.subr.mxu0 0.0
        %3796 = vmatpush1.msra.mxu0 0.0
        %3797 = vmatprep.subr.mxu0 0.0
        %3798 = vmatpush1.msra.mxu0 0.0
        %3799 = vmatprep.subr.mxu0 0.0
        %3800 = vmatpush1.msra.mxu0 0.0
        %3801 = vmatprep.subr.mxu0 0.0
        %3802 = vmatpush1.msra.mxu0 0.0
        %3803 = vmatprep.subr.mxu0 0.0
        %3804 = vmatpush1.msra.mxu0 0.0
        %3805 = vmatprep.subr.mxu0 0.0
        %3806 = vmatpush1.msra.mxu0 0.0
        %3807 = vmatprep.subr.mxu0 0.0
        %3808 = vmatpush1.msra.mxu0 0.0
        %3809 = vmatprep.subr.mxu0 0.0
        %3810 = vmatpush1.msra.mxu0 0.0
        %3811 = vmatprep.subr.mxu0 0.0
        %3812 = vmatpush1.msra.mxu0 %v3213
        %3813 = vmatprep.subr.mxu0 0.0
        %3814 = vmatpush2.msra.mxu0 0.0
        %3815 = vmatprep.subr.mxu0 0.0
        %3816 = vmatpush2.msra.mxu0 0.0
        %3817 = vmatprep.subr.mxu0 0.0
        %3818 = vmatpush2.msra.mxu0 0.0
        %3819 = vmatprep.subr.mxu0 0.0
        %3820 = vmatpush2.msra.mxu0 0.0
        %3821 = vmatprep.subr.mxu0 0.0
        %3822 = vmatpush2.msra.mxu0 0.0
        %3823 = vmatprep.subr.mxu0 0.0
        %3824 = vmatpush2.msra.mxu0 0.0
        %3825 = vmatprep.subr.mxu0 0.0
        %3826 = vmatpush2.msra.mxu0 0.0
        %3827 = vmatprep.subr.mxu0 0.0
        %3828 = vmatpush2.msra.mxu0 0.0
        %3829 = vmatprep.subr.mxu0 0.0
        %3830 = vmatpush2.msra.mxu0 0.0
        %3831 = vmatprep.subr.mxu0 0.0
        %3832 = vmatpush2.msra.mxu0 0.0
        %3833 = vmatprep.subr.mxu0 0.0
        %3834 = vmatpush2.msra.mxu0 0.0
        %3835 = vmatprep.subr.mxu0 0.0
        %3836 = vmatpush2.msra.mxu0 0.0
        %3837 = vmatprep.subr.mxu0 0.0
        %3838 = vmatpush2.msra.mxu0 0.0
        %3839 = vmatprep.subr.mxu0 0.0
        %3840 = vmatpush2.msra.mxu0 0.0
        %3841 = vmatprep.subr.mxu0 0.0
        %3842 = vmatpush2.msra.mxu0 0.0
        %3843 = vmatprep.subr.mxu0 0.0
        %3844 = vmatpush2.msra.mxu0 0.0
        %3845 = vmatprep.mubr.f32.mxu0 0.0
        %3846 = vmatmul.mubr.f32.gmra.mxu0 %v3779
        %v3847 = vpop.f32.mrf.mxu0
        %v3848 = vadd.f32 0.0, %v3847
        %v3849 = vpop.f32.mrf.mxu0
        %3850 = vdwg.mxu0
        %v3852 = vsel %vm1639, %v3775, 0
        %3854 = vmatprep.subr.mxu0 0.0
        %3855 = vmatpush1.msra.mxu0 0.0
        %3856 = vmatprep.subr.mxu0 0.0
        %3857 = vmatpush1.msra.mxu0 0.0
        %3858 = vmatprep.subr.mxu0 0.0
        %3859 = vmatpush1.msra.mxu0 0.0
        %3860 = vmatprep.subr.mxu0 0.0
        %3861 = vmatpush1.msra.mxu0 0.0
        %3862 = vmatprep.subr.mxu0 0.0
        %3863 = vmatpush1.msra.mxu0 0.0
        %3864 = vmatprep.subr.mxu0 0.0
        %3865 = vmatpush1.msra.mxu0 0.0
        %3866 = vmatprep.subr.mxu0 0.0
        %3867 = vmatpush1.msra.mxu0 0.0
        %3868 = vmatprep.subr.mxu0 0.0
        %3869 = vmatpush1.msra.mxu0 0.0
        %3870 = vmatprep.subr.mxu0 0.0
        %3871 = vmatpush1.msra.mxu0 0.0
        %3872 = vmatprep.subr.mxu0 0.0
        %3873 = vmatpush1.msra.mxu0 0.0
        %3874 = vmatprep.subr.mxu0 0.0
        %3875 = vmatpush1.msra.mxu0 0.0
        %3876 = vmatprep.subr.mxu0 0.0
        %3877 = vmatpush1.msra.mxu0 0.0
        %3878 = vmatprep.subr.mxu0 0.0
        %3879 = vmatpush1.msra.mxu0 0.0
        %3880 = vmatprep.subr.mxu0 0.0
        %3881 = vmatpush1.msra.mxu0 0.0
        %3882 = vmatprep.subr.mxu0 0.0
        %3883 = vmatpush1.msra.mxu0 0.0
        %3884 = vmatprep.subr.mxu0 0.0
        %3885 = vmatpush1.msra.mxu0 %v3283
        %3886 = vmatprep.subr.mxu0 0.0
        %3887 = vmatpush2.msra.mxu0 0.0
        %3888 = vmatprep.subr.mxu0 0.0
        %3889 = vmatpush2.msra.mxu0 0.0
        %3890 = vmatprep.subr.mxu0 0.0
        %3891 = vmatpush2.msra.mxu0 0.0
        %3892 = vmatprep.subr.mxu0 0.0
        %3893 = vmatpush2.msra.mxu0 0.0
        %3894 = vmatprep.subr.mxu0 0.0
        %3895 = vmatpush2.msra.mxu0 0.0
        %3896 = vmatprep.subr.mxu0 0.0
        %3897 = vmatpush2.msra.mxu0 0.0
        %3898 = vmatprep.subr.mxu0 0.0
        %3899 = vmatpush2.msra.mxu0 0.0
        %3900 = vmatprep.subr.mxu0 0.0
        %3901 = vmatpush2.msra.mxu0 0.0
        %3902 = vmatprep.subr.mxu0 0.0
        %3903 = vmatpush2.msra.mxu0 0.0
        %3904 = vmatprep.subr.mxu0 0.0
        %3905 = vmatpush2.msra.mxu0 0.0
        %3906 = vmatprep.subr.mxu0 0.0
        %3907 = vmatpush2.msra.mxu0 0.0
        %3908 = vmatprep.subr.mxu0 0.0
        %3909 = vmatpush2.msra.mxu0 0.0
        %3910 = vmatprep.subr.mxu0 0.0
        %3911 = vmatpush2.msra.mxu0 0.0
        %3912 = vmatprep.subr.mxu0 0.0
        %3913 = vmatpush2.msra.mxu0 0.0
        %3914 = vmatprep.subr.mxu0 0.0
        %3915 = vmatpush2.msra.mxu0 0.0
        %3916 = vmatprep.subr.mxu0 0.0
        %3917 = vmatpush2.msra.mxu0 0.0
        %3918 = vmatprep.mubr.f32.mxu0 0.0
        %3919 = vmatmul.mubr.f32.gmra.mxu0 %v3852
        %v3920 = vpop.f32.mrf.mxu0
        %v3921 = vadd.f32 0.0, %v3920
        %v3922 = vpop.f32.mrf.mxu0
        %3923 = vdwg.mxu0
        %v3925 = vsel %vm1639, %v3776, 0
        %3927 = vmatprep.subr.mxu0 0.0
        %3928 = vmatpush1.msra.mxu0 0.0
        %3929 = vmatprep.subr.mxu0 0.0
        %3930 = vmatpush1.msra.mxu0 0.0
        %3931 = vmatprep.subr.mxu0 0.0
        %3932 = vmatpush1.msra.mxu0 0.0
        %3933 = vmatprep.subr.mxu0 0.0
        %3934 = vmatpush1.msra.mxu0 0.0
        %3935 = vmatprep.subr.mxu0 0.0
        %3936 = vmatpush1.msra.mxu0 0.0
        %3937 = vmatprep.subr.mxu0 0.0
        %3938 = vmatpush1.msra.mxu0 0.0
        %3939 = vmatprep.subr.mxu0 0.0
        %3940 = vmatpush1.msra.mxu0 0.0
        %3941 = vmatprep.subr.mxu0 0.0
        %3942 = vmatpush1.msra.mxu0 0.0
        %3943 = vmatprep.subr.mxu0 0.0
        %3944 = vmatpush1.msra.mxu0 0.0
        %3945 = vmatprep.subr.mxu0 0.0
        %3946 = vmatpush1.msra.mxu0 0.0
        %3947 = vmatprep.subr.mxu0 0.0
        %3948 = vmatpush1.msra.mxu0 0.0
        %3949 = vmatprep.subr.mxu0 0.0
        %3950 = vmatpush1.msra.mxu0 0.0
        %3951 = vmatprep.subr.mxu0 0.0
        %3952 = vmatpush1.msra.mxu0 0.0
        %3953 = vmatprep.subr.mxu0 0.0
        %3954 = vmatpush1.msra.mxu0 0.0
        %3955 = vmatprep.subr.mxu0 0.0
        %3956 = vmatpush1.msra.mxu0 0.0
        %3957 = vmatprep.subr.mxu0 0.0
        %3958 = vmatpush1.msra.mxu0 %v3353
        %3959 = vmatprep.subr.mxu0 0.0
        %3960 = vmatpush2.msra.mxu0 0.0
        %3961 = vmatprep.subr.mxu0 0.0
        %3962 = vmatpush2.msra.mxu0 0.0
        %3963 = vmatprep.subr.mxu0 0.0
        %3964 = vmatpush2.msra.mxu0 0.0
        %3965 = vmatprep.subr.mxu0 0.0
        %3966 = vmatpush2.msra.mxu0 0.0
        %3967 = vmatprep.subr.mxu0 0.0
        %3968 = vmatpush2.msra.mxu0 0.0
        %3969 = vmatprep.subr.mxu0 0.0
        %3970 = vmatpush2.msra.mxu0 0.0
        %3971 = vmatprep.subr.mxu0 0.0
        %3972 = vmatpush2.msra.mxu0 0.0
        %3973 = vmatprep.subr.mxu0 0.0
        %3974 = vmatpush2.msra.mxu0 0.0
        %3975 = vmatprep.subr.mxu0 0.0
        %3976 = vmatpush2.msra.mxu0 0.0
        %3977 = vmatprep.subr.mxu0 0.0
        %3978 = vmatpush2.msra.mxu0 0.0
        %3979 = vmatprep.subr.mxu0 0.0
        %3980 = vmatpush2.msra.mxu0 0.0
        %3981 = vmatprep.subr.mxu0 0.0
        %3982 = vmatpush2.msra.mxu0 0.0
        %3983 = vmatprep.subr.mxu0 0.0
        %3984 = vmatpush2.msra.mxu0 0.0
        %3985 = vmatprep.subr.mxu0 0.0
        %3986 = vmatpush2.msra.mxu0 0.0
        %3987 = vmatprep.subr.mxu0 0.0
        %3988 = vmatpush2.msra.mxu0 0.0
        %3989 = vmatprep.subr.mxu0 0.0
        %3990 = vmatpush2.msra.mxu0 0.0
        %3991 = vmatprep.mubr.f32.mxu0 0.0
        %3992 = vmatmul.mubr.f32.gmra.mxu0 %v3925
        %v3993 = vpop.f32.mrf.mxu0
        %v3994 = vadd.f32 0.0, %v3993
        %v3995 = vpop.f32.mrf.mxu0
        %3996 = vdwg.mxu0
        %v3998 = vsel %vm1639, %v3777, 0
        %4000 = vmatprep.subr.mxu0 0.0
        %4001 = vmatpush1.msra.mxu0 0.0
        %4002 = vmatprep.subr.mxu0 0.0
        %4003 = vmatpush1.msra.mxu0 0.0
        %4004 = vmatprep.subr.mxu0 0.0
        %4005 = vmatpush1.msra.mxu0 0.0
        %4006 = vmatprep.subr.mxu0 0.0
        %4007 = vmatpush1.msra.mxu0 0.0
        %4008 = vmatprep.subr.mxu0 0.0
        %4009 = vmatpush1.msra.mxu0 0.0
        %4010 = vmatprep.subr.mxu0 0.0
        %4011 = vmatpush1.msra.mxu0 0.0
        %4012 = vmatprep.subr.mxu0 0.0
        %4013 = vmatpush1.msra.mxu0 0.0
        %4014 = vmatprep.subr.mxu0 0.0
        %4015 = vmatpush1.msra.mxu0 0.0
        %4016 = vmatprep.subr.mxu0 0.0
        %4017 = vmatpush1.msra.mxu0 0.0
        %4018 = vmatprep.subr.mxu0 0.0
        %4019 = vmatpush1.msra.mxu0 0.0
        %4020 = vmatprep.subr.mxu0 0.0
        %4021 = vmatpush1.msra.mxu0 0.0
        %4022 = vmatprep.subr.mxu0 0.0
        %4023 = vmatpush1.msra.mxu0 0.0
        %4024 = vmatprep.subr.mxu0 0.0
        %4025 = vmatpush1.msra.mxu0 0.0
        %4026 = vmatprep.subr.mxu0 0.0
        %4027 = vmatpush1.msra.mxu0 0.0
        %4028 = vmatprep.subr.mxu0 0.0
        %4029 = vmatpush1.msra.mxu0 0.0
        %4030 = vmatprep.subr.mxu0 0.0
        %4031 = vmatpush1.msra.mxu0 %v3423
        %4032 = vmatprep.subr.mxu0 0.0
        %4033 = vmatpush2.msra.mxu0 0.0
        %4034 = vmatprep.subr.mxu0 0.0
        %4035 = vmatpush2.msra.mxu0 0.0
        %4036 = vmatprep.subr.mxu0 0.0
        %4037 = vmatpush2.msra.mxu0 0.0
        %4038 = vmatprep.subr.mxu0 0.0
        %4039 = vmatpush2.msra.mxu0 0.0
        %4040 = vmatprep.subr.mxu0 0.0
        %4041 = vmatpush2.msra.mxu0 0.0
        %4042 = vmatprep.subr.mxu0 0.0
        %4043 = vmatpush2.msra.mxu0 0.0
        %4044 = vmatprep.subr.mxu0 0.0
        %4045 = vmatpush2.msra.mxu0 0.0
        %4046 = vmatprep.subr.mxu0 0.0
        %4047 = vmatpush2.msra.mxu0 0.0
        %4048 = vmatprep.subr.mxu0 0.0
        %4049 = vmatpush2.msra.mxu0 0.0
        %4050 = vmatprep.subr.mxu0 0.0
        %4051 = vmatpush2.msra.mxu0 0.0
        %4052 = vmatprep.subr.mxu0 0.0
        %4053 = vmatpush2.msra.mxu0 0.0
        %4054 = vmatprep.subr.mxu0 0.0
        %4055 = vmatpush2.msra.mxu0 0.0
        %4056 = vmatprep.subr.mxu0 0.0
        %4057 = vmatpush2.msra.mxu0 0.0
        %4058 = vmatprep.subr.mxu0 0.0
        %4059 = vmatpush2.msra.mxu0 0.0
        %4060 = vmatprep.subr.mxu0 0.0
        %4061 = vmatpush2.msra.mxu0 0.0
        %4062 = vmatprep.subr.mxu0 0.0
        %4063 = vmatpush2.msra.mxu0 0.0
        %4064 = vmatprep.mubr.f32.mxu0 0.0
        %4065 = vmatmul.mubr.f32.gmra.mxu0 %v3998
        %v4066 = vpop.f32.mrf.mxu0
        %v4067 = vadd.f32 0.0, %v4066
        %v4068 = vpop.f32.mrf.mxu0
        %4069 = vdwg.mxu0
        %v4071 = vsel %vm1639, %v3848, 0
        %4073 = vmatprep.subr.mxu0 0.0
        %4074 = vmatpush1.msra.mxu0 0.0
        %4075 = vmatprep.subr.mxu0 0.0
        %4076 = vmatpush1.msra.mxu0 0.0
        %4077 = vmatprep.subr.mxu0 0.0
        %4078 = vmatpush1.msra.mxu0 0.0
        %4079 = vmatprep.subr.mxu0 0.0
        %4080 = vmatpush1.msra.mxu0 0.0
        %4081 = vmatprep.subr.mxu0 0.0
        %4082 = vmatpush1.msra.mxu0 0.0
        %4083 = vmatprep.subr.mxu0 0.0
        %4084 = vmatpush1.msra.mxu0 0.0
        %4085 = vmatprep.subr.mxu0 0.0
        %4086 = vmatpush1.msra.mxu0 0.0
        %4087 = vmatprep.subr.mxu0 0.0
        %4088 = vmatpush1.msra.mxu0 0.0
        %4089 = vmatprep.subr.mxu0 0.0
        %4090 = vmatpush1.msra.mxu0 0.0
        %4091 = vmatprep.subr.mxu0 0.0
        %4092 = vmatpush1.msra.mxu0 0.0
        %4093 = vmatprep.subr.mxu0 0.0
        %4094 = vmatpush1.msra.mxu0 0.0
        %4095 = vmatprep.subr.mxu0 0.0
        %4096 = vmatpush1.msra.mxu0 0.0
        %4097 = vmatprep.subr.mxu0 0.0
        %4098 = vmatpush1.msra.mxu0 0.0
        %4099 = vmatprep.subr.mxu0 0.0
        %4100 = vmatpush1.msra.mxu0 0.0
        %4101 = vmatprep.subr.mxu0 0.0
        %4102 = vmatpush1.msra.mxu0 0.0
        %4103 = vmatprep.subr.mxu0 0.0
        %4104 = vmatpush1.msra.mxu0 %v707
        %4105 = vmatprep.subr.mxu0 0.0
        %4106 = vmatpush2.msra.mxu0 0.0
        %4107 = vmatprep.subr.mxu0 0.0
        %4108 = vmatpush2.msra.mxu0 0.0
        %4109 = vmatprep.subr.mxu0 0.0
        %4110 = vmatpush2.msra.mxu0 0.0
        %4111 = vmatprep.subr.mxu0 0.0
        %4112 = vmatpush2.msra.mxu0 0.0
        %4113 = vmatprep.subr.mxu0 0.0
        %4114 = vmatpush2.msra.mxu0 0.0
        %4115 = vmatprep.subr.mxu0 0.0
        %4116 = vmatpush2.msra.mxu0 0.0
        %4117 = vmatprep.subr.mxu0 0.0
        %4118 = vmatpush2.msra.mxu0 0.0
        %4119 = vmatprep.subr.mxu0 0.0
        %4120 = vmatpush2.msra.mxu0 0.0
        %4121 = vmatprep.subr.mxu0 0.0
        %4122 = vmatpush2.msra.mxu0 0.0
        %4123 = vmatprep.subr.mxu0 0.0
        %4124 = vmatpush2.msra.mxu0 0.0
        %4125 = vmatprep.subr.mxu0 0.0
        %4126 = vmatpush2.msra.mxu0 0.0
        %4127 = vmatprep.subr.mxu0 0.0
        %4128 = vmatpush2.msra.mxu0 0.0
        %4129 = vmatprep.subr.mxu0 0.0
        %4130 = vmatpush2.msra.mxu0 0.0
        %4131 = vmatprep.subr.mxu0 0.0
        %4132 = vmatpush2.msra.mxu0 0.0
        %4133 = vmatprep.subr.mxu0 0.0
        %4134 = vmatpush2.msra.mxu0 0.0
        %4135 = vmatprep.subr.mxu0 0.0
        %4136 = vmatpush2.msra.mxu0 0.0
        %4137 = vmatprep.mubr.f32.mxu0 0.0
        %4138 = vmatmul.mubr.f32.gmra.mxu0 %v4071
        %v4139 = vpop.f32.mrf.mxu0
        %v4140 = vadd.f32 0.0, %v4139
        %v4141 = vpop.f32.mrf.mxu0
        %4142 = vdwg.mxu0
        %v4144 = vsel %vm1639, %v3921, 0
        %4146 = vmatprep.subr.mxu0 0.0
        %4147 = vmatpush1.msra.mxu0 0.0
        %4148 = vmatprep.subr.mxu0 0.0
        %4149 = vmatpush1.msra.mxu0 0.0
        %4150 = vmatprep.subr.mxu0 0.0
        %4151 = vmatpush1.msra.mxu0 0.0
        %4152 = vmatprep.subr.mxu0 0.0
        %4153 = vmatpush1.msra.mxu0 0.0
        %4154 = vmatprep.subr.mxu0 0.0
        %4155 = vmatpush1.msra.mxu0 0.0
        %4156 = vmatprep.subr.mxu0 0.0
        %4157 = vmatpush1.msra.mxu0 0.0
        %4158 = vmatprep.subr.mxu0 0.0
        %4159 = vmatpush1.msra.mxu0 0.0
        %4160 = vmatprep.subr.mxu0 0.0
        %4161 = vmatpush1.msra.mxu0 0.0
        %4162 = vmatprep.subr.mxu0 0.0
        %4163 = vmatpush1.msra.mxu0 0.0
        %4164 = vmatprep.subr.mxu0 0.0
        %4165 = vmatpush1.msra.mxu0 0.0
        %4166 = vmatprep.subr.mxu0 0.0
        %4167 = vmatpush1.msra.mxu0 0.0
        %4168 = vmatprep.subr.mxu0 0.0
        %4169 = vmatpush1.msra.mxu0 0.0
        %4170 = vmatprep.subr.mxu0 0.0
        %4171 = vmatpush1.msra.mxu0 0.0
        %4172 = vmatprep.subr.mxu0 0.0
        %4173 = vmatpush1.msra.mxu0 0.0
        %4174 = vmatprep.subr.mxu0 0.0
        %4175 = vmatpush1.msra.mxu0 0.0
        %4176 = vmatprep.subr.mxu0 0.0
        %4177 = vmatpush1.msra.mxu0 %v708
        %4178 = vmatprep.subr.mxu0 0.0
        %4179 = vmatpush2.msra.mxu0 0.0
        %4180 = vmatprep.subr.mxu0 0.0
        %4181 = vmatpush2.msra.mxu0 0.0
        %4182 = vmatprep.subr.mxu0 0.0
        %4183 = vmatpush2.msra.mxu0 0.0
        %4184 = vmatprep.subr.mxu0 0.0
        %4185 = vmatpush2.msra.mxu0 0.0
        %4186 = vmatprep.subr.mxu0 0.0
        %4187 = vmatpush2.msra.mxu0 0.0
        %4188 = vmatprep.subr.mxu0 0.0
        %4189 = vmatpush2.msra.mxu0 0.0
        %4190 = vmatprep.subr.mxu0 0.0
        %4191 = vmatpush2.msra.mxu0 0.0
        %4192 = vmatprep.subr.mxu0 0.0
        %4193 = vmatpush2.msra.mxu0 0.0
        %4194 = vmatprep.subr.mxu0 0.0
        %4195 = vmatpush2.msra.mxu0 0.0
        %4196 = vmatprep.subr.mxu0 0.0
        %4197 = vmatpush2.msra.mxu0 0.0
        %4198 = vmatprep.subr.mxu0 0.0
        %4199 = vmatpush2.msra.mxu0 0.0
        %4200 = vmatprep.subr.mxu0 0.0
        %4201 = vmatpush2.msra.mxu0 0.0
        %4202 = vmatprep.subr.mxu0 0.0
        %4203 = vmatpush2.msra.mxu0 0.0
        %4204 = vmatprep.subr.mxu0 0.0
        %4205 = vmatpush2.msra.mxu0 0.0
        %4206 = vmatprep.subr.mxu0 0.0
        %4207 = vmatpush2.msra.mxu0 0.0
        %4208 = vmatprep.subr.mxu0 0.0
        %4209 = vmatpush2.msra.mxu0 0.0
        %4210 = vmatprep.mubr.f32.mxu0 0.0
        %4211 = vmatmul.mubr.f32.gmra.mxu0 %v4144
        %v4212 = vpop.f32.mrf.mxu0
        %v4213 = vadd.f32 0.0, %v4212
        %v4214 = vpop.f32.mrf.mxu0
        %4215 = vdwg.mxu0
        %v4217 = vsel %vm1639, %v3994, 0
        %4219 = vmatprep.subr.mxu0 0.0
        %4220 = vmatpush1.msra.mxu0 0.0
        %4221 = vmatprep.subr.mxu0 0.0
        %4222 = vmatpush1.msra.mxu0 0.0
        %4223 = vmatprep.subr.mxu0 0.0
        %4224 = vmatpush1.msra.mxu0 0.0
        %4225 = vmatprep.subr.mxu0 0.0
        %4226 = vmatpush1.msra.mxu0 0.0
        %4227 = vmatprep.subr.mxu0 0.0
        %4228 = vmatpush1.msra.mxu0 0.0
        %4229 = vmatprep.subr.mxu0 0.0
        %4230 = vmatpush1.msra.mxu0 0.0
        %4231 = vmatprep.subr.mxu0 0.0
        %4232 = vmatpush1.msra.mxu0 0.0
        %4233 = vmatprep.subr.mxu0 0.0
        %4234 = vmatpush1.msra.mxu0 0.0
        %4235 = vmatprep.subr.mxu0 0.0
        %4236 = vmatpush1.msra.mxu0 0.0
        %4237 = vmatprep.subr.mxu0 0.0
        %4238 = vmatpush1.msra.mxu0 0.0
        %4239 = vmatprep.subr.mxu0 0.0
        %4240 = vmatpush1.msra.mxu0 0.0
        %4241 = vmatprep.subr.mxu0 0.0
        %4242 = vmatpush1.msra.mxu0 0.0
        %4243 = vmatprep.subr.mxu0 0.0
        %4244 = vmatpush1.msra.mxu0 0.0
        %4245 = vmatprep.subr.mxu0 0.0
        %4246 = vmatpush1.msra.mxu0 0.0
        %4247 = vmatprep.subr.mxu0 0.0
        %4248 = vmatpush1.msra.mxu0 0.0
        %4249 = vmatprep.subr.mxu0 0.0
        %4250 = vmatpush1.msra.mxu0 %v709
        %4251 = vmatprep.subr.mxu0 0.0
        %4252 = vmatpush2.msra.mxu0 0.0
        %4253 = vmatprep.subr.mxu0 0.0
        %4254 = vmatpush2.msra.mxu0 0.0
        %4255 = vmatprep.subr.mxu0 0.0
        %4256 = vmatpush2.msra.mxu0 0.0
        %4257 = vmatprep.subr.mxu0 0.0
        %4258 = vmatpush2.msra.mxu0 0.0
        %4259 = vmatprep.subr.mxu0 0.0
        %4260 = vmatpush2.msra.mxu0 0.0
        %4261 = vmatprep.subr.mxu0 0.0
        %4262 = vmatpush2.msra.mxu0 0.0
        %4263 = vmatprep.subr.mxu0 0.0
        %4264 = vmatpush2.msra.mxu0 0.0
        %4265 = vmatprep.subr.mxu0 0.0
        %4266 = vmatpush2.msra.mxu0 0.0
        %4267 = vmatprep.subr.mxu0 0.0
        %4268 = vmatpush2.msra.mxu0 0.0
        %4269 = vmatprep.subr.mxu0 0.0
        %4270 = vmatpush2.msra.mxu0 0.0
        %4271 = vmatprep.subr.mxu0 0.0
        %4272 = vmatpush2.msra.mxu0 0.0
        %4273 = vmatprep.subr.mxu0 0.0
        %4274 = vmatpush2.msra.mxu0 0.0
        %4275 = vmatprep.subr.mxu0 0.0
        %4276 = vmatpush2.msra.mxu0 0.0
        %4277 = vmatprep.subr.mxu0 0.0
        %4278 = vmatpush2.msra.mxu0 0.0
        %4279 = vmatprep.subr.mxu0 0.0
        %4280 = vmatpush2.msra.mxu0 0.0
        %4281 = vmatprep.subr.mxu0 0.0
        %4282 = vmatpush2.msra.mxu0 0.0
        %4283 = vmatprep.mubr.f32.mxu0 0.0
        %4284 = vmatmul.mubr.f32.gmra.mxu0 %v4217
        %v4285 = vpop.f32.mrf.mxu0
        %v4286 = vadd.f32 0.0, %v4285
        %v4287 = vpop.f32.mrf.mxu0
        %4288 = vdwg.mxu0
        %v4290 = vsel %vm1639, %v4067, 0
        %4292 = vmatprep.subr.mxu0 0.0
        %4293 = vmatpush1.msra.mxu0 0.0
        %4294 = vmatprep.subr.mxu0 0.0
        %4295 = vmatpush1.msra.mxu0 0.0
        %4296 = vmatprep.subr.mxu0 0.0
        %4297 = vmatpush1.msra.mxu0 0.0
        %4298 = vmatprep.subr.mxu0 0.0
        %4299 = vmatpush1.msra.mxu0 0.0
        %4300 = vmatprep.subr.mxu0 0.0
        %4301 = vmatpush1.msra.mxu0 0.0
        %4302 = vmatprep.subr.mxu0 0.0
        %4303 = vmatpush1.msra.mxu0 0.0
        %4304 = vmatprep.subr.mxu0 0.0
        %4305 = vmatpush1.msra.mxu0 0.0
        %4306 = vmatprep.subr.mxu0 0.0
        %4307 = vmatpush1.msra.mxu0 0.0
        %4308 = vmatprep.subr.mxu0 0.0
        %4309 = vmatpush1.msra.mxu0 0.0
        %4310 = vmatprep.subr.mxu0 0.0
        %4311 = vmatpush1.msra.mxu0 0.0
        %4312 = vmatprep.subr.mxu0 0.0
        %4313 = vmatpush1.msra.mxu0 0.0
        %4314 = vmatprep.subr.mxu0 0.0
        %4315 = vmatpush1.msra.mxu0 0.0
        %4316 = vmatprep.subr.mxu0 0.0
        %4317 = vmatpush1.msra.mxu0 0.0
        %4318 = vmatprep.subr.mxu0 0.0
        %4319 = vmatpush1.msra.mxu0 0.0
        %4320 = vmatprep.subr.mxu0 0.0
        %4321 = vmatpush1.msra.mxu0 0.0
        %4322 = vmatprep.subr.mxu0 0.0
        %4323 = vmatpush1.msra.mxu0 %v710
        %4324 = vmatprep.subr.mxu0 0.0
        %4325 = vmatpush2.msra.mxu0 0.0
        %4326 = vmatprep.subr.mxu0 0.0
        %4327 = vmatpush2.msra.mxu0 0.0
        %4328 = vmatprep.subr.mxu0 0.0
        %4329 = vmatpush2.msra.mxu0 0.0
        %4330 = vmatprep.subr.mxu0 0.0
        %4331 = vmatpush2.msra.mxu0 0.0
        %4332 = vmatprep.subr.mxu0 0.0
        %4333 = vmatpush2.msra.mxu0 0.0
        %4334 = vmatprep.subr.mxu0 0.0
        %4335 = vmatpush2.msra.mxu0 0.0
        %4336 = vmatprep.subr.mxu0 0.0
        %4337 = vmatpush2.msra.mxu0 0.0
        %4338 = vmatprep.subr.mxu0 0.0
        %4339 = vmatpush2.msra.mxu0 0.0
        %4340 = vmatprep.subr.mxu0 0.0
        %4341 = vmatpush2.msra.mxu0 0.0
        %4342 = vmatprep.subr.mxu0 0.0
        %4343 = vmatpush2.msra.mxu0 0.0
        %4344 = vmatprep.subr.mxu0 0.0
        %4345 = vmatpush2.msra.mxu0 0.0
        %4346 = vmatprep.subr.mxu0 0.0
        %4347 = vmatpush2.msra.mxu0 0.0
        %4348 = vmatprep.subr.mxu0 0.0
        %4349 = vmatpush2.msra.mxu0 0.0
        %4350 = vmatprep.subr.mxu0 0.0
        %4351 = vmatpush2.msra.mxu0 0.0
        %4352 = vmatprep.subr.mxu0 0.0
        %4353 = vmatpush2.msra.mxu0 0.0
        %4354 = vmatprep.subr.mxu0 0.0
        %4355 = vmatpush2.msra.mxu0 0.0
        %4356 = vmatprep.mubr.f32.mxu0 0.0
        %4357 = vmatmul.mubr.f32.gmra.mxu0 %v4290
        %v4358 = vpop.f32.mrf.mxu0
        %v4359 = vadd.f32 0.0, %v4358
        %v4360 = vpop.f32.mrf.mxu0
        %4361 = vdwg.mxu0
        %v4362 = vsel %vm747, %v4140, 0.0
        %v4363 = vsel %vm747, %v4213, 0.0
        %v4364 = vadd.f32 %v4362, %v4363
        %v4365 = vsel %vm747, %v4286, 0.0
        %v4366 = vadd.f32 %v4364, %v4365
        %v4367 = vsel %vm747, %v4359, 0.0
        %v4368 = vadd.f32 %v4366, %v4367
        %v4369 = vld [vmem:[%s634] sm:$0x1]
        %v4371 = vlaneseq
        %v4372 = vshrl.u32 %v4371, 7
        %v4373 = vsub.s32 0, %v4372
        %v4374 = vrot.slane %v4369, %v4373
        %v4376 = vadd.f32 %v2582, %v4374
        %v4377 = vadd.f32 %v4368, %v4374
        %vm4378 = vcmp.gt.f32.partialorder %v4376, 0.0
        %vm4379 = vcmp.gt.f32.partialorder %v4377, 0.0
        %v4380 = vmul.f32 %v4376, 1.442695
        %v4381 = vpow.pop %v4380
        %v4382 = vmul.f32 %v4377, 1.442695
        %v4383 = vpow.pop %v4382
        %v4384 = vsub.f32 %v4381, 1.0
        %v4385 = vsub.f32 %v4383, 1.0
        %v4386 = vmul.f32 %v4384, 1.6732632
        %v4387 = vmul.f32 %v4385, 1.6732632
        %v4388 = vsel %vm4378, %v4376, %v4386
        %v4389 = vsel %vm4379, %v4377, %v4387
        %v4390 = vmul.f32 %v4388, 1.050701
        %v4391 = vmul.f32 %v4389, 1.050701
        %v4392 = vadd.f32 %v657, %v4390
        %v4393 = vadd.f32 %v658, %v4391
        %v4394 = vld [vmem:[%s637] sm:$0x1]
        %v4395 = vld [vmem:[%s640] sm:$0x1]
        %v4396 = vsel %vm747, %v4392, 0.0
        %4397 = vadd.xlane.f32.xlu0 %v4396
        %v4398 = vpop.xlane.xlu0 %4397
        %v4399 = vsel %vm747, %v4393, 0.0
        %4400 = vadd.xlane.f32.xlu0 %v4399
        %v4401 = vpop.xlane.xlu0 %4400
        %v4402 = vrcp.pop 32.0
        %v4403 = vmul.f32 %v4398, %v4402
        %v4404 = vmul.f32 %v4401, %v4402
        %v4405 = vsub.f32 %v4392, %v4403
        %v4406 = vsub.f32 %v4393, %v4404
        %v4407 = vmul.f32 %v4405, %v4405
        %v4408 = vmul.f32 %v4406, %v4406
        %v4409 = vsel %vm747, %v4407, 0.0
        %4410 = vadd.xlane.f32.xlu0 %v4409
        %v4411 = vpop.xlane.xlu0 %4410
        %v4412 = vsel %vm747, %v4408, 0.0
        %4413 = vadd.xlane.f32.xlu0 %v4412
        %v4414 = vpop.xlane.xlu0 %4413
        %v4415 = vmul.f32 %v4411, %v4402
        %v4416 = vmul.f32 %v4414, %v4402
        %v4417 = vadd.f32 %v4415, 1e-05
        %v4418 = vadd.f32 %v4416, 1e-05
        %v4419 = vrsqrt.pop %v4417
        %v4420 = vrsqrt.pop %v4418
        %v4421 = vmul.f32 %v4405, %v4419
        %v4422 = vmul.f32 %v4406, %v4420
        %v4424 = vlaneseq
        %v4425 = vshrl.u32 %v4424, 7
        %v4426 = vsub.s32 0, %v4425
        %v4427 = vrot.slane %v4394, %v4426
        %v4429 = vmul.f32 %v4421, %v4427
        %v4430 = vmul.f32 %v4422, %v4427
        %v4432 = vlaneseq
        %v4433 = vshrl.u32 %v4432, 7
        %v4434 = vsub.s32 0, %v4433
        %v4435 = vrot.slane %v4395, %v4434
        %v4437 = vadd.f32 %v4429, %v4435
        %v4438 = vadd.f32 %v4430, %v4435
        %v4439 = vld [vmem:[%s643] sm:$0x1]
        %v4440 = vld [vmem:[%s646] sm:$0x1]
        %v4441 = vsel %vm747, %v4437, 0.0
        %4442 = vadd.xlane.f32.xlu0 %v4441
        %v4443 = vpop.xlane.xlu0 %4442
        %v4444 = vsel %vm747, %v4438, 0.0
        %4445 = vadd.xlane.f32.xlu0 %v4444
        %v4446 = vpop.xlane.xlu0 %4445
        %v4447 = vmul.f32 %v4443, %v4402
        %v4448 = vmul.f32 %v4446, %v4402
        %v4449 = vsub.f32 %v4437, %v4447
        %v4450 = vsub.f32 %v4438, %v4448
        %v4451 = vmul.f32 %v4449, %v4449
        %v4452 = vmul.f32 %v4450, %v4450
        %v4453 = vsel %vm747, %v4451, 0.0
        %4454 = vadd.xlane.f32.xlu0 %v4453
        %v4455 = vpop.xlane.xlu0 %4454
        %v4456 = vsel %vm747, %v4452, 0.0
        %4457 = vadd.xlane.f32.xlu0 %v4456
        %v4458 = vpop.xlane.xlu0 %4457
        %v4459 = vmul.f32 %v4455, %v4402
        %v4460 = vmul.f32 %v4458, %v4402
        %v4461 = vadd.f32 %v4459, 1e-05
        %v4462 = vadd.f32 %v4460, 1e-05
        %v4463 = vrsqrt.pop %v4461
        %v4464 = vrsqrt.pop %v4462
        %v4465 = vmul.f32 %v4449, %v4463
        %v4466 = vmul.f32 %v4450, %v4464
        %v4468 = vlaneseq
        %v4469 = vshrl.u32 %v4468, 7
        %v4470 = vsub.s32 0, %v4469
        %v4471 = vrot.slane %v4439, %v4470
        %v4473 = vmul.f32 %v4465, %v4471
        %v4474 = vmul.f32 %v4466, %v4471
        %v4476 = vlaneseq
        %v4477 = vshrl.u32 %v4476, 7
        %v4478 = vsub.s32 0, %v4477
        %v4479 = vrot.slane %v4440, %v4478
        %v4481 = vadd.f32 %v4473, %v4479
        %v4482 = vadd.f32 %v4474, %v4479
        %4483 = vst.msk [vmem:[#allocation2] sm:$0xff] %vm747, %v4481
        %4484 = vst.msk [vmem:[#allocation2 + $0x8] sm:$0xff] %vm747, %v4482
        // Predicated region
        $region77: #{tpu_custom_call.1} parent=71 // pred_check
          %p4485 = pneg %p393
        $region78: #{tpu_custom_call.1} parent=71 // pred_check_branch
          %4487 = sbr.rel (%p4485) target = $region80
        $region79: #{tpu_custom_call.1} parent=71 // pred_region
          %s4488 = smul.u32 2, %s29
          %s4490 = ssub.s32 256, 256
          %4491 = vsyncadd [#allocation3], %s4490
          %s4492 = smul.addr %s4488, 128
          %s4493 = scalar_lea.hbm %s13, %s4492
          %s4494 = sshll.u32 [#allocation2], 4
          %s4495 = int_to_ptr.vmem [resolvable:$true] %s4494
          %4500 = dma.vmem_to_hbm [thread:$0]  %s4495, 256, %s4493, [#allocation3], 128, 128, 8
        $region80: #{tpu_custom_call.1} parent=71 // pred_fallthru
          _
        // Predicated region
        $region81: #{tpu_custom_call.1} parent=71 // pred_check
          %p4501 = pneg %p393
        $region82: #{tpu_custom_call.1} parent=71 // pred_check_branch
          %4503 = sbr.rel (%p4501) target = $region84
        $region83: #{tpu_custom_call.1} parent=71 // pred_region
          %4504 = dma.done [#allocation3], 256
        $region84: #{tpu_custom_call.1} parent=71 // pred_fallthru
          _
      $region72: #{tpu_custom_call.1} parent=5 // pred_fallthru
        _
      %p4505 = scmp.le.s32.totalorder 2, %s20
      // Predicated region
      $region85: #{tpu_custom_call.1} parent=5 // pred_check
        %p4506 = pneg %p4505
      $region86: #{tpu_custom_call.1} parent=5 // pred_check_branch
        %4508 = sbr.rel (%p4506) target = $region88
      $region87: #{tpu_custom_call.1} parent=5 // pred_region
        %s4509 = ssub.s32 %s20, 2
      $region88: #{tpu_custom_call.1} parent=5 // pred_fallthru
        _
    $region6: #{tpu_custom_call.1} parent=1 // loop_footer
      %s24 = sadd.s32 1, %s20
    $region7: #{tpu_custom_call.1} parent=1 // loop_footer_branch
      %19 = sbr.rel target = $region3
    $region8: #{tpu_custom_call.1} parent=1 // loop_exit
      _
    %4510 = vsyncpa [#allocation3], 1
    %s4511 = scalar_lea.sflag [#allocation3], 1
    %4512 = vsyncpa %s4511, 1

</llo_original>
